<compile_context>
chip_gen: v7x
topology: tpu7x:2x2x1
jax: 0.10.0
libtpu: 0.0.40
codegen_flags: <defaults>
</compile_context>

<pallas_src>
import functools

import jax
import jax.numpy as jnp
from jax.experimental import pallas as pl

LN_EPS = 1e-6      # nn.LayerNorm(d_model, eps=1e-06)
BN_EPS = 1e-5      # nn.BatchNorm1d default eps


# ----------------------------------------------------------------------------
# Kernel 1: graph constructor adjacency (tiny one-shot)
# ----------------------------------------------------------------------------

def _graph_adj_kernel(e1_ref, e2_ref, w1_ref, b1_ref, w2_ref, b2_ref, o_ref, *, alpha):
    nv1 = jnp.tanh(alpha * (jnp.dot(e1_ref[...], w1_ref[...],
                                    preferred_element_type=jnp.float32) + b1_ref[...]))
    nv2 = jnp.tanh(alpha * (jnp.dot(e2_ref[...], w2_ref[...],
                                    preferred_element_type=jnp.float32) + b2_ref[...]))
    dims = (((1,), (1,)), ((), ()))            # contract d_k: A @ B.T without a k.T copy
    m = jax.lax.dot_general(nv1, nv2, dims, preferred_element_type=jnp.float32)
    # mt == m.T exactly: saves one MXU matmul; the transpose rides the otherwise-idle XLU.
    o_ref[...] = jnp.maximum(jnp.tanh(alpha * (m - m.T)), 0.0)


def pallas_graph_adj(gc, alpha):
    D = gc["emb1"].shape[0]
    return pl.pallas_call(
        functools.partial(_graph_adj_kernel, alpha=alpha),
        out_shape=jax.ShapeDtypeStruct((D, D), jnp.float32),
    )(gc["emb1"], gc["emb2"],
      gc["lin1_w"], gc["lin1_b"].reshape(1, -1),
      gc["lin2_w"], gc["lin2_b"].reshape(1, -1))


def graph_constructor_forward(gc, n_nodes, alpha, k):
    # TODO(synk): graph_constructor source not provided; MTGNN-style construction assumed.
    adj = pallas_graph_adj(gc, alpha)
    # top-k neighbor masking: data-dependent sort on a tiny (D, D) one-shot -> plain XLA.
    _, idx = jax.lax.top_k(adj, k)
    mask = jnp.minimum(jnp.sum(jax.nn.one_hot(idx, n_nodes, dtype=jnp.float32), axis=1), 1.0)
    return adj * mask


def _normalized_adj_T(adj):
    # (adj + I), row-normalized; return its transpose so the kernel just does h @ aT.
    a = adj + jnp.eye(adj.shape[0], dtype=jnp.float32)
    a = a / jnp.sum(a, axis=1, keepdims=True)
    return a.T


# ----------------------------------------------------------------------------
# Kernel 2: the ENTIRE post-adjacency forward pass in ONE pallas_call
# ----------------------------------------------------------------------------

def _vencoder_fused_kernel(src_ref, ew_ref, eb_ref, al_ref, ar_ref,
                           wl_ref, bl_ref, wr_ref, br_ref,
                           gg_ref, gb_ref, pos_ref, mask_ref,
                           wqkv_ref, ag_ref, ab_ref,
                           w1_ref, b1_ref, w2_ref, b2_ref,
                           fg_ref, fb_ref,
                           lng_ref, lnb_ref, hw_ref, hb_ref,
                           bns_ref, bnb_ref, out_ref,
                           *, B, S, D, n_layers, n_head, d_k, gdep, g_alpha, eps):
    f32 = jnp.float32

    def layernorm(z, g, b):
        mu = jnp.mean(z, axis=-1, keepdims=True)
        c = z - mu
        var = jnp.mean(c * c, axis=-1, keepdims=True)
        return c * jax.lax.rsqrt(var + eps) * g + b

    # ---- src embedding (dropout = identity in eval) --------------------------------
    x = jnp.dot(src_ref[...], ew_ref[...], preferred_element_type=f32) + eb_ref[...]  # (M, D)

    # ---- mixprop(L) + mixprop(R) + residual + gcn LayerNorm -------------------------
    # TODO(synk): mixprop source not provided; MTGNN mixprop adapted to a feature-dim graph.
    # concat([h0..h_gdep]) @ W == sum_i h_i @ W[i]  (accumulated partial matmuls; the
    # weight is stored (gdep+1, D, D) so W[i] is a zero-copy leading-axis slice).
    def mixprop(aT, w_ref, b):
        h = x
        acc = jnp.dot(h, w_ref[0], preferred_element_type=f32)
        for i in range(gdep):
            prop = jnp.dot(h, aT, preferred_element_type=f32)
            h = g_alpha * x + (1.0 - g_alpha) * prop
            acc = acc + jnp.dot(h, w_ref[i + 1], preferred_element_type=f32)
        return acc + b

    ho = (mixprop(al_ref[...], wl_ref, bl_ref[...]) +
          mixprop(ar_ref[...], wr_ref, br_ref[...]) + x)          # + residual
    y = layernorm(ho, gg_ref[...], gb_ref[...])

    # ---- positional encoding: broadcast (S, D) table over batch in-kernel -----------
    pos = pos_ref[...]                                            # (S, D)
    x = y + jnp.concatenate([pos] * B, axis=0)                    # (M, D)

    # ---- transformer stack: static loop, activation never leaves VMEM ---------------
    # TODO(synk): EncoderLayer source not provided; canonical post-LN transformer assumed
    # (bias-free Q/K/V/fc projections, dropout = identity in eval).
    Hdk = n_head * d_k
    scale = 1.0 / (d_k ** 0.5)
    dims = (((1,), (1,)), ((), ()))                               # q @ k.T without k.T copy
    m_all = mask_ref[...]                                         # (B, S): 1 = keep
    for l in range(n_layers):
        # fused Q|K|V' projection (output projection pre-folded into V'): 128 lanes wide
        qkv = jnp.dot(x, wqkv_ref[l], preferred_element_type=f32)   # (M, 2*Hdk + H*D)
        blocks = []
        for b in range(B):                                        # static, tiny
            qkv_b = qkv[b * S:(b + 1) * S, :]
            mask_b = m_all[b:b + 1, :]                            # (1, S)
            acc_b = jnp.zeros((S, D), f32)
            for h in range(n_head):                               # static, tiny
                q = qkv_b[:, h * d_k:(h + 1) * d_k]
                k = qkv_b[:, Hdk + h * d_k: Hdk + (h + 1) * d_k]
                vp = qkv_b[:, 2 * Hdk + h * D: 2 * Hdk + (h + 1) * D]   # fc folded into V
                s = jax.lax.dot_general(q, k, dims, preferred_element_type=f32) * scale
                s = jnp.where(mask_b > 0.0, s, -1e9)
                s = s - jnp.max(s, axis=-1, keepdims=True)
                p = jnp.exp(s)
                p = p * pl.reciprocal(jnp.sum(p, axis=-1, keepdims=True), approx=True)
                acc_b = acc_b + jnp.dot(p, vp, preferred_element_type=f32)
            blocks.append(acc_b)
        attn = jnp.concatenate(blocks, axis=0)                    # (M, D) == concat(o_h)@fc
        x = layernorm(attn + x, ag_ref[l], ab_ref[l])             # add + LN
        hid = jnp.maximum(jnp.dot(x, w1_ref[l],
                                  preferred_element_type=f32) + b1_ref[l], 0.0)
        ffn = jnp.dot(hid, w2_ref[l], preferred_element_type=f32) + b2_ref[l]
        x = layernorm(ffn + x, fg_ref[l], fb_ref[l])              # add + LN

    # ---- final LayerNorm + fused mu|logvar head + eval-BN affine (dense (S,2D)) -----
    y = layernorm(x, lng_ref[...], lnb_ref[...])
    h = jnp.dot(y, hw_ref[...], preferred_element_type=f32) + hb_ref[...]   # (M, 2D)
    bn_s = jnp.concatenate([bns_ref[...]] * B, axis=0)            # (M, 2D): identity on logvar
    bn_b = jnp.concatenate([bnb_ref[...]] * B, axis=0)
    out_ref[...] = h * bn_s + bn_b                                # single lane-dense store


def vencoder_forward(params, src_seq, src_mask, cfg):
    B, S, A = src_seq.shape
    D = cfg["d_word_vec"]

    # graph branch preliminaries (tiny (D, D) one-shot work)
    adj = graph_constructor_forward(params["gc"], D, cfg["gc_alpha"], cfg["k"])
    aT_l = _normalized_adj_T(adj)
    aT_r = _normalized_adj_T(adj.T)

    out2 = pl.pallas_call(
        functools.partial(_vencoder_fused_kernel, B=B, S=S, D=D,
                          n_layers=cfg["n_layers"], n_head=cfg["n_head"],
                          d_k=cfg["d_k"], gdep=cfg["gcn_layers"],
                          g_alpha=cfg["gcn_alpha"], eps=LN_EPS),
        out_shape=jax.ShapeDtypeStruct((B * S, 2 * D), jnp.float32),
    )(src_seq.reshape(B * S, A),
      params["src_emb_w"], params["src_emb_b"].reshape(1, -1),
      aT_l, aT_r,
      params["mix_l_w"], params["mix_l_b"].reshape(1, -1),
      params["mix_r_w"], params["mix_r_b"].reshape(1, -1),
      params["gcn_ln_g"].reshape(1, -1), params["gcn_ln_b"].reshape(1, -1),
      params["pos_table"][:S],
      src_mask,
      params["wqkv_all"],
      params["attn_ln_g_all"], params["attn_ln_b_all"],
      params["w1_all"], params["b1_all"],
      params["w2_all"], params["b2_all"],
      params["ffn_ln_g_all"], params["ffn_ln_b_all"],
      params["ln_g"].reshape(1, -1), params["ln_b"].reshape(1, -1),
      params["head_w"], params["head_b"].reshape(1, -1),
      params["bn_scale"], params["bn_shift"])

    mean = out2[:, :D].reshape(B, S, D)
    logvar = out2[:, D:].reshape(B, S, D)
    return mean, logvar


# ----------------------------------------------------------------------------
# Deterministic parameter initialization (synthetic; no checkpoint loading)
# ----------------------------------------------------------------------------

def sinusoid_table(n_position, d_hid):
    pos = jnp.arange(n_position, dtype=jnp.float32)[:, None]
    j = jnp.arange(d_hid, dtype=jnp.float32)[None, :]
    angle = pos / jnp.power(10000.0, 2.0 * jnp.floor(j / 2.0) / d_hid)
    even = (jnp.arange(d_hid) % 2) == 0
    return jnp.where(even[None, :], jnp.sin(angle), jnp.cos(angle))   # (n_position, d_hid)


def init_params(key, cfg):
    D, A = cfg["d_word_vec"], cfg["ad_size"]
    dk, dv, H = cfg["d_k"], cfg["d_v"], cfg["n_head"]
    DI, S = cfg["d_inner"], cfg["seq_len"]
    gdep, L = cfg["gcn_layers"], cfg["n_layers"]
    keys = iter(jax.random.split(key, 128))

    def dense(d_in, d_out, bias=True):
        k1, k2 = jax.random.split(next(keys))
        w = jax.random.normal(k1, (d_in, d_out), jnp.float32) * (1.0 / float(d_in) ** 0.5)
        b = (jax.random.normal(k2, (d_out,), jnp.float32) * 0.01 if bias
             else jnp.zeros((d_out,), jnp.float32))
        return w, b

    p = {}
    p["src_emb_w"], p["src_emb_b"] = dense(A, D)

    gc = {}
    gc["emb1"] = jax.random.normal(next(keys), (D, dk), jnp.float32) * 0.1
    gc["emb2"] = jax.random.normal(next(keys), (D, dk), jnp.float32) * 0.1
    gc["lin1_w"], gc["lin1_b"] = dense(dk, dk)
    gc["lin2_w"], gc["lin2_b"] = dense(dk, dk)
    p["gc"] = gc

    # mixprop weights stored (gdep+1, D, D) so the kernel indexes the leading axis
    wl, p["mix_l_b"] = dense((gdep + 1) * D, D)
    wr, p["mix_r_b"] = dense((gdep + 1) * D, D)
    p["mix_l_w"] = wl.reshape(gdep + 1, D, D)
    p["mix_r_w"] = wr.reshape(gdep + 1, D, D)
    p["gcn_ln_g"] = jnp.ones((D,), jnp.float32)
    p["gcn_ln_b"] = jnp.zeros((D,), jnp.float32)
    p["pos_table"] = sinusoid_table(cfg["n_position"], D)

    wqkv_l, ag_l, ab_l, w1_l, b1_l, w2_l, b2_l, fg_l, fb_l = ([] for _ in range(9))
    for _ in range(L):
        wq, _ = dense(D, H * dk, bias=False)
        wk, _ = dense(D, H * dk, bias=False)
        wv, _ = dense(D, H * dv, bias=False)
        fc_w, _ = dense(H * dv, D, bias=False)
        # fold the output projection into V offline: v'_h = wv_h @ fc_w_h -> (D, D) per head,
        # so the fused Q|K|V' weight is (D, 2*H*dk + H*D) = (32, 128): lane-dense.
        wvp = jnp.concatenate(
            [wv[:, h * dv:(h + 1) * dv] @ fc_w[h * dv:(h + 1) * dv, :] for h in range(H)],
            axis=1)
        wqkv_l.append(jnp.concatenate([wq, wk, wvp], axis=1))
        ag_l.append(jnp.ones((1, D), jnp.float32))
        ab_l.append(jnp.zeros((1, D), jnp.float32))
        w1, b1 = dense(D, DI)
        w2, b2 = dense(DI, D)
        w1_l.append(w1); b1_l.append(b1.reshape(1, -1))
        w2_l.append(w2); b2_l.append(b2.reshape(1, -1))
        fg_l.append(jnp.ones((1, D), jnp.float32))
        fb_l.append(jnp.zeros((1, D), jnp.float32))
    p["wqkv_all"] = jnp.stack(wqkv_l)                     # (L, D, 2*H*dk + H*D)
    p["attn_ln_g_all"] = jnp.stack(ag_l)                  # (L, 1, D)
    p["attn_ln_b_all"] = jnp.stack(ab_l)
    p["w1_all"] = jnp.stack(w1_l); p["b1_all"] = jnp.stack(b1_l)
    p["w2_all"] = jnp.stack(w2_l); p["b2_all"] = jnp.stack(b2_l)
    p["ffn_ln_g_all"] = jnp.stack(fg_l)
    p["ffn_ln_b_all"] = jnp.stack(fb_l)

    p["ln_g"] = jnp.ones((D,), jnp.float32)
    p["ln_b"] = jnp.zeros((D,), jnp.float32)

    mu_w, mu_b = dense(D, D)
    lv_w, lv_b = dense(D, D)
    p["head_w"] = jnp.concatenate([mu_w, lv_w], axis=1)   # fused mu|logvar weight (D, 2D)
    p["head_b"] = jnp.concatenate([mu_b, lv_b], axis=0)

    # mu_bn: eval-mode BatchNorm1d(seq_len) with default running stats (mean=0, var=1),
    # weight=1 (frozen), bias=0 -> per-position affine on the mu half; identity on logvar.
    # Stored lane-dense as (S, 2D) scale/shift so the kernel applies one fused mul-add.
    # TODO(synk): if a trained checkpoint provides non-default running stats, fill these
    # (S, 2D) arrays per position instead of with the default constant.
    bn_scale_mu = jnp.full((S, D), 1.0 / (1.0 + BN_EPS) ** 0.5, jnp.float32)
    p["bn_scale"] = jnp.concatenate([bn_scale_mu, jnp.ones((S, D), jnp.float32)], axis=1)
    p["bn_shift"] = jnp.zeros((S, 2 * D), jnp.float32)
    return p


# ----------------------------------------------------------------------------
# Main
# ----------------------------------------------------------------------------

if __name__ == "__main__":
    cfg = dict(ad_size=16, d_word_vec=32, d_model=32, n_layers=2, n_head=2,
               d_k=16, d_v=16, d_inner=64, n_position=200, seq_len=8,
               gcn_layers=2, gcn_alpha=0.2, gc_alpha=3.0, k=2, batch=2)

    key = jax.random.PRNGKey(0)
    params = init_params(key, cfg)

    kx = jax.random.fold_in(key, 123)
    src_seq = jax.random.normal(kx, (cfg["batch"], cfg["seq_len"], cfg["ad_size"]), jnp.float32)
    src_mask = jnp.ones((cfg["batch"], cfg["seq_len"]), jnp.float32).at[1, -2:].set(0.0)

    fwd = jax.jit(lambda p, s, m: vencoder_forward(p, s, m, cfg))
    mean, logvar = fwd(params, src_seq, src_mask)
    (mean, logvar) = jax.block_until_ready((mean, logvar))

    assert mean.shape == (cfg["batch"], cfg["seq_len"], cfg["d_model"])
    assert logvar.shape == (cfg["batch"], cfg["seq_len"], cfg["d_model"])
    assert bool(jnp.all(jnp.isfinite(mean))) and bool(jnp.all(jnp.isfinite(logvar)))
    print("KERNEL_OK")
</pallas_src>

<mosaic_0001>
module attributes {stable_mosaic.version = 11 : i64} {
  func.func @_graph_adj_kernel(%arg0: memref<32x16xf32, #tpu.memory_space<vmem>>, %arg1: memref<32x16xf32, #tpu.memory_space<vmem>>, %arg2: memref<16x16xf32, #tpu.memory_space<vmem>>, %arg3: memref<1x16xf32, #tpu.memory_space<vmem>>, %arg4: memref<16x16xf32, #tpu.memory_space<vmem>>, %arg5: memref<1x16xf32, #tpu.memory_space<vmem>>, %arg6: memref<32x32xf32, #tpu.memory_space<vmem>>) attributes {dimension_semantics = [], scalar_prefetch = 0 : i64, scratch_operands = 0 : i64, tpu.core_type = #tpu.core_type<tc>} {
    %c0 = arith.constant 0 : index
    %c0_0 = arith.constant 0 : index
    %0 = vector.load %arg0[%c0, %c0_0] : memref<32x16xf32, #tpu.memory_space<vmem>>, vector<32x16xf32>
    %c0_1 = arith.constant 0 : index
    %c0_2 = arith.constant 0 : index
    %1 = vector.load %arg2[%c0_1, %c0_2] : memref<16x16xf32, #tpu.memory_space<vmem>>, vector<16x16xf32>
    %cst = arith.constant dense<0.000000e+00> : vector<32x16xf32>
    %2 = tpu.matmul %0, %1, %cst {dimension_numbers = #tpu.dot_dimension_numbers<[1], [0], [0], [1], [0, 0, 1, 1], [], []>} : vector<32x16xf32>, vector<16x16xf32>, vector<32x16xf32> -> vector<32x16xf32>
    %c0_3 = arith.constant 0 : index
    %c0_4 = arith.constant 0 : index
    %3 = vector.load %arg3[%c0_3, %c0_4] : memref<1x16xf32, #tpu.memory_space<vmem>>, vector<1x16xf32>
    %4 = vector.broadcast %3 : vector<1x16xf32> to vector<32x16xf32>
    %5 = arith.addf %2, %4 : vector<32x16xf32>
    %cst_5 = arith.constant 3.000000e+00 : f32
    %6 = vector.broadcast %cst_5 : f32 to vector<32x16xf32>
    %7 = arith.mulf %6, %5 : vector<32x16xf32>
    %8 = math.tanh %7 : vector<32x16xf32>
    %c0_6 = arith.constant 0 : index
    %c0_7 = arith.constant 0 : index
    %9 = vector.load %arg1[%c0_6, %c0_7] : memref<32x16xf32, #tpu.memory_space<vmem>>, vector<32x16xf32>
    %c0_8 = arith.constant 0 : index
    %c0_9 = arith.constant 0 : index
    %10 = vector.load %arg4[%c0_8, %c0_9] : memref<16x16xf32, #tpu.memory_space<vmem>>, vector<16x16xf32>
    %cst_10 = arith.constant dense<0.000000e+00> : vector<32x16xf32>
    %11 = tpu.matmul %9, %10, %cst_10 {dimension_numbers = #tpu.dot_dimension_numbers<[1], [0], [0], [1], [0, 0, 1, 1], [], []>} : vector<32x16xf32>, vector<16x16xf32>, vector<32x16xf32> -> vector<32x16xf32>
    %c0_11 = arith.constant 0 : index
    %c0_12 = arith.constant 0 : index
    %12 = vector.load %arg5[%c0_11, %c0_12] : memref<1x16xf32, #tpu.memory_space<vmem>>, vector<1x16xf32>
    %13 = vector.broadcast %12 : vector<1x16xf32> to vector<32x16xf32>
    %14 = arith.addf %11, %13 : vector<32x16xf32>
    %cst_13 = arith.constant 3.000000e+00 : f32
    %15 = vector.broadcast %cst_13 : f32 to vector<32x16xf32>
    %16 = arith.mulf %15, %14 : vector<32x16xf32>
    %17 = math.tanh %16 : vector<32x16xf32>
    %cst_14 = arith.constant dense<0.000000e+00> : vector<32x32xf32>
    %18 = tpu.matmul %8, %17, %cst_14 {dimension_numbers = #tpu.dot_dimension_numbers<[1], [1], [0], [0], [0, 0, 1, 0], [], []>} : vector<32x16xf32>, vector<32x16xf32>, vector<32x32xf32> -> vector<32x32xf32>
    %19 = tpu.transpose %18, [1, 0] : vector<32x32xf32> -> vector<32x32xf32>
    %20 = arith.subf %18, %19 : vector<32x32xf32>
    %cst_15 = arith.constant 3.000000e+00 : f32
    %21 = vector.broadcast %cst_15 : f32 to vector<32x32xf32>
    %22 = arith.mulf %21, %20 : vector<32x32xf32>
    %23 = math.tanh %22 : vector<32x32xf32>
    %cst_16 = arith.constant 0.000000e+00 : f32
    %24 = vector.broadcast %cst_16 : f32 to vector<32x32xf32>
    %25 = arith.maximumf %23, %24 : vector<32x32xf32>
    %c0_17 = arith.constant 0 : index
    %c0_18 = arith.constant 0 : index
    %26 = vector.load %arg6[%c0_17, %c0_18] : memref<32x32xf32, #tpu.memory_space<vmem>>, vector<32x32xf32>
    tpu.vector_store %arg6[%c0_17, %c0_18], %25 {strides = array<i32>} : memref<32x32xf32, #tpu.memory_space<vmem>>, vector<32x32xf32>,
    return
  }
}

module attributes {stable_mosaic.version = 11 : i64} {
  func.func @_vencoder_fused_kernel(%arg0: memref<16x16xf32, #tpu.memory_space<vmem>>, %arg1: memref<16x32xf32, #tpu.memory_space<vmem>>, %arg2: memref<1x32xf32, #tpu.memory_space<vmem>>, %arg3: memref<32x32xf32, #tpu.memory_space<vmem>>, %arg4: memref<32x32xf32, #tpu.memory_space<vmem>>, %arg5: memref<3x32x32xf32, #tpu.memory_space<vmem>>, %arg6: memref<1x32xf32, #tpu.memory_space<vmem>>, %arg7: memref<3x32x32xf32, #tpu.memory_space<vmem>>, %arg8: memref<1x32xf32, #tpu.memory_space<vmem>>, %arg9: memref<1x32xf32, #tpu.memory_space<vmem>>, %arg10: memref<1x32xf32, #tpu.memory_space<vmem>>, %arg11: memref<8x32xf32, #tpu.memory_space<vmem>>, %arg12: memref<2x8xf32, #tpu.memory_space<vmem>>, %arg13: memref<2x32x128xf32, #tpu.memory_space<vmem>>, %arg14: memref<2x1x32xf32, #tpu.memory_space<vmem>>, %arg15: memref<2x1x32xf32, #tpu.memory_space<vmem>>, %arg16: memref<2x32x64xf32, #tpu.memory_space<vmem>>, %arg17: memref<2x1x64xf32, #tpu.memory_space<vmem>>, %arg18: memref<2x64x32xf32, #tpu.memory_space<vmem>>, %arg19: memref<2x1x32xf32, #tpu.memory_space<vmem>>, %arg20: memref<2x1x32xf32, #tpu.memory_space<vmem>>, %arg21: memref<2x1x32xf32, #tpu.memory_space<vmem>>, %arg22: memref<1x32xf32, #tpu.memory_space<vmem>>, %arg23: memref<1x32xf32, #tpu.memory_space<vmem>>, %arg24: memref<32x64xf32, #tpu.memory_space<vmem>>, %arg25: memref<1x64xf32, #tpu.memory_space<vmem>>, %arg26: memref<8x64xf32, #tpu.memory_space<vmem>>, %arg27: memref<8x64xf32, #tpu.memory_space<vmem>>, %arg28: memref<16x64xf32, #tpu.memory_space<vmem>>) attributes {dimension_semantics = [], scalar_prefetch = 0 : i64, scratch_operands = 0 : i64, tpu.core_type = #tpu.core_type<tc>} {
    %c0 = arith.constant 0 : index
    %c0_0 = arith.constant 0 : index
    %0 = vector.load %arg0[%c0, %c0_0] : memref<16x16xf32, #tpu.memory_space<vmem>>, vector<16x16xf32>
    %c0_1 = arith.constant 0 : index
    %c0_2 = arith.constant 0 : index
    %1 = vector.load %arg1[%c0_1, %c0_2] : memref<16x32xf32, #tpu.memory_space<vmem>>, vector<16x32xf32>
    %cst = arith.constant dense<0.000000e+00> : vector<16x32xf32>
    %2 = tpu.matmul %0, %1, %cst {dimension_numbers = #tpu.dot_dimension_numbers<[1], [0], [0], [1], [0, 0, 1, 1], [], []>} : vector<16x16xf32>, vector<16x32xf32>, vector<16x32xf32> -> vector<16x32xf32>
    %c0_3 = arith.constant 0 : index
    %c0_4 = arith.constant 0 : index
    %3 = vector.load %arg2[%c0_3, %c0_4] : memref<1x32xf32, #tpu.memory_space<vmem>>, vector<1x32xf32>
    %4 = vector.broadcast %3 : vector<1x32xf32> to vector<16x32xf32>
    %5 = arith.addf %2, %4 : vector<16x32xf32>
    %c0_5 = arith.constant 0 : index
    %c0_6 = arith.constant 0 : index
    %6 = vector.load %arg3[%c0_5, %c0_6] : memref<32x32xf32, #tpu.memory_space<vmem>>, vector<32x32xf32>
    %c0_7 = arith.constant 0 : index
    %c0_8 = arith.constant 0 : index
    %7 = vector.load %arg6[%c0_7, %c0_8] : memref<1x32xf32, #tpu.memory_space<vmem>>, vector<1x32xf32>
    %c0_9 = arith.constant 0 : index
    %c0_10 = arith.constant 0 : index
    %c0_11 = arith.constant 0 : index
    %8 = vector.load %arg5[%c0_9, %c0_10, %c0_11] : memref<3x32x32xf32, #tpu.memory_space<vmem>>, vector<1x32x32xf32>
    %9 = vector.shape_cast %8 : vector<1x32x32xf32> to vector<32x32xf32>
    %cst_12 = arith.constant dense<0.000000e+00> : vector<16x32xf32>
    %10 = tpu.matmul %5, %9, %cst_12 {dimension_numbers = #tpu.dot_dimension_numbers<[1], [0], [0], [1], [0, 0, 1, 1], [], []>} : vector<16x32xf32>, vector<32x32xf32>, vector<16x32xf32> -> vector<16x32xf32>
    %cst_13 = arith.constant dense<0.000000e+00> : vector<16x32xf32>
    %11 = tpu.matmul %5, %6, %cst_13 {dimension_numbers = #tpu.dot_dimension_numbers<[1], [0], [0], [1], [0, 0, 1, 1], [], []>} : vector<16x32xf32>, vector<32x32xf32>, vector<16x32xf32> -> vector<16x32xf32>
    %cst_14 = arith.constant 2.000000e-01 : f32
    %12 = vector.broadcast %cst_14 : f32 to vector<16x32xf32>
    %13 = arith.mulf %12, %5 : vector<16x32xf32>
    %cst_15 = arith.constant 8.000000e-01 : f32
    %14 = vector.broadcast %cst_15 : f32 to vector<16x32xf32>
    %15 = arith.mulf %14, %11 : vector<16x32xf32>
    %16 = arith.addf %13, %15 : vector<16x32xf32>
    %c1 = arith.constant 1 : index
    %c0_16 = arith.constant 0 : index
    %c0_17 = arith.constant 0 : index
    %17 = vector.load %arg5[%c1, %c0_16, %c0_17] : memref<3x32x32xf32, #tpu.memory_space<vmem>>, vector<1x32x32xf32>
    %18 = vector.shape_cast %17 : vector<1x32x32xf32> to vector<32x32xf32>
    %cst_18 = arith.constant dense<0.000000e+00> : vector<16x32xf32>
    %19 = tpu.matmul %16, %18, %cst_18 {dimension_numbers = #tpu.dot_dimension_numbers<[1], [0], [0], [1], [0, 0, 1, 1], [], []>} : vector<16x32xf32>, vector<32x32xf32>, vector<16x32xf32> -> vector<16x32xf32>
    %20 = arith.addf %10, %19 : vector<16x32xf32>
    %cst_19 = arith.constant dense<0.000000e+00> : vector<16x32xf32>
    %21 = tpu.matmul %16, %6, %cst_19 {dimension_numbers = #tpu.dot_dimension_numbers<[1], [0], [0], [1], [0, 0, 1, 1], [], []>} : vector<16x32xf32>, vector<32x32xf32>, vector<16x32xf32> -> vector<16x32xf32>
    %cst_20 = arith.constant 2.000000e-01 : f32
    %22 = vector.broadcast %cst_20 : f32 to vector<16x32xf32>
    %23 = arith.mulf %22, %5 : vector<16x32xf32>
    %cst_21 = arith.constant 8.000000e-01 : f32
    %24 = vector.broadcast %cst_21 : f32 to vector<16x32xf32>
    %25 = arith.mulf %24, %21 : vector<16x32xf32>
    %26 = arith.addf %23, %25 : vector<16x32xf32>
    %c2 = arith.constant 2 : index
    %c0_22 = arith.constant 0 : index
    %c0_23 = arith.constant 0 : index
    %27 = vector.load %arg5[%c2, %c0_22, %c0_23] : memref<3x32x32xf32, #tpu.memory_space<vmem>>, vector<1x32x32xf32>
    %28 = vector.shape_cast %27 : vector<1x32x32xf32> to vector<32x32xf32>
    %cst_24 = arith.constant dense<0.000000e+00> : vector<16x32xf32>
    %29 = tpu.matmul %26, %28, %cst_24 {dimension_numbers = #tpu.dot_dimension_numbers<[1], [0], [0], [1], [0, 0, 1, 1], [], []>} : vector<16x32xf32>, vector<32x32xf32>, vector<16x32xf32> -> vector<16x32xf32>
    %30 = arith.addf %20, %29 : vector<16x32xf32>
    %31 = vector.broadcast %7 : vector<1x32xf32> to vector<16x32xf32>
    %32 = arith.addf %30, %31 : vector<16x32xf32>
    %c0_25 = arith.constant 0 : index
    %c0_26 = arith.constant 0 : index
    %33 = vector.load %arg4[%c0_25, %c0_26] : memref<32x32xf32, #tpu.memory_space<vmem>>, vector<32x32xf32>
    %c0_27 = arith.constant 0 : index
    %c0_28 = arith.constant 0 : index
    %34 = vector.load %arg8[%c0_27, %c0_28] : memref<1x32xf32, #tpu.memory_space<vmem>>, vector<1x32xf32>
    %c0_29 = arith.constant 0 : index
    %c0_30 = arith.constant 0 : index
    %c0_31 = arith.constant 0 : index
    %35 = vector.load %arg7[%c0_29, %c0_30, %c0_31] : memref<3x32x32xf32, #tpu.memory_space<vmem>>, vector<1x32x32xf32>
    %36 = vector.shape_cast %35 : vector<1x32x32xf32> to vector<32x32xf32>
    %cst_32 = arith.constant dense<0.000000e+00> : vector<16x32xf32>
    %37 = tpu.matmul %5, %36, %cst_32 {dimension_numbers = #tpu.dot_dimension_numbers<[1], [0], [0], [1], [0, 0, 1, 1], [], []>} : vector<16x32xf32>, vector<32x32xf32>, vector<16x32xf32> -> vector<16x32xf32>
    %cst_33 = arith.constant dense<0.000000e+00> : vector<16x32xf32>
    %38 = tpu.matmul %5, %33, %cst_33 {dimension_numbers = #tpu.dot_dimension_numbers<[1], [0], [0], [1], [0, 0, 1, 1], [], []>} : vector<16x32xf32>, vector<32x32xf32>, vector<16x32xf32> -> vector<16x32xf32>
    %cst_34 = arith.constant 2.000000e-01 : f32
    %39 = vector.broadcast %cst_34 : f32 to vector<16x32xf32>
    %40 = arith.mulf %39, %5 : vector<16x32xf32>
    %cst_35 = arith.constant 8.000000e-01 : f32
    %41 = vector.broadcast %cst_35 : f32 to vector<16x32xf32>
    %42 = arith.mulf %41, %38 : vector<16x32xf32>
    %43 = arith.addf %40, %42 : vector<16x32xf32>
    %c1_36 = arith.constant 1 : index
    %c0_37 = arith.constant 0 : index
    %c0_38 = arith.constant 0 : index
    %44 = vector.load %arg7[%c1_36, %c0_37, %c0_38] : memref<3x32x32xf32, #tpu.memory_space<vmem>>, vector<1x32x32xf32>
    %45 = vector.shape_cast %44 : vector<1x32x32xf32> to vector<32x32xf32>
    %cst_39 = arith.constant dense<0.000000e+00> : vector<16x32xf32>
    %46 = tpu.matmul %43, %45, %cst_39 {dimension_numbers = #tpu.dot_dimension_numbers<[1], [0], [0], [1], [0, 0, 1, 1], [], []>} : vector<16x32xf32>, vector<32x32xf32>, vector<16x32xf32> -> vector<16x32xf32>
    %47 = arith.addf %37, %46 : vector<16x32xf32>
    %cst_40 = arith.constant dense<0.000000e+00> : vector<16x32xf32>
    %48 = tpu.matmul %43, %33, %cst_40 {dimension_numbers = #tpu.dot_dimension_numbers<[1], [0], [0], [1], [0, 0, 1, 1], [], []>} : vector<16x32xf32>, vector<32x32xf32>, vector<16x32xf32> -> vector<16x32xf32>
    %cst_41 = arith.constant 2.000000e-01 : f32
    %49 = vector.broadcast %cst_41 : f32 to vector<16x32xf32>
    %50 = arith.mulf %49, %5 : vector<16x32xf32>
    %cst_42 = arith.constant 8.000000e-01 : f32
    %51 = vector.broadcast %cst_42 : f32 to vector<16x32xf32>
    %52 = arith.mulf %51, %48 : vector<16x32xf32>
    %53 = arith.addf %50, %52 : vector<16x32xf32>
    %c2_43 = arith.constant 2 : index
    %c0_44 = arith.constant 0 : index
    %c0_45 = arith.constant 0 : index
    %54 = vector.load %arg7[%c2_43, %c0_44, %c0_45] : memref<3x32x32xf32, #tpu.memory_space<vmem>>, vector<1x32x32xf32>
    %55 = vector.shape_cast %54 : vector<1x32x32xf32> to vector<32x32xf32>
    %cst_46 = arith.constant dense<0.000000e+00> : vector<16x32xf32>
    %56 = tpu.matmul %53, %55, %cst_46 {dimension_numbers = #tpu.dot_dimension_numbers<[1], [0], [0], [1], [0, 0, 1, 1], [], []>} : vector<16x32xf32>, vector<32x32xf32>, vector<16x32xf32> -> vector<16x32xf32>
    %57 = arith.addf %47, %56 : vector<16x32xf32>
    %58 = vector.broadcast %34 : vector<1x32xf32> to vector<16x32xf32>
    %59 = arith.addf %57, %58 : vector<16x32xf32>
    %60 = arith.addf %32, %59 : vector<16x32xf32>
    %61 = arith.addf %60, %5 : vector<16x32xf32>
    %c0_47 = arith.constant 0 : index
    %c0_48 = arith.constant 0 : index
    %62 = vector.load %arg9[%c0_47, %c0_48] : memref<1x32xf32, #tpu.memory_space<vmem>>, vector<1x32xf32>
    %c0_49 = arith.constant 0 : index
    %c0_50 = arith.constant 0 : index
    %63 = vector.load %arg10[%c0_49, %c0_50] : memref<1x32xf32, #tpu.memory_space<vmem>>, vector<1x32xf32>
    %cst_51 = arith.constant dense<0.000000e+00> : vector<16xf32>
    %64 = vector.multi_reduction <add>, %61, %cst_51 [1] : vector<16x32xf32> to vector<16xf32>
    %65 = vector.shape_cast %64 : vector<16xf32> to vector<16x1xf32>
    %cst_52 = arith.constant 3.200000e+01 : f32
    %66 = vector.broadcast %cst_52 : f32 to vector<16x1xf32>
    %67 = arith.divf %65, %66 : vector<16x1xf32>
    %68 = vector.broadcast %67 : vector<16x1xf32> to vector<16x32xf32>
    %69 = arith.subf %61, %68 : vector<16x32xf32>
    %70 = arith.mulf %69, %69 : vector<16x32xf32>
    %cst_53 = arith.constant dense<0.000000e+00> : vector<16xf32>
    %71 = vector.multi_reduction <add>, %70, %cst_53 [1] : vector<16x32xf32> to vector<16xf32>
    %72 = vector.shape_cast %71 : vector<16xf32> to vector<16x1xf32>
    %cst_54 = arith.constant 3.200000e+01 : f32
    %73 = vector.broadcast %cst_54 : f32 to vector<16x1xf32>
    %74 = arith.divf %72, %73 : vector<16x1xf32>
    %cst_55 = arith.constant 9.99999997E-7 : f32
    %75 = vector.broadcast %cst_55 : f32 to vector<16x1xf32>
    %76 = arith.addf %74, %75 : vector<16x1xf32>
    %77 = math.rsqrt %76 : vector<16x1xf32>
    %78 = vector.broadcast %77 : vector<16x1xf32> to vector<16x32xf32>
    %79 = arith.mulf %69, %78 : vector<16x32xf32>
    %80 = vector.broadcast %62 : vector<1x32xf32> to vector<16x32xf32>
    %81 = arith.mulf %79, %80 : vector<16x32xf32>
    %82 = vector.broadcast %63 : vector<1x32xf32> to vector<16x32xf32>
    %83 = arith.addf %81, %82 : vector<16x32xf32>
    %c0_56 = arith.constant 0 : index
    %c0_57 = arith.constant 0 : index
    %84 = vector.load %arg11[%c0_56, %c0_57] : memref<8x32xf32, #tpu.memory_space<vmem>>, vector<8x32xf32>
    %85 = tpu.concatenate %84, %84 in 0 : vector<8x32xf32>, vector<8x32xf32> -> vector<16x32xf32>
    %86 = arith.addf %83, %85 : vector<16x32xf32>
    %c0_58 = arith.constant 0 : index
    %c0_59 = arith.constant 0 : index
    %87 = vector.load %arg12[%c0_58, %c0_59] : memref<2x8xf32, #tpu.memory_space<vmem>>, vector<2x8xf32>
    %c0_60 = arith.constant 0 : index
    %c0_61 = arith.constant 0 : index
    %c0_62 = arith.constant 0 : index
    %88 = vector.load %arg13[%c0_60, %c0_61, %c0_62] : memref<2x32x128xf32, #tpu.memory_space<vmem>>, vector<1x32x128xf32>
    %89 = vector.shape_cast %88 : vector<1x32x128xf32> to vector<32x128xf32>
    %cst_63 = arith.constant dense<0.000000e+00> : vector<16x128xf32>
    %90 = tpu.matmul %86, %89, %cst_63 {dimension_numbers = #tpu.dot_dimension_numbers<[1], [0], [0], [1], [0, 0, 1, 1], [], []>} : vector<16x32xf32>, vector<32x128xf32>, vector<16x128xf32> -> vector<16x128xf32>
    %91 = vector.extract_strided_slice %90 {offsets = [0, 0], sizes = [8, 128], strides = [1, 1]} : vector<16x128xf32> to vector<8x128xf32>
    %92 = vector.extract_strided_slice %87 {offsets = [0, 0], sizes = [1, 8], strides = [1, 1]} : vector<2x8xf32> to vector<1x8xf32>
    %cst_64 = arith.constant 0.000000e+00 : f32
    %93 = vector.broadcast %cst_64 : f32 to vector<8x32xf32>
    %94 = vector.extract_strided_slice %91 {offsets = [0, 0], sizes = [8, 16], strides = [1, 1]} : vector<8x128xf32> to vector<8x16xf32>
    %95 = vector.extract_strided_slice %91 {offsets = [0, 32], sizes = [8, 16], strides = [1, 1]} : vector<8x128xf32> to vector<8x16xf32>
    %96 = vector.extract_strided_slice %91 {offsets = [0, 64], sizes = [8, 32], strides = [1, 1]} : vector<8x128xf32> to vector<8x32xf32>
    %cst_65 = arith.constant dense<0.000000e+00> : vector<8x8xf32>
    %97 = tpu.matmul %94, %95, %cst_65 {dimension_numbers = #tpu.dot_dimension_numbers<[1], [1], [0], [0], [0, 0, 1, 0], [], []>} : vector<8x16xf32>, vector<8x16xf32>, vector<8x8xf32> -> vector<8x8xf32>
    %cst_66 = arith.constant 2.500000e-01 : f32
    %98 = vector.broadcast %cst_66 : f32 to vector<8x8xf32>
    %99 = arith.mulf %97, %98 : vector<8x8xf32>
    %cst_67 = arith.constant 0.000000e+00 : f32
    %100 = vector.broadcast %cst_67 : f32 to vector<1x8xf32>
    %101 = arith.cmpf ogt, %92, %100 : vector<1x8xf32>
    %cst_68 = arith.constant -1.000000e+09 : f32
    %102 = vector.shape_cast %101 : vector<1x8xi1> to vector<1x8xi1>
    %103 = vector.broadcast %102 : vector<1x8xi1> to vector<8x8xi1>
    %104 = vector.broadcast %cst_68 : f32 to vector<8x8xf32>
    %105 = arith.select %103, %99, %104 : vector<8x8xi1>, vector<8x8xf32>
    %cst_69 = arith.constant dense<0xFF800000> : vector<8xf32>
    %106 = vector.multi_reduction <maximumf>, %105, %cst_69 [1] : vector<8x8xf32> to vector<8xf32>
    %107 = vector.shape_cast %106 : vector<8xf32> to vector<8x1xf32>
    %108 = vector.broadcast %107 : vector<8x1xf32> to vector<8x8xf32>
    %109 = arith.subf %105, %108 : vector<8x8xf32>
    %110 = math.exp %109 : vector<8x8xf32>
    %cst_70 = arith.constant dense<0.000000e+00> : vector<8xf32>
    %111 = vector.multi_reduction <add>, %110, %cst_70 [1] : vector<8x8xf32> to vector<8xf32>
    %112 = vector.shape_cast %111 : vector<8xf32> to vector<8x1xf32>
    %113 = tpu.reciprocal %112 {approx = true} : vector<8x1xf32> -> vector<8x1xf32>
    %114 = vector.broadcast %113 : vector<8x1xf32> to vector<8x8xf32>
    %115 = arith.mulf %110, %114 : vector<8x8xf32>
    %cst_71 = arith.constant dense<0.000000e+00> : vector<8x32xf32>
    %116 = tpu.matmul %115, %96, %cst_71 {dimension_numbers = #tpu.dot_dimension_numbers<[1], [0], [0], [1], [0, 0, 1, 1], [], []>} : vector<8x8xf32>, vector<8x32xf32>, vector<8x32xf32> -> vector<8x32xf32>
    %117 = arith.addf %93, %116 : vector<8x32xf32>
    %118 = vector.extract_strided_slice %91 {offsets = [0, 16], sizes = [8, 16], strides = [1, 1]} : vector<8x128xf32> to vector<8x16xf32>
    %119 = vector.extract_strided_slice %91 {offsets = [0, 48], sizes = [8, 16], strides = [1, 1]} : vector<8x128xf32> to vector<8x16xf32>
    %120 = vector.extract_strided_slice %91 {offsets = [0, 96], sizes = [8, 32], strides = [1, 1]} : vector<8x128xf32> to vector<8x32xf32>
    %cst_72 = arith.constant dense<0.000000e+00> : vector<8x8xf32>
    %121 = tpu.matmul %118, %119, %cst_72 {dimension_numbers = #tpu.dot_dimension_numbers<[1], [1], [0], [0], [0, 0, 1, 0], [], []>} : vector<8x16xf32>, vector<8x16xf32>, vector<8x8xf32> -> vector<8x8xf32>
    %cst_73 = arith.constant 2.500000e-01 : f32
    %122 = vector.broadcast %cst_73 : f32 to vector<8x8xf32>
    %123 = arith.mulf %121, %122 : vector<8x8xf32>
    %cst_74 = arith.constant 0.000000e+00 : f32
    %124 = vector.broadcast %cst_74 : f32 to vector<1x8xf32>
    %125 = arith.cmpf ogt, %92, %124 : vector<1x8xf32>
    %cst_75 = arith.constant -1.000000e+09 : f32
    %126 = vector.shape_cast %125 : vector<1x8xi1> to vector<1x8xi1>
    %127 = vector.broadcast %126 : vector<1x8xi1> to vector<8x8xi1>
    %128 = vector.broadcast %cst_75 : f32 to vector<8x8xf32>
    %129 = arith.select %127, %123, %128 : vector<8x8xi1>, vector<8x8xf32>
    %cst_76 = arith.constant dense<0xFF800000> : vector<8xf32>
    %130 = vector.multi_reduction <maximumf>, %129, %cst_76 [1] : vector<8x8xf32> to vector<8xf32>
    %131 = vector.shape_cast %130 : vector<8xf32> to vector<8x1xf32>
    %132 = vector.broadcast %131 : vector<8x1xf32> to vector<8x8xf32>
    %133 = arith.subf %129, %132 : vector<8x8xf32>
    %134 = math.exp %133 : vector<8x8xf32>
    %cst_77 = arith.constant dense<0.000000e+00> : vector<8xf32>
    %135 = vector.multi_reduction <add>, %134, %cst_77 [1] : vector<8x8xf32> to vector<8xf32>
    %136 = vector.shape_cast %135 : vector<8xf32> to vector<8x1xf32>
    %137 = tpu.reciprocal %136 {approx = true} : vector<8x1xf32> -> vector<8x1xf32>
    %138 = vector.broadcast %137 : vector<8x1xf32> to vector<8x8xf32>
    %139 = arith.mulf %134, %138 : vector<8x8xf32>
    %cst_78 = arith.constant dense<0.000000e+00> : vector<8x32xf32>
    %140 = tpu.matmul %139, %120, %cst_78 {dimension_numbers = #tpu.dot_dimension_numbers<[1], [0], [0], [1], [0, 0, 1, 1], [], []>} : vector<8x8xf32>, vector<8x32xf32>, vector<8x32xf32> -> vector<8x32xf32>
    %141 = arith.addf %117, %140 : vector<8x32xf32>
    %142 = vector.extract_strided_slice %90 {offsets = [8, 0], sizes = [8, 128], strides = [1, 1]} : vector<16x128xf32> to vector<8x128xf32>
    %143 = vector.extract_strided_slice %87 {offsets = [1, 0], sizes = [1, 8], strides = [1, 1]} : vector<2x8xf32> to vector<1x8xf32>
    %cst_79 = arith.constant 0.000000e+00 : f32
    %144 = vector.broadcast %cst_79 : f32 to vector<8x32xf32>
    %145 = vector.extract_strided_slice %142 {offsets = [0, 0], sizes = [8, 16], strides = [1, 1]} : vector<8x128xf32> to vector<8x16xf32>
    %146 = vector.extract_strided_slice %142 {offsets = [0, 32], sizes = [8, 16], strides = [1, 1]} : vector<8x128xf32> to vector<8x16xf32>
    %147 = vector.extract_strided_slice %142 {offsets = [0, 64], sizes = [8, 32], strides = [1, 1]} : vector<8x128xf32> to vector<8x32xf32>
    %cst_80 = arith.constant dense<0.000000e+00> : vector<8x8xf32>
    %148 = tpu.matmul %145, %146, %cst_80 {dimension_numbers = #tpu.dot_dimension_numbers<[1], [1], [0], [0], [0, 0, 1, 0], [], []>} : vector<8x16xf32>, vector<8x16xf32>, vector<8x8xf32> -> vector<8x8xf32>
    %cst_81 = arith.constant 2.500000e-01 : f32
    %149 = vector.broadcast %cst_81 : f32 to vector<8x8xf32>
    %150 = arith.mulf %148, %149 : vector<8x8xf32>
    %cst_82 = arith.constant 0.000000e+00 : f32
    %151 = vector.broadcast %cst_82 : f32 to vector<1x8xf32>
    %152 = arith.cmpf ogt, %143, %151 : vector<1x8xf32>
    %cst_83 = arith.constant -1.000000e+09 : f32
    %153 = vector.shape_cast %152 : vector<1x8xi1> to vector<1x8xi1>
    %154 = vector.broadcast %153 : vector<1x8xi1> to vector<8x8xi1>
    %155 = vector.broadcast %cst_83 : f32 to vector<8x8xf32>
    %156 = arith.select %154, %150, %155 : vector<8x8xi1>, vector<8x8xf32>
    %cst_84 = arith.constant dense<0xFF800000> : vector<8xf32>
    %157 = vector.multi_reduction <maximumf>, %156, %cst_84 [1] : vector<8x8xf32> to vector<8xf32>
    %158 = vector.shape_cast %157 : vector<8xf32> to vector<8x1xf32>
    %159 = vector.broadcast %158 : vector<8x1xf32> to vector<8x8xf32>
    %160 = arith.subf %156, %159 : vector<8x8xf32>
    %161 = math.exp %160 : vector<8x8xf32>
    %cst_85 = arith.constant dense<0.000000e+00> : vector<8xf32>
    %162 = vector.multi_reduction <add>, %161, %cst_85 [1] : vector<8x8xf32> to vector<8xf32>
    %163 = vector.shape_cast %162 : vector<8xf32> to vector<8x1xf32>
    %164 = tpu.reciprocal %163 {approx = true} : vector<8x1xf32> -> vector<8x1xf32>
    %165 = vector.broadcast %164 : vector<8x1xf32> to vector<8x8xf32>
    %166 = arith.mulf %161, %165 : vector<8x8xf32>
    %cst_86 = arith.constant dense<0.000000e+00> : vector<8x32xf32>
    %167 = tpu.matmul %166, %147, %cst_86 {dimension_numbers = #tpu.dot_dimension_numbers<[1], [0], [0], [1], [0, 0, 1, 1], [], []>} : vector<8x8xf32>, vector<8x32xf32>, vector<8x32xf32> -> vector<8x32xf32>
    %168 = arith.addf %144, %167 : vector<8x32xf32>
    %169 = vector.extract_strided_slice %142 {offsets = [0, 16], sizes = [8, 16], strides = [1, 1]} : vector<8x128xf32> to vector<8x16xf32>
    %170 = vector.extract_strided_slice %142 {offsets = [0, 48], sizes = [8, 16], strides = [1, 1]} : vector<8x128xf32> to vector<8x16xf32>
    %171 = vector.extract_strided_slice %142 {offsets = [0, 96], sizes = [8, 32], strides = [1, 1]} : vector<8x128xf32> to vector<8x32xf32>
    %cst_87 = arith.constant dense<0.000000e+00> : vector<8x8xf32>
    %172 = tpu.matmul %169, %170, %cst_87 {dimension_numbers = #tpu.dot_dimension_numbers<[1], [1], [0], [0], [0, 0, 1, 0], [], []>} : vector<8x16xf32>, vector<8x16xf32>, vector<8x8xf32> -> vector<8x8xf32>
    %cst_88 = arith.constant 2.500000e-01 : f32
    %173 = vector.broadcast %cst_88 : f32 to vector<8x8xf32>
    %174 = arith.mulf %172, %173 : vector<8x8xf32>
    %cst_89 = arith.constant 0.000000e+00 : f32
    %175 = vector.broadcast %cst_89 : f32 to vector<1x8xf32>
    %176 = arith.cmpf ogt, %143, %175 : vector<1x8xf32>
    %cst_90 = arith.constant -1.000000e+09 : f32
    %177 = vector.shape_cast %176 : vector<1x8xi1> to vector<1x8xi1>
    %178 = vector.broadcast %177 : vector<1x8xi1> to vector<8x8xi1>
    %179 = vector.broadcast %cst_90 : f32 to vector<8x8xf32>
    %180 = arith.select %178, %174, %179 : vector<8x8xi1>, vector<8x8xf32>
    %cst_91 = arith.constant dense<0xFF800000> : vector<8xf32>
    %181 = vector.multi_reduction <maximumf>, %180, %cst_91 [1] : vector<8x8xf32> to vector<8xf32>
    %182 = vector.shape_cast %181 : vector<8xf32> to vector<8x1xf32>
    %183 = vector.broadcast %182 : vector<8x1xf32> to vector<8x8xf32>
    %184 = arith.subf %180, %183 : vector<8x8xf32>
    %185 = math.exp %184 : vector<8x8xf32>
    %cst_92 = arith.constant dense<0.000000e+00> : vector<8xf32>
    %186 = vector.multi_reduction <add>, %185, %cst_92 [1] : vector<8x8xf32> to vector<8xf32>
    %187 = vector.shape_cast %186 : vector<8xf32> to vector<8x1xf32>
    %188 = tpu.reciprocal %187 {approx = true} : vector<8x1xf32> -> vector<8x1xf32>
    %189 = vector.broadcast %188 : vector<8x1xf32> to vector<8x8xf32>
    %190 = arith.mulf %185, %189 : vector<8x8xf32>
    %cst_93 = arith.constant dense<0.000000e+00> : vector<8x32xf32>
    %191 = tpu.matmul %190, %171, %cst_93 {dimension_numbers = #tpu.dot_dimension_numbers<[1], [0], [0], [1], [0, 0, 1, 1], [], []>} : vector<8x8xf32>, vector<8x32xf32>, vector<8x32xf32> -> vector<8x32xf32>
    %192 = arith.addf %168, %191 : vector<8x32xf32>
    %193 = tpu.concatenate %141, %192 in 0 : vector<8x32xf32>, vector<8x32xf32> -> vector<16x32xf32>
    %194 = arith.addf %193, %86 : vector<16x32xf32>
    %c0_94 = arith.constant 0 : index
    %c0_95 = arith.constant 0 : index
    %c0_96 = arith.constant 0 : index
    %195 = vector.load %arg14[%c0_94, %c0_95, %c0_96] : memref<2x1x32xf32, #tpu.memory_space<vmem>>, vector<1x1x32xf32>
    %196 = vector.shape_cast %195 : vector<1x1x32xf32> to vector<1x32xf32>
    %c0_97 = arith.constant 0 : index
    %c0_98 = arith.constant 0 : index
    %c0_99 = arith.constant 0 : index
    %197 = vector.load %arg15[%c0_97, %c0_98, %c0_99] : memref<2x1x32xf32, #tpu.memory_space<vmem>>, vector<1x1x32xf32>
    %198 = vector.shape_cast %197 : vector<1x1x32xf32> to vector<1x32xf32>
    %cst_100 = arith.constant dense<0.000000e+00> : vector<16xf32>
    %199 = vector.multi_reduction <add>, %194, %cst_100 [1] : vector<16x32xf32> to vector<16xf32>
    %200 = vector.shape_cast %199 : vector<16xf32> to vector<16x1xf32>
    %cst_101 = arith.constant 3.200000e+01 : f32
    %201 = vector.broadcast %cst_101 : f32 to vector<16x1xf32>
    %202 = arith.divf %200, %201 : vector<16x1xf32>
    %203 = vector.broadcast %202 : vector<16x1xf32> to vector<16x32xf32>
    %204 = arith.subf %194, %203 : vector<16x32xf32>
    %205 = arith.mulf %204, %204 : vector<16x32xf32>
    %cst_102 = arith.constant dense<0.000000e+00> : vector<16xf32>
    %206 = vector.multi_reduction <add>, %205, %cst_102 [1] : vector<16x32xf32> to vector<16xf32>
    %207 = vector.shape_cast %206 : vector<16xf32> to vector<16x1xf32>
    %cst_103 = arith.constant 3.200000e+01 : f32
    %208 = vector.broadcast %cst_103 : f32 to vector<16x1xf32>
    %209 = arith.divf %207, %208 : vector<16x1xf32>
    %cst_104 = arith.constant 9.99999997E-7 : f32
    %210 = vector.broadcast %cst_104 : f32 to vector<16x1xf32>
    %211 = arith.addf %209, %210 : vector<16x1xf32>
    %212 = math.rsqrt %211 : vector<16x1xf32>
    %213 = vector.broadcast %212 : vector<16x1xf32> to vector<16x32xf32>
    %214 = arith.mulf %204, %213 : vector<16x32xf32>
    %215 = vector.broadcast %196 : vector<1x32xf32> to vector<16x32xf32>
    %216 = arith.mulf %214, %215 : vector<16x32xf32>
    %217 = vector.broadcast %198 : vector<1x32xf32> to vector<16x32xf32>
    %218 = arith.addf %216, %217 : vector<16x32xf32>
    %c0_105 = arith.constant 0 : index
    %c0_106 = arith.constant 0 : index
    %c0_107 = arith.constant 0 : index
    %219 = vector.load %arg16[%c0_105, %c0_106, %c0_107] : memref<2x32x64xf32, #tpu.memory_space<vmem>>, vector<1x32x64xf32>
    %220 = vector.shape_cast %219 : vector<1x32x64xf32> to vector<32x64xf32>
    %cst_108 = arith.constant dense<0.000000e+00> : vector<16x64xf32>
    %221 = tpu.matmul %218, %220, %cst_108 {dimension_numbers = #tpu.dot_dimension_numbers<[1], [0], [0], [1], [0, 0, 1, 1], [], []>} : vector<16x32xf32>, vector<32x64xf32>, vector<16x64xf32> -> vector<16x64xf32>
    %c0_109 = arith.constant 0 : index
    %c0_110 = arith.constant 0 : index
    %c0_111 = arith.constant 0 : index
    %222 = vector.load %arg17[%c0_109, %c0_110, %c0_111] : memref<2x1x64xf32, #tpu.memory_space<vmem>>, vector<1x1x64xf32>
    %223 = vector.shape_cast %222 : vector<1x1x64xf32> to vector<1x64xf32>
    %224 = vector.broadcast %223 : vector<1x64xf32> to vector<16x64xf32>
    %225 = arith.addf %221, %224 : vector<16x64xf32>
    %cst_112 = arith.constant 0.000000e+00 : f32
    %226 = vector.broadcast %cst_112 : f32 to vector<16x64xf32>
    %227 = arith.maximumf %225, %226 : vector<16x64xf32>
    %c0_113 = arith.constant 0 : index
    %c0_114 = arith.constant 0 : index
    %c0_115 = arith.constant 0 : index
    %228 = vector.load %arg18[%c0_113, %c0_114, %c0_115] : memref<2x64x32xf32, #tpu.memory_space<vmem>>, vector<1x64x32xf32>
    %229 = vector.shape_cast %228 : vector<1x64x32xf32> to vector<64x32xf32>
    %cst_116 = arith.constant dense<0.000000e+00> : vector<16x32xf32>
    %230 = tpu.matmul %227, %229, %cst_116 {dimension_numbers = #tpu.dot_dimension_numbers<[1], [0], [0], [1], [0, 0, 1, 1], [], []>} : vector<16x64xf32>, vector<64x32xf32>, vector<16x32xf32> -> vector<16x32xf32>
    %c0_117 = arith.constant 0 : index
    %c0_118 = arith.constant 0 : index
    %c0_119 = arith.constant 0 : index
    %231 = vector.load %arg19[%c0_117, %c0_118, %c0_119] : memref<2x1x32xf32, #tpu.memory_space<vmem>>, vector<1x1x32xf32>
    %232 = vector.shape_cast %231 : vector<1x1x32xf32> to vector<1x32xf32>
    %233 = vector.broadcast %232 : vector<1x32xf32> to vector<16x32xf32>
    %234 = arith.addf %230, %233 : vector<16x32xf32>
    %235 = arith.addf %234, %218 : vector<16x32xf32>
    %c0_120 = arith.constant 0 : index
    %c0_121 = arith.constant 0 : index
    %c0_122 = arith.constant 0 : index
    %236 = vector.load %arg20[%c0_120, %c0_121, %c0_122] : memref<2x1x32xf32, #tpu.memory_space<vmem>>, vector<1x1x32xf32>
    %237 = vector.shape_cast %236 : vector<1x1x32xf32> to vector<1x32xf32>
    %c0_123 = arith.constant 0 : index
    %c0_124 = arith.constant 0 : index
    %c0_125 = arith.constant 0 : index
    %238 = vector.load %arg21[%c0_123, %c0_124, %c0_125] : memref<2x1x32xf32, #tpu.memory_space<vmem>>, vector<1x1x32xf32>
    %239 = vector.shape_cast %238 : vector<1x1x32xf32> to vector<1x32xf32>
    %cst_126 = arith.constant dense<0.000000e+00> : vector<16xf32>
    %240 = vector.multi_reduction <add>, %235, %cst_126 [1] : vector<16x32xf32> to vector<16xf32>
    %241 = vector.shape_cast %240 : vector<16xf32> to vector<16x1xf32>
    %cst_127 = arith.constant 3.200000e+01 : f32
    %242 = vector.broadcast %cst_127 : f32 to vector<16x1xf32>
    %243 = arith.divf %241, %242 : vector<16x1xf32>
    %244 = vector.broadcast %243 : vector<16x1xf32> to vector<16x32xf32>
    %245 = arith.subf %235, %244 : vector<16x32xf32>
    %246 = arith.mulf %245, %245 : vector<16x32xf32>
    %cst_128 = arith.constant dense<0.000000e+00> : vector<16xf32>
    %247 = vector.multi_reduction <add>, %246, %cst_128 [1] : vector<16x32xf32> to vector<16xf32>
    %248 = vector.shape_cast %247 : vector<16xf32> to vector<16x1xf32>
    %cst_129 = arith.constant 3.200000e+01 : f32
    %249 = vector.broadcast %cst_129 : f32 to vector<16x1xf32>
    %250 = arith.divf %248, %249 : vector<16x1xf32>
    %cst_130 = arith.constant 9.99999997E-7 : f32
    %251 = vector.broadcast %cst_130 : f32 to vector<16x1xf32>
    %252 = arith.addf %250, %251 : vector<16x1xf32>
    %253 = math.rsqrt %252 : vector<16x1xf32>
    %254 = vector.broadcast %253 : vector<16x1xf32> to vector<16x32xf32>
    %255 = arith.mulf %245, %254 : vector<16x32xf32>
    %256 = vector.broadcast %237 : vector<1x32xf32> to vector<16x32xf32>
    %257 = arith.mulf %255, %256 : vector<16x32xf32>
    %258 = vector.broadcast %239 : vector<1x32xf32> to vector<16x32xf32>
    %259 = arith.addf %257, %258 : vector<16x32xf32>
    %c1_131 = arith.constant 1 : index
    %c0_132 = arith.constant 0 : index
    %c0_133 = arith.constant 0 : index
    %260 = vector.load %arg13[%c1_131, %c0_132, %c0_133] : memref<2x32x128xf32, #tpu.memory_space<vmem>>, vector<1x32x128xf32>
    %261 = vector.shape_cast %260 : vector<1x32x128xf32> to vector<32x128xf32>
    %cst_134 = arith.constant dense<0.000000e+00> : vector<16x128xf32>
    %262 = tpu.matmul %259, %261, %cst_134 {dimension_numbers = #tpu.dot_dimension_numbers<[1], [0], [0], [1], [0, 0, 1, 1], [], []>} : vector<16x32xf32>, vector<32x128xf32>, vector<16x128xf32> -> vector<16x128xf32>
    %263 = vector.extract_strided_slice %262 {offsets = [0, 0], sizes = [8, 128], strides = [1, 1]} : vector<16x128xf32> to vector<8x128xf32>
    %264 = vector.extract_strided_slice %87 {offsets = [0, 0], sizes = [1, 8], strides = [1, 1]} : vector<2x8xf32> to vector<1x8xf32>
    %cst_135 = arith.constant 0.000000e+00 : f32
    %265 = vector.broadcast %cst_135 : f32 to vector<8x32xf32>
    %266 = vector.extract_strided_slice %263 {offsets = [0, 0], sizes = [8, 16], strides = [1, 1]} : vector<8x128xf32> to vector<8x16xf32>
    %267 = vector.extract_strided_slice %263 {offsets = [0, 32], sizes = [8, 16], strides = [1, 1]} : vector<8x128xf32> to vector<8x16xf32>
    %268 = vector.extract_strided_slice %263 {offsets = [0, 64], sizes = [8, 32], strides = [1, 1]} : vector<8x128xf32> to vector<8x32xf32>
    %cst_136 = arith.constant dense<0.000000e+00> : vector<8x8xf32>
    %269 = tpu.matmul %266, %267, %cst_136 {dimension_numbers = #tpu.dot_dimension_numbers<[1], [1], [0], [0], [0, 0, 1, 0], [], []>} : vector<8x16xf32>, vector<8x16xf32>, vector<8x8xf32> -> vector<8x8xf32>
    %cst_137 = arith.constant 2.500000e-01 : f32
    %270 = vector.broadcast %cst_137 : f32 to vector<8x8xf32>
    %271 = arith.mulf %269, %270 : vector<8x8xf32>
    %cst_138 = arith.constant 0.000000e+00 : f32
    %272 = vector.broadcast %cst_138 : f32 to vector<1x8xf32>
    %273 = arith.cmpf ogt, %264, %272 : vector<1x8xf32>
    %cst_139 = arith.constant -1.000000e+09 : f32
    %274 = vector.shape_cast %273 : vector<1x8xi1> to vector<1x8xi1>
    %275 = vector.broadcast %274 : vector<1x8xi1> to vector<8x8xi1>
    %276 = vector.broadcast %cst_139 : f32 to vector<8x8xf32>
    %277 = arith.select %275, %271, %276 : vector<8x8xi1>, vector<8x8xf32>
    %cst_140 = arith.constant dense<0xFF800000> : vector<8xf32>
    %278 = vector.multi_reduction <maximumf>, %277, %cst_140 [1] : vector<8x8xf32> to vector<8xf32>
    %279 = vector.shape_cast %278 : vector<8xf32> to vector<8x1xf32>
    %280 = vector.broadcast %279 : vector<8x1xf32> to vector<8x8xf32>
    %281 = arith.subf %277, %280 : vector<8x8xf32>
    %282 = math.exp %281 : vector<8x8xf32>
    %cst_141 = arith.constant dense<0.000000e+00> : vector<8xf32>
    %283 = vector.multi_reduction <add>, %282, %cst_141 [1] : vector<8x8xf32> to vector<8xf32>
    %284 = vector.shape_cast %283 : vector<8xf32> to vector<8x1xf32>
    %285 = tpu.reciprocal %284 {approx = true} : vector<8x1xf32> -> vector<8x1xf32>
    %286 = vector.broadcast %285 : vector<8x1xf32> to vector<8x8xf32>
    %287 = arith.mulf %282, %286 : vector<8x8xf32>
    %cst_142 = arith.constant dense<0.000000e+00> : vector<8x32xf32>
    %288 = tpu.matmul %287, %268, %cst_142 {dimension_numbers = #tpu.dot_dimension_numbers<[1], [0], [0], [1], [0, 0, 1, 1], [], []>} : vector<8x8xf32>, vector<8x32xf32>, vector<8x32xf32> -> vector<8x32xf32>
    %289 = arith.addf %265, %288 : vector<8x32xf32>
    %290 = vector.extract_strided_slice %263 {offsets = [0, 16], sizes = [8, 16], strides = [1, 1]} : vector<8x128xf32> to vector<8x16xf32>
    %291 = vector.extract_strided_slice %263 {offsets = [0, 48], sizes = [8, 16], strides = [1, 1]} : vector<8x128xf32> to vector<8x16xf32>
    %292 = vector.extract_strided_slice %263 {offsets = [0, 96], sizes = [8, 32], strides = [1, 1]} : vector<8x128xf32> to vector<8x32xf32>
    %cst_143 = arith.constant dense<0.000000e+00> : vector<8x8xf32>
    %293 = tpu.matmul %290, %291, %cst_143 {dimension_numbers = #tpu.dot_dimension_numbers<[1], [1], [0], [0], [0, 0, 1, 0], [], []>} : vector<8x16xf32>, vector<8x16xf32>, vector<8x8xf32> -> vector<8x8xf32>
    %cst_144 = arith.constant 2.500000e-01 : f32
    %294 = vector.broadcast %cst_144 : f32 to vector<8x8xf32>
    %295 = arith.mulf %293, %294 : vector<8x8xf32>
    %cst_145 = arith.constant 0.000000e+00 : f32
    %296 = vector.broadcast %cst_145 : f32 to vector<1x8xf32>
    %297 = arith.cmpf ogt, %264, %296 : vector<1x8xf32>
    %cst_146 = arith.constant -1.000000e+09 : f32
    %298 = vector.shape_cast %297 : vector<1x8xi1> to vector<1x8xi1>
    %299 = vector.broadcast %298 : vector<1x8xi1> to vector<8x8xi1>
    %300 = vector.broadcast %cst_146 : f32 to vector<8x8xf32>
    %301 = arith.select %299, %295, %300 : vector<8x8xi1>, vector<8x8xf32>
    %cst_147 = arith.constant dense<0xFF800000> : vector<8xf32>
    %302 = vector.multi_reduction <maximumf>, %301, %cst_147 [1] : vector<8x8xf32> to vector<8xf32>
    %303 = vector.shape_cast %302 : vector<8xf32> to vector<8x1xf32>
    %304 = vector.broadcast %303 : vector<8x1xf32> to vector<8x8xf32>
    %305 = arith.subf %301, %304 : vector<8x8xf32>
    %306 = math.exp %305 : vector<8x8xf32>
    %cst_148 = arith.constant dense<0.000000e+00> : vector<8xf32>
    %307 = vector.multi_reduction <add>, %306, %cst_148 [1] : vector<8x8xf32> to vector<8xf32>
    %308 = vector.shape_cast %307 : vector<8xf32> to vector<8x1xf32>
    %309 = tpu.reciprocal %308 {approx = true} : vector<8x1xf32> -> vector<8x1xf32>
    %310 = vector.broadcast %309 : vector<8x1xf32> to vector<8x8xf32>
    %311 = arith.mulf %306, %310 : vector<8x8xf32>
    %cst_149 = arith.constant dense<0.000000e+00> : vector<8x32xf32>
    %312 = tpu.matmul %311, %292, %cst_149 {dimension_numbers = #tpu.dot_dimension_numbers<[1], [0], [0], [1], [0, 0, 1, 1], [], []>} : vector<8x8xf32>, vector<8x32xf32>, vector<8x32xf32> -> vector<8x32xf32>
    %313 = arith.addf %289, %312 : vector<8x32xf32>
    %314 = vector.extract_strided_slice %262 {offsets = [8, 0], sizes = [8, 128], strides = [1, 1]} : vector<16x128xf32> to vector<8x128xf32>
    %315 = vector.extract_strided_slice %87 {offsets = [1, 0], sizes = [1, 8], strides = [1, 1]} : vector<2x8xf32> to vector<1x8xf32>
    %cst_150 = arith.constant 0.000000e+00 : f32
    %316 = vector.broadcast %cst_150 : f32 to vector<8x32xf32>
    %317 = vector.extract_strided_slice %314 {offsets = [0, 0], sizes = [8, 16], strides = [1, 1]} : vector<8x128xf32> to vector<8x16xf32>
    %318 = vector.extract_strided_slice %314 {offsets = [0, 32], sizes = [8, 16], strides = [1, 1]} : vector<8x128xf32> to vector<8x16xf32>
    %319 = vector.extract_strided_slice %314 {offsets = [0, 64], sizes = [8, 32], strides = [1, 1]} : vector<8x128xf32> to vector<8x32xf32>
    %cst_151 = arith.constant dense<0.000000e+00> : vector<8x8xf32>
    %320 = tpu.matmul %317, %318, %cst_151 {dimension_numbers = #tpu.dot_dimension_numbers<[1], [1], [0], [0], [0, 0, 1, 0], [], []>} : vector<8x16xf32>, vector<8x16xf32>, vector<8x8xf32> -> vector<8x8xf32>
    %cst_152 = arith.constant 2.500000e-01 : f32
    %321 = vector.broadcast %cst_152 : f32 to vector<8x8xf32>
    %322 = arith.mulf %320, %321 : vector<8x8xf32>
    %cst_153 = arith.constant 0.000000e+00 : f32
    %323 = vector.broadcast %cst_153 : f32 to vector<1x8xf32>
    %324 = arith.cmpf ogt, %315, %323 : vector<1x8xf32>
    %cst_154 = arith.constant -1.000000e+09 : f32
    %325 = vector.shape_cast %324 : vector<1x8xi1> to vector<1x8xi1>
    %326 = vector.broadcast %325 : vector<1x8xi1> to vector<8x8xi1>
    %327 = vector.broadcast %cst_154 : f32 to vector<8x8xf32>
    %328 = arith.select %326, %322, %327 : vector<8x8xi1>, vector<8x8xf32>
    %cst_155 = arith.constant dense<0xFF800000> : vector<8xf32>
    %329 = vector.multi_reduction <maximumf>, %328, %cst_155 [1] : vector<8x8xf32> to vector<8xf32>
    %330 = vector.shape_cast %329 : vector<8xf32> to vector<8x1xf32>
    %331 = vector.broadcast %330 : vector<8x1xf32> to vector<8x8xf32>
    %332 = arith.subf %328, %331 : vector<8x8xf32>
    %333 = math.exp %332 : vector<8x8xf32>
    %cst_156 = arith.constant dense<0.000000e+00> : vector<8xf32>
    %334 = vector.multi_reduction <add>, %333, %cst_156 [1] : vector<8x8xf32> to vector<8xf32>
    %335 = vector.shape_cast %334 : vector<8xf32> to vector<8x1xf32>
    %336 = tpu.reciprocal %335 {approx = true} : vector<8x1xf32> -> vector<8x1xf32>
    %337 = vector.broadcast %336 : vector<8x1xf32> to vector<8x8xf32>
    %338 = arith.mulf %333, %337 : vector<8x8xf32>
    %cst_157 = arith.constant dense<0.000000e+00> : vector<8x32xf32>
    %339 = tpu.matmul %338, %319, %cst_157 {dimension_numbers = #tpu.dot_dimension_numbers<[1], [0], [0], [1], [0, 0, 1, 1], [], []>} : vector<8x8xf32>, vector<8x32xf32>, vector<8x32xf32> -> vector<8x32xf32>
    %340 = arith.addf %316, %339 : vector<8x32xf32>
    %341 = vector.extract_strided_slice %314 {offsets = [0, 16], sizes = [8, 16], strides = [1, 1]} : vector<8x128xf32> to vector<8x16xf32>
    %342 = vector.extract_strided_slice %314 {offsets = [0, 48], sizes = [8, 16], strides = [1, 1]} : vector<8x128xf32> to vector<8x16xf32>
    %343 = vector.extract_strided_slice %314 {offsets = [0, 96], sizes = [8, 32], strides = [1, 1]} : vector<8x128xf32> to vector<8x32xf32>
    %cst_158 = arith.constant dense<0.000000e+00> : vector<8x8xf32>
    %344 = tpu.matmul %341, %342, %cst_158 {dimension_numbers = #tpu.dot_dimension_numbers<[1], [1], [0], [0], [0, 0, 1, 0], [], []>} : vector<8x16xf32>, vector<8x16xf32>, vector<8x8xf32> -> vector<8x8xf32>
    %cst_159 = arith.constant 2.500000e-01 : f32
    %345 = vector.broadcast %cst_159 : f32 to vector<8x8xf32>
    %346 = arith.mulf %344, %345 : vector<8x8xf32>
    %cst_160 = arith.constant 0.000000e+00 : f32
    %347 = vector.broadcast %cst_160 : f32 to vector<1x8xf32>
    %348 = arith.cmpf ogt, %315, %347 : vector<1x8xf32>
    %cst_161 = arith.constant -1.000000e+09 : f32
    %349 = vector.shape_cast %348 : vector<1x8xi1> to vector<1x8xi1>
    %350 = vector.broadcast %349 : vector<1x8xi1> to vector<8x8xi1>
    %351 = vector.broadcast %cst_161 : f32 to vector<8x8xf32>
    %352 = arith.select %350, %346, %351 : vector<8x8xi1>, vector<8x8xf32>
    %cst_162 = arith.constant dense<0xFF800000> : vector<8xf32>
    %353 = vector.multi_reduction <maximumf>, %352, %cst_162 [1] : vector<8x8xf32> to vector<8xf32>
    %354 = vector.shape_cast %353 : vector<8xf32> to vector<8x1xf32>
    %355 = vector.broadcast %354 : vector<8x1xf32> to vector<8x8xf32>
    %356 = arith.subf %352, %355 : vector<8x8xf32>
    %357 = math.exp %356 : vector<8x8xf32>
    %cst_163 = arith.constant dense<0.000000e+00> : vector<8xf32>
    %358 = vector.multi_reduction <add>, %357, %cst_163 [1] : vector<8x8xf32> to vector<8xf32>
    %359 = vector.shape_cast %358 : vector<8xf32> to vector<8x1xf32>
    %360 = tpu.reciprocal %359 {approx = true} : vector<8x1xf32> -> vector<8x1xf32>
    %361 = vector.broadcast %360 : vector<8x1xf32> to vector<8x8xf32>
    %362 = arith.mulf %357, %361 : vector<8x8xf32>
    %cst_164 = arith.constant dense<0.000000e+00> : vector<8x32xf32>
    %363 = tpu.matmul %362, %343, %cst_164 {dimension_numbers = #tpu.dot_dimension_numbers<[1], [0], [0], [1], [0, 0, 1, 1], [], []>} : vector<8x8xf32>, vector<8x32xf32>, vector<8x32xf32> -> vector<8x32xf32>
    %364 = arith.addf %340, %363 : vector<8x32xf32>
    %365 = tpu.concatenate %313, %364 in 0 : vector<8x32xf32>, vector<8x32xf32> -> vector<16x32xf32>
    %366 = arith.addf %365, %259 : vector<16x32xf32>
    %c1_165 = arith.constant 1 : index
    %c0_166 = arith.constant 0 : index
    %c0_167 = arith.constant 0 : index
    %367 = vector.load %arg14[%c1_165, %c0_166, %c0_167] : memref<2x1x32xf32, #tpu.memory_space<vmem>>, vector<1x1x32xf32>
    %368 = vector.shape_cast %367 : vector<1x1x32xf32> to vector<1x32xf32>
    %c1_168 = arith.constant 1 : index
    %c0_169 = arith.constant 0 : index
    %c0_170 = arith.constant 0 : index
    %369 = vector.load %arg15[%c1_168, %c0_169, %c0_170] : memref<2x1x32xf32, #tpu.memory_space<vmem>>, vector<1x1x32xf32>
    %370 = vector.shape_cast %369 : vector<1x1x32xf32> to vector<1x32xf32>
    %cst_171 = arith.constant dense<0.000000e+00> : vector<16xf32>
    %371 = vector.multi_reduction <add>, %366, %cst_171 [1] : vector<16x32xf32> to vector<16xf32>
    %372 = vector.shape_cast %371 : vector<16xf32> to vector<16x1xf32>
    %cst_172 = arith.constant 3.200000e+01 : f32
    %373 = vector.broadcast %cst_172 : f32 to vector<16x1xf32>
    %374 = arith.divf %372, %373 : vector<16x1xf32>
    %375 = vector.broadcast %374 : vector<16x1xf32> to vector<16x32xf32>
    %376 = arith.subf %366, %375 : vector<16x32xf32>
    %377 = arith.mulf %376, %376 : vector<16x32xf32>
    %cst_173 = arith.constant dense<0.000000e+00> : vector<16xf32>
    %378 = vector.multi_reduction <add>, %377, %cst_173 [1] : vector<16x32xf32> to vector<16xf32>
    %379 = vector.shape_cast %378 : vector<16xf32> to vector<16x1xf32>
    %cst_174 = arith.constant 3.200000e+01 : f32
    %380 = vector.broadcast %cst_174 : f32 to vector<16x1xf32>
    %381 = arith.divf %379, %380 : vector<16x1xf32>
    %cst_175 = arith.constant 9.99999997E-7 : f32
    %382 = vector.broadcast %cst_175 : f32 to vector<16x1xf32>
    %383 = arith.addf %381, %382 : vector<16x1xf32>
    %384 = math.rsqrt %383 : vector<16x1xf32>
    %385 = vector.broadcast %384 : vector<16x1xf32> to vector<16x32xf32>
    %386 = arith.mulf %376, %385 : vector<16x32xf32>
    %387 = vector.broadcast %368 : vector<1x32xf32> to vector<16x32xf32>
    %388 = arith.mulf %386, %387 : vector<16x32xf32>
    %389 = vector.broadcast %370 : vector<1x32xf32> to vector<16x32xf32>
    %390 = arith.addf %388, %389 : vector<16x32xf32>
    %c1_176 = arith.constant 1 : index
    %c0_177 = arith.constant 0 : index
    %c0_178 = arith.constant 0 : index
    %391 = vector.load %arg16[%c1_176, %c0_177, %c0_178] : memref<2x32x64xf32, #tpu.memory_space<vmem>>, vector<1x32x64xf32>
    %392 = vector.shape_cast %391 : vector<1x32x64xf32> to vector<32x64xf32>
    %cst_179 = arith.constant dense<0.000000e+00> : vector<16x64xf32>
    %393 = tpu.matmul %390, %392, %cst_179 {dimension_numbers = #tpu.dot_dimension_numbers<[1], [0], [0], [1], [0, 0, 1, 1], [], []>} : vector<16x32xf32>, vector<32x64xf32>, vector<16x64xf32> -> vector<16x64xf32>
    %c1_180 = arith.constant 1 : index
    %c0_181 = arith.constant 0 : index
    %c0_182 = arith.constant 0 : index
    %394 = vector.load %arg17[%c1_180, %c0_181, %c0_182] : memref<2x1x64xf32, #tpu.memory_space<vmem>>, vector<1x1x64xf32>
    %395 = vector.shape_cast %394 : vector<1x1x64xf32> to vector<1x64xf32>
    %396 = vector.broadcast %395 : vector<1x64xf32> to vector<16x64xf32>
    %397 = arith.addf %393, %396 : vector<16x64xf32>
    %cst_183 = arith.constant 0.000000e+00 : f32
    %398 = vector.broadcast %cst_183 : f32 to vector<16x64xf32>
    %399 = arith.maximumf %397, %398 : vector<16x64xf32>
    %c1_184 = arith.constant 1 : index
    %c0_185 = arith.constant 0 : index
    %c0_186 = arith.constant 0 : index
    %400 = vector.load %arg18[%c1_184, %c0_185, %c0_186] : memref<2x64x32xf32, #tpu.memory_space<vmem>>, vector<1x64x32xf32>
    %401 = vector.shape_cast %400 : vector<1x64x32xf32> to vector<64x32xf32>
    %cst_187 = arith.constant dense<0.000000e+00> : vector<16x32xf32>
    %402 = tpu.matmul %399, %401, %cst_187 {dimension_numbers = #tpu.dot_dimension_numbers<[1], [0], [0], [1], [0, 0, 1, 1], [], []>} : vector<16x64xf32>, vector<64x32xf32>, vector<16x32xf32> -> vector<16x32xf32>
    %c1_188 = arith.constant 1 : index
    %c0_189 = arith.constant 0 : index
    %c0_190 = arith.constant 0 : index
    %403 = vector.load %arg19[%c1_188, %c0_189, %c0_190] : memref<2x1x32xf32, #tpu.memory_space<vmem>>, vector<1x1x32xf32>
    %404 = vector.shape_cast %403 : vector<1x1x32xf32> to vector<1x32xf32>
    %405 = vector.broadcast %404 : vector<1x32xf32> to vector<16x32xf32>
    %406 = arith.addf %402, %405 : vector<16x32xf32>
    %407 = arith.addf %406, %390 : vector<16x32xf32>
    %c1_191 = arith.constant 1 : index
    %c0_192 = arith.constant 0 : index
    %c0_193 = arith.constant 0 : index
    %408 = vector.load %arg20[%c1_191, %c0_192, %c0_193] : memref<2x1x32xf32, #tpu.memory_space<vmem>>, vector<1x1x32xf32>
    %409 = vector.shape_cast %408 : vector<1x1x32xf32> to vector<1x32xf32>
    %c1_194 = arith.constant 1 : index
    %c0_195 = arith.constant 0 : index
    %c0_196 = arith.constant 0 : index
    %410 = vector.load %arg21[%c1_194, %c0_195, %c0_196] : memref<2x1x32xf32, #tpu.memory_space<vmem>>, vector<1x1x32xf32>
    %411 = vector.shape_cast %410 : vector<1x1x32xf32> to vector<1x32xf32>
    %cst_197 = arith.constant dense<0.000000e+00> : vector<16xf32>
    %412 = vector.multi_reduction <add>, %407, %cst_197 [1] : vector<16x32xf32> to vector<16xf32>
    %413 = vector.shape_cast %412 : vector<16xf32> to vector<16x1xf32>
    %cst_198 = arith.constant 3.200000e+01 : f32
    %414 = vector.broadcast %cst_198 : f32 to vector<16x1xf32>
    %415 = arith.divf %413, %414 : vector<16x1xf32>
    %416 = vector.broadcast %415 : vector<16x1xf32> to vector<16x32xf32>
    %417 = arith.subf %407, %416 : vector<16x32xf32>
    %418 = arith.mulf %417, %417 : vector<16x32xf32>
    %cst_199 = arith.constant dense<0.000000e+00> : vector<16xf32>
    %419 = vector.multi_reduction <add>, %418, %cst_199 [1] : vector<16x32xf32> to vector<16xf32>
    %420 = vector.shape_cast %419 : vector<16xf32> to vector<16x1xf32>
    %cst_200 = arith.constant 3.200000e+01 : f32
    %421 = vector.broadcast %cst_200 : f32 to vector<16x1xf32>
    %422 = arith.divf %420, %421 : vector<16x1xf32>
    %cst_201 = arith.constant 9.99999997E-7 : f32
    %423 = vector.broadcast %cst_201 : f32 to vector<16x1xf32>
    %424 = arith.addf %422, %423 : vector<16x1xf32>
    %425 = math.rsqrt %424 : vector<16x1xf32>
    %426 = vector.broadcast %425 : vector<16x1xf32> to vector<16x32xf32>
    %427 = arith.mulf %417, %426 : vector<16x32xf32>
    %428 = vector.broadcast %409 : vector<1x32xf32> to vector<16x32xf32>
    %429 = arith.mulf %427, %428 : vector<16x32xf32>
    %430 = vector.broadcast %411 : vector<1x32xf32> to vector<16x32xf32>
    %431 = arith.addf %429, %430 : vector<16x32xf32>
    %c0_202 = arith.constant 0 : index
    %c0_203 = arith.constant 0 : index
    %432 = vector.load %arg22[%c0_202, %c0_203] : memref<1x32xf32, #tpu.memory_space<vmem>>, vector<1x32xf32>
    %c0_204 = arith.constant 0 : index
    %c0_205 = arith.constant 0 : index
    %433 = vector.load %arg23[%c0_204, %c0_205] : memref<1x32xf32, #tpu.memory_space<vmem>>, vector<1x32xf32>
    %cst_206 = arith.constant dense<0.000000e+00> : vector<16xf32>
    %434 = vector.multi_reduction <add>, %431, %cst_206 [1] : vector<16x32xf32> to vector<16xf32>
    %435 = vector.shape_cast %434 : vector<16xf32> to vector<16x1xf32>
    %cst_207 = arith.constant 3.200000e+01 : f32
    %436 = vector.broadcast %cst_207 : f32 to vector<16x1xf32>
    %437 = arith.divf %435, %436 : vector<16x1xf32>
    %438 = vector.broadcast %437 : vector<16x1xf32> to vector<16x32xf32>
    %439 = arith.subf %431, %438 : vector<16x32xf32>
    %440 = arith.mulf %439, %439 : vector<16x32xf32>
    %cst_208 = arith.constant dense<0.000000e+00> : vector<16xf32>
    %441 = vector.multi_reduction <add>, %440, %cst_208 [1] : vector<16x32xf32> to vector<16xf32>
    %442 = vector.shape_cast %441 : vector<16xf32> to vector<16x1xf32>
    %cst_209 = arith.constant 3.200000e+01 : f32
    %443 = vector.broadcast %cst_209 : f32 to vector<16x1xf32>
    %444 = arith.divf %442, %443 : vector<16x1xf32>
    %cst_210 = arith.constant 9.99999997E-7 : f32
    %445 = vector.broadcast %cst_210 : f32 to vector<16x1xf32>
    %446 = arith.addf %444, %445 : vector<16x1xf32>
    %447 = math.rsqrt %446 : vector<16x1xf32>
    %448 = vector.broadcast %447 : vector<16x1xf32> to vector<16x32xf32>
    %449 = arith.mulf %439, %448 : vector<16x32xf32>
    %450 = vector.broadcast %432 : vector<1x32xf32> to vector<16x32xf32>
    %451 = arith.mulf %449, %450 : vector<16x32xf32>
    %452 = vector.broadcast %433 : vector<1x32xf32> to vector<16x32xf32>
    %453 = arith.addf %451, %452 : vector<16x32xf32>
    %c0_211 = arith.constant 0 : index
    %c0_212 = arith.constant 0 : index
    %454 = vector.load %arg24[%c0_211, %c0_212] : memref<32x64xf32, #tpu.memory_space<vmem>>, vector<32x64xf32>
    %cst_213 = arith.constant dense<0.000000e+00> : vector<16x64xf32>
    %455 = tpu.matmul %453, %454, %cst_213 {dimension_numbers = #tpu.dot_dimension_numbers<[1], [0], [0], [1], [0, 0, 1, 1], [], []>} : vector<16x32xf32>, vector<32x64xf32>, vector<16x64xf32> -> vector<16x64xf32>
    %c0_214 = arith.constant 0 : index
    %c0_215 = arith.constant 0 : index
    %456 = vector.load %arg25[%c0_214, %c0_215] : memref<1x64xf32, #tpu.memory_space<vmem>>, vector<1x64xf32>
    %457 = vector.broadcast %456 : vector<1x64xf32> to vector<16x64xf32>
    %458 = arith.addf %455, %457 : vector<16x64xf32>
    %c0_216 = arith.constant 0 : index
    %c0_217 = arith.constant 0 : index
    %459 = vector.load %arg26[%c0_216, %c0_217] : memref<8x64xf32, #tpu.memory_space<vmem>>, vector<8x64xf32>
    %460 = tpu.concatenate %459, %459 in 0 : vector<8x64xf32>, vector<8x64xf32> -> vector<16x64xf32>
    %c0_218 = arith.constant 0 : index
    %c0_219 = arith.constant 0 : index
    %461 = vector.load %arg27[%c0_218, %c0_219] : memref<8x64xf32, #tpu.memory_space<vmem>>, vector<8x64xf32>
    %462 = tpu.concatenate %461, %461 in 0 : vector<8x64xf32>, vector<8x64xf32> -> vector<16x64xf32>
    %463 = arith.mulf %458, %460 : vector<16x64xf32>
    %464 = arith.addf %463, %462 : vector<16x64xf32>
    %c0_220 = arith.constant 0 : index
    %c0_221 = arith.constant 0 : index
    %465 = vector.load %arg28[%c0_220, %c0_221] : memref<16x64xf32, #tpu.memory_space<vmem>>, vector<16x64xf32>
    tpu.vector_store %arg28[%c0_220, %c0_221], %464 {strides = array<i32>} : memref<16x64xf32, #tpu.memory_space<vmem>>, vector<16x64xf32>,
    return
  }
}

</mosaic_0001>

<llo_original>
// kernel: _lambda_.2
$region0: #{_lambda_.2}
  #allocation0 [shape = 'u32[]', space=smem, size = 0x4, offset = 0x4, fixed_abs, tag = 'smem constant byte address 0x4 - core index']
  #allocation1 [shape = 'u32[144,128]{1,0:T(1,128)}', space=vmem, size = 0x12000, scoped, tag = 'internal scratch']
  %s0 = inlined_call_operand.vmem [shape: f32[32,16], index: 0, kind: input, shape index: {}]
  %s1 = inlined_call_operand.vmem [shape: f32[32,16], index: 1, kind: input, shape index: {}]
  %s2 = inlined_call_operand.vmem [shape: f32[16,16], index: 2, kind: input, shape index: {}]
  %s3 = inlined_call_operand.vmem [shape: f32[1,16], index: 3, kind: input, shape index: {}]
  %s4 = inlined_call_operand.vmem [shape: f32[16,16], index: 4, kind: input, shape index: {}]
  %s5 = inlined_call_operand.vmem [shape: f32[1,16], index: 5, kind: input, shape index: {}]
  %s6 = inlined_call_operand.vmem [shape: f32[32,32], index: 6, kind: output, shape index: {}]
  %s7 = sld [smem:[#allocation0]]
  $region34: #{_lambda_.2} parent=0
    _
  %s9 = ssub.s32 1, %s7
  %s10 = scalar_select 0, %s9, %s7
  // Predicated region
  $region2: #{_lambda_.2} parent=0 // pred_check
    _
  $region3: #{_lambda_.2} parent=0 // pred_check_branch
    %12 = sbr.rel (0) target = $region5
  $region4: #{_lambda_.2} parent=0 // pred_region
    _
  $region5: #{_lambda_.2} parent=0 // pred_fallthru
    _
  // Predicated region
  $region6: #{_lambda_.2} parent=0 // pred_check
    _
  $region7: #{_lambda_.2} parent=0 // pred_check_branch
    %14 = sbr.rel (0) target = $region9
  $region8: #{_lambda_.2} parent=0 // pred_region
    _
  $region9: #{_lambda_.2} parent=0 // pred_fallthru
    _
  // Predicated region
  $region10: #{_lambda_.2} parent=0 // pred_check
    _
  $region11: #{_lambda_.2} parent=0 // pred_check_branch
    %16 = sbr.rel (0) target = $region13
  $region12: #{_lambda_.2} parent=0 // pred_region
    _
  $region13: #{_lambda_.2} parent=0 // pred_fallthru
    _
  // Predicated region
  $region14: #{_lambda_.2} parent=0 // pred_check
    _
  $region15: #{_lambda_.2} parent=0 // pred_check_branch
    %18 = sbr.rel (0) target = $region17
  $region16: #{_lambda_.2} parent=0 // pred_region
    _
  $region17: #{_lambda_.2} parent=0 // pred_fallthru
    _
  // Predicated region
  $region18: #{_lambda_.2} parent=0 // pred_check
    _
  $region19: #{_lambda_.2} parent=0 // pred_check_branch
    %20 = sbr.rel (0) target = $region21
  $region20: #{_lambda_.2} parent=0 // pred_region
    _
  $region21: #{_lambda_.2} parent=0 // pred_fallthru
    _
  // Predicated region
  $region22: #{_lambda_.2} parent=0 // pred_check
    _
  $region23: #{_lambda_.2} parent=0 // pred_check_branch
    %22 = sbr.rel (0) target = $region25
  $region24: #{_lambda_.2} parent=0 // pred_region
    _
  $region25: #{_lambda_.2} parent=0 // pred_fallthru
    _
  %v23 = vld [vmem:[%s0] sm:$0xff]
  %v24 = vld [vmem:[%s0 + $0x8] sm:$0xff]
  %v25 = vld [vmem:[%s0 + $0x10] sm:$0xff]
  %v26 = vld [vmem:[%s0 + $0x18] sm:$0xff]
  %v27 = vld [vmem:[%s2] sm:$0xff]
  %v28 = vld [vmem:[%s2 + $0x8] sm:$0xff]
  %v29 = vld [vmem:[%s3] sm:$0x1]
  %v31 = vlaneseq
  %v32 = vshrl.u32 %v31, 7
  %v33 = vsub.s32 0, %v32
  %v34 = vrot.slane %v29, %v33
  %vm36 = vcmask 130048
  %v38 = vsel %vm36, %v23, 0
  %v41 = vsel %vm36, %v24, 0
  %v44 = vsel %vm36, %v25, 0
  %v47 = vsel %vm36, %v26, 0
  %49 = vmatprep.subr.mxu0 0.0
  %50 = vmatpush1.msra.mxu0 %v27
  %51 = vmatprep.subr.mxu0 0.0
  %52 = vmatpush1.msra.mxu0 %v28
  %53 = vmatprep.subr.mxu0 0.0
  %54 = vmatpush1.msra.mxu0 0.0
  %55 = vmatprep.subr.mxu0 0.0
  %56 = vmatpush1.msra.mxu0 0.0
  %57 = vmatprep.subr.mxu0 0.0
  %58 = vmatpush1.msra.mxu0 0.0
  %59 = vmatprep.subr.mxu0 0.0
  %60 = vmatpush1.msra.mxu0 0.0
  %61 = vmatprep.subr.mxu0 0.0
  %62 = vmatpush1.msra.mxu0 0.0
  %63 = vmatprep.subr.mxu0 0.0
  %64 = vmatpush1.msra.mxu0 0.0
  %65 = vmatprep.subr.mxu0 0.0
  %66 = vmatpush1.msra.mxu0 0.0
  %67 = vmatprep.subr.mxu0 0.0
  %68 = vmatpush1.msra.mxu0 0.0
  %69 = vmatprep.subr.mxu0 0.0
  %70 = vmatpush1.msra.mxu0 0.0
  %71 = vmatprep.subr.mxu0 0.0
  %72 = vmatpush1.msra.mxu0 0.0
  %73 = vmatprep.subr.mxu0 0.0
  %74 = vmatpush1.msra.mxu0 0.0
  %75 = vmatprep.subr.mxu0 0.0
  %76 = vmatpush1.msra.mxu0 0.0
  %77 = vmatprep.subr.mxu0 0.0
  %78 = vmatpush1.msra.mxu0 0.0
  %79 = vmatprep.subr.mxu0 0.0
  %80 = vmatpush1.msra.mxu0 0.0
  %81 = vmatprep.subr.mxu0 0.0
  %82 = vmatpush1.msra.mxu0 0.0
  %83 = vmatprep.subr.mxu0 0.0
  %84 = vmatpush1.msra.mxu0 0.0
  %85 = vmatprep.subr.mxu0 0.0
  %86 = vmatpush1.msra.mxu0 0.0
  %87 = vmatprep.subr.mxu0 0.0
  %88 = vmatpush1.msra.mxu0 0.0
  %89 = vmatprep.subr.mxu0 0.0
  %90 = vmatpush1.msra.mxu0 0.0
  %91 = vmatprep.subr.mxu0 0.0
  %92 = vmatpush1.msra.mxu0 0.0
  %93 = vmatprep.subr.mxu0 0.0
  %94 = vmatpush1.msra.mxu0 0.0
  %95 = vmatprep.subr.mxu0 0.0
  %96 = vmatpush1.msra.mxu0 0.0
  %97 = vmatprep.subr.mxu0 0.0
  %98 = vmatpush1.msra.mxu0 0.0
  %99 = vmatprep.subr.mxu0 0.0
  %100 = vmatpush1.msra.mxu0 0.0
  %101 = vmatprep.subr.mxu0 0.0
  %102 = vmatpush1.msra.mxu0 0.0
  %103 = vmatprep.subr.mxu0 0.0
  %104 = vmatpush1.msra.mxu0 0.0
  %105 = vmatprep.subr.mxu0 0.0
  %106 = vmatpush1.msra.mxu0 0.0
  %107 = vmatprep.subr.mxu0 0.0
  %108 = vmatpush1.msra.mxu0 0.0
  %109 = vmatprep.subr.mxu0 0.0
  %110 = vmatpush1.msra.mxu0 0.0
  %111 = vmatprep.subr.mxu0 0.0
  %112 = vmatpush1.msra.mxu0 0.0
  %113 = vmatprep.mubr.f32.mxu0 0.0
  %114 = vmatmul.mubr.f32.gmra.mrb[0].mxu0 %v38
  %v115 = vpop.f32.mrb[0].mxu0
  %v116 = vadd.f32 %v34, %v115
  %v117 = vpop.f32.mrb[0].mxu0
  %118 = vmatprep.mubr.f32.mxu0 0.0
  %119 = vmatmul.mubr.f32.gmra.mrb[0].mxu0 %v41
  %v120 = vpop.f32.mrb[0].mxu0
  %v121 = vadd.f32 %v34, %v120
  %v122 = vpop.f32.mrb[0].mxu0
  %123 = vmatprep.mubr.f32.mxu0 0.0
  %124 = vmatmul.mubr.f32.gmra.mrb[0].mxu0 %v44
  %v125 = vpop.f32.mrb[0].mxu0
  %v126 = vadd.f32 %v34, %v125
  %v127 = vpop.f32.mrb[0].mxu0
  %128 = vmatprep.mubr.f32.mxu0 0.0
  %129 = vmatmul.mubr.f32.gmra.mrb[0].mxu0 %v47
  %v130 = vpop.f32.mrb[0].mxu0
  %v131 = vadd.f32 %v34, %v130
  %v132 = vpop.f32.mrb[0].mxu0
  %133 = vdwg.mxu0
  %v134 = vmul.f32 %v116, 3.0
  %v135 = vmul.f32 %v121, 3.0
  %v136 = vmul.f32 %v126, 3.0
  %v137 = vmul.f32 %v131, 3.0
  %v138 = vtanh.pop %v134
  %v139 = vtanh.pop %v135
  %v140 = vtanh.pop %v136
  %v141 = vtanh.pop %v137
  %v142 = vld [vmem:[%s1] sm:$0xff]
  %v143 = vld [vmem:[%s1 + $0x8] sm:$0xff]
  %v144 = vld [vmem:[%s1 + $0x10] sm:$0xff]
  %v145 = vld [vmem:[%s1 + $0x18] sm:$0xff]
  %v146 = vld [vmem:[%s4] sm:$0xff]
  %v147 = vld [vmem:[%s4 + $0x8] sm:$0xff]
  %v148 = vld [vmem:[%s5] sm:$0x1]
  %v150 = vlaneseq
  %v151 = vshrl.u32 %v150, 7
  %v152 = vsub.s32 0, %v151
  %v153 = vrot.slane %v148, %v152
  %v156 = vsel %vm36, %v142, 0
  %v159 = vsel %vm36, %v143, 0
  %v162 = vsel %vm36, %v144, 0
  %v165 = vsel %vm36, %v145, 0
  %167 = vmatprep.subr.mxu0 0.0
  %168 = vmatpush1.msra.mxu0 %v146
  %169 = vmatprep.subr.mxu0 0.0
  %170 = vmatpush1.msra.mxu0 %v147
  %171 = vmatprep.subr.mxu0 0.0
  %172 = vmatpush1.msra.mxu0 0.0
  %173 = vmatprep.subr.mxu0 0.0
  %174 = vmatpush1.msra.mxu0 0.0
  %175 = vmatprep.subr.mxu0 0.0
  %176 = vmatpush1.msra.mxu0 0.0
  %177 = vmatprep.subr.mxu0 0.0
  %178 = vmatpush1.msra.mxu0 0.0
  %179 = vmatprep.subr.mxu0 0.0
  %180 = vmatpush1.msra.mxu0 0.0
  %181 = vmatprep.subr.mxu0 0.0
  %182 = vmatpush1.msra.mxu0 0.0
  %183 = vmatprep.subr.mxu0 0.0
  %184 = vmatpush1.msra.mxu0 0.0
  %185 = vmatprep.subr.mxu0 0.0
  %186 = vmatpush1.msra.mxu0 0.0
  %187 = vmatprep.subr.mxu0 0.0
  %188 = vmatpush1.msra.mxu0 0.0
  %189 = vmatprep.subr.mxu0 0.0
  %190 = vmatpush1.msra.mxu0 0.0
  %191 = vmatprep.subr.mxu0 0.0
  %192 = vmatpush1.msra.mxu0 0.0
  %193 = vmatprep.subr.mxu0 0.0
  %194 = vmatpush1.msra.mxu0 0.0
  %195 = vmatprep.subr.mxu0 0.0
  %196 = vmatpush1.msra.mxu0 0.0
  %197 = vmatprep.subr.mxu0 0.0
  %198 = vmatpush1.msra.mxu0 0.0
  %199 = vmatprep.subr.mxu0 0.0
  %200 = vmatpush1.msra.mxu0 0.0
  %201 = vmatprep.subr.mxu0 0.0
  %202 = vmatpush1.msra.mxu0 0.0
  %203 = vmatprep.subr.mxu0 0.0
  %204 = vmatpush1.msra.mxu0 0.0
  %205 = vmatprep.subr.mxu0 0.0
  %206 = vmatpush1.msra.mxu0 0.0
  %207 = vmatprep.subr.mxu0 0.0
  %208 = vmatpush1.msra.mxu0 0.0
  %209 = vmatprep.subr.mxu0 0.0
  %210 = vmatpush1.msra.mxu0 0.0
  %211 = vmatprep.subr.mxu0 0.0
  %212 = vmatpush1.msra.mxu0 0.0
  %213 = vmatprep.subr.mxu0 0.0
  %214 = vmatpush1.msra.mxu0 0.0
  %215 = vmatprep.subr.mxu0 0.0
  %216 = vmatpush1.msra.mxu0 0.0
  %217 = vmatprep.subr.mxu0 0.0
  %218 = vmatpush1.msra.mxu0 0.0
  %219 = vmatprep.subr.mxu0 0.0
  %220 = vmatpush1.msra.mxu0 0.0
  %221 = vmatprep.subr.mxu0 0.0
  %222 = vmatpush1.msra.mxu0 0.0
  %223 = vmatprep.subr.mxu0 0.0
  %224 = vmatpush1.msra.mxu0 0.0
  %225 = vmatprep.subr.mxu0 0.0
  %226 = vmatpush1.msra.mxu0 0.0
  %227 = vmatprep.subr.mxu0 0.0
  %228 = vmatpush1.msra.mxu0 0.0
  %229 = vmatprep.subr.mxu0 0.0
  %230 = vmatpush1.msra.mxu0 0.0
  %231 = vmatprep.mubr.f32.mxu0 0.0
  %232 = vmatmul.mubr.f32.gmra.mrb[0].mxu0 %v156
  %v233 = vpop.f32.mrb[0].mxu0
  %v234 = vadd.f32 %v153, %v233
  %v235 = vpop.f32.mrb[0].mxu0
  %236 = vmatprep.mubr.f32.mxu0 0.0
  %237 = vmatmul.mubr.f32.gmra.mrb[0].mxu0 %v159
  %v238 = vpop.f32.mrb[0].mxu0
  %v239 = vadd.f32 %v153, %v238
  %v240 = vpop.f32.mrb[0].mxu0
  %241 = vmatprep.mubr.f32.mxu0 0.0
  %242 = vmatmul.mubr.f32.gmra.mrb[0].mxu0 %v162
  %v243 = vpop.f32.mrb[0].mxu0
  %v244 = vadd.f32 %v153, %v243
  %v245 = vpop.f32.mrb[0].mxu0
  %246 = vmatprep.mubr.f32.mxu0 0.0
  %247 = vmatmul.mubr.f32.gmra.mrb[0].mxu0 %v165
  %v248 = vpop.f32.mrb[0].mxu0
  %v249 = vadd.f32 %v153, %v248
  %v250 = vpop.f32.mrb[0].mxu0
  %251 = vdwg.mxu0
  %v252 = vmul.f32 %v234, 3.0
  %v253 = vmul.f32 %v239, 3.0
  %v254 = vmul.f32 %v244, 3.0
  %v255 = vmul.f32 %v249, 3.0
  %v256 = vtanh.pop %v252
  %v257 = vtanh.pop %v253
  %v258 = vtanh.pop %v254
  %v259 = vtanh.pop %v255
  %v261 = vsel %vm36, %v138, 0
  %v264 = vsel %vm36, %v139, 0
  %v267 = vsel %vm36, %v140, 0
  %v270 = vsel %vm36, %v141, 0
  %v273 = vsel %vm36, %v256, 0
  %v276 = vsel %vm36, %v257, 0
  %v279 = vsel %vm36, %v258, 0
  %v282 = vsel %vm36, %v259, 0
  %284 = vmatprep.subr.mxu0 0.0
  %285 = vmatpush1.xpose.msra.mxu0 %v273
  %286 = vmatprep.subr.mxu0 0.0
  %287 = vmatpush1.xpose.msra.mxu0 %v276
  %288 = vmatprep.subr.mxu0 0.0
  %289 = vmatpush1.xpose.msra.mxu0 %v279
  %290 = vmatprep.subr.mxu0 0.0
  %291 = vmatpush1.xpose.msra.mxu0 %v282
  %292 = vmatprep.subr.mxu0 0.0
  %293 = vmatpush1.xpose.msra.mxu0 0.0
  %294 = vmatprep.subr.mxu0 0.0
  %295 = vmatpush1.xpose.msra.mxu0 0.0
  %296 = vmatprep.subr.mxu0 0.0
  %297 = vmatpush1.xpose.msra.mxu0 0.0
  %298 = vmatprep.subr.mxu0 0.0
  %299 = vmatpush1.xpose.msra.mxu0 0.0
  %300 = vmatprep.subr.mxu0 0.0
  %301 = vmatpush1.xpose.msra.mxu0 0.0
  %302 = vmatprep.subr.mxu0 0.0
  %303 = vmatpush1.xpose.msra.mxu0 0.0
  %304 = vmatprep.subr.mxu0 0.0
  %305 = vmatpush1.xpose.msra.mxu0 0.0
  %306 = vmatprep.subr.mxu0 0.0
  %307 = vmatpush1.xpose.msra.mxu0 0.0
  %308 = vmatprep.subr.mxu0 0.0
  %309 = vmatpush1.xpose.msra.mxu0 0.0
  %310 = vmatprep.subr.mxu0 0.0
  %311 = vmatpush1.xpose.msra.mxu0 0.0
  %312 = vmatprep.subr.mxu0 0.0
  %313 = vmatpush1.xpose.msra.mxu0 0.0
  %314 = vmatprep.subr.mxu0 0.0
  %315 = vmatpush1.xpose.msra.mxu0 0.0
  %316 = vmatprep.subr.mxu0 0.0
  %317 = vmatpush1.xpose.msra.mxu0 0.0
  %318 = vmatprep.subr.mxu0 0.0
  %319 = vmatpush1.xpose.msra.mxu0 0.0
  %320 = vmatprep.subr.mxu0 0.0
  %321 = vmatpush1.xpose.msra.mxu0 0.0
  %322 = vmatprep.subr.mxu0 0.0
  %323 = vmatpush1.xpose.msra.mxu0 0.0
  %324 = vmatprep.subr.mxu0 0.0
  %325 = vmatpush1.xpose.msra.mxu0 0.0
  %326 = vmatprep.subr.mxu0 0.0
  %327 = vmatpush1.xpose.msra.mxu0 0.0
  %328 = vmatprep.subr.mxu0 0.0
  %329 = vmatpush1.xpose.msra.mxu0 0.0
  %330 = vmatprep.subr.mxu0 0.0
  %331 = vmatpush1.xpose.msra.mxu0 0.0
  %332 = vmatprep.subr.mxu0 0.0
  %333 = vmatpush1.xpose.msra.mxu0 0.0
  %334 = vmatprep.subr.mxu0 0.0
  %335 = vmatpush1.xpose.msra.mxu0 0.0
  %336 = vmatprep.subr.mxu0 0.0
  %337 = vmatpush1.xpose.msra.mxu0 0.0
  %338 = vmatprep.subr.mxu0 0.0
  %339 = vmatpush1.xpose.msra.mxu0 0.0
  %340 = vmatprep.subr.mxu0 0.0
  %341 = vmatpush1.xpose.msra.mxu0 0.0
  %342 = vmatprep.subr.mxu0 0.0
  %343 = vmatpush1.xpose.msra.mxu0 0.0
  %344 = vmatprep.subr.mxu0 0.0
  %345 = vmatpush1.xpose.msra.mxu0 0.0
  %346 = vmatprep.subr.mxu0 0.0
  %347 = vmatpush1.xpose.msra.mxu0 0.0
  %348 = vmatprep.mubr.f32.mxu0 0.0
  %349 = vmatmul.mubr.f32.gmra.mrb[0].mxu0 %v261
  %v350 = vpop.f32.mrb[0].mxu0
  %v351 = vadd.f32 0.0, %v350
  %v352 = vpop.f32.mrb[0].mxu0
  %353 = vmatprep.mubr.f32.mxu0 0.0
  %354 = vmatmul.mubr.f32.gmra.mrb[0].mxu0 %v264
  %v355 = vpop.f32.mrb[0].mxu0
  %v356 = vadd.f32 0.0, %v355
  %v357 = vpop.f32.mrb[0].mxu0
  %358 = vmatprep.mubr.f32.mxu0 0.0
  %359 = vmatmul.mubr.f32.gmra.mrb[0].mxu0 %v267
  %v360 = vpop.f32.mrb[0].mxu0
  %v361 = vadd.f32 0.0, %v360
  %v362 = vpop.f32.mrb[0].mxu0
  %363 = vmatprep.mubr.f32.mxu0 0.0
  %364 = vmatmul.mubr.f32.gmra.mrb[0].mxu0 %v270
  %v365 = vpop.f32.mrb[0].mxu0
  %v366 = vadd.f32 0.0, %v365
  %v367 = vpop.f32.mrb[0].mxu0
  %368 = vdwg.mxu0
  %369 = vxpose.xlu0.b32.start [1/16] %v351, 128
  %370 = vxpose.xlu0.b32.cont [2/16] %v356, 128
  %371 = vxpose.xlu0.b32.cont [3/16] %v361, 128
  %372 = vxpose.xlu0.b32.cont [4/16] %v366, 128
  %373 = vxpose.xlu0.b32.cont [5/16] 0.0, 128
  %374 = vxpose.xlu0.b32.cont [6/16] 0.0, 128
  %375 = vxpose.xlu0.b32.cont [7/16] 0.0, 128
  %376 = vxpose.xlu0.b32.cont [8/16] 0.0, 128
  %377 = vxpose.xlu0.b32.cont [9/16] 0.0, 128
  %378 = vxpose.xlu0.b32.cont [10/16] 0.0, 128
  %379 = vxpose.xlu0.b32.cont [11/16] 0.0, 128
  %380 = vxpose.xlu0.b32.cont [12/16] 0.0, 128
  %381 = vxpose.xlu0.b32.cont [13/16] 0.0, 128
  %382 = vxpose.xlu0.b32.cont [14/16] 0.0, 128
  %383 = vxpose.xlu0.b32.cont [15/16] 0.0, 128
  %384 = vxpose.xlu0.b32.end [16/16] 0.0, 128
  %v385 = vpop.trf.xlu0
  %v386 = vpop.trf.xlu0
  %v387 = vpop.trf.xlu0
  %v388 = vpop.trf.xlu0
  %v389 = vpop.trf.xlu0
  %v390 = vpop.trf.xlu0
  %v391 = vpop.trf.xlu0
  %v392 = vpop.trf.xlu0
  %v393 = vpop.trf.xlu0
  %v394 = vpop.trf.xlu0
  %v395 = vpop.trf.xlu0
  %v396 = vpop.trf.xlu0
  %v397 = vpop.trf.xlu0
  %v398 = vpop.trf.xlu0
  %v399 = vpop.trf.xlu0
  %v400 = vpop.trf.xlu0
  %v401 = vsub.f32 %v351, %v385
  %v402 = vsub.f32 %v356, %v386
  %v403 = vsub.f32 %v361, %v387
  %v404 = vsub.f32 %v366, %v388
  %v405 = vmul.f32 %v401, 3.0
  %v406 = vmul.f32 %v402, 3.0
  %v407 = vmul.f32 %v403, 3.0
  %v408 = vmul.f32 %v404, 3.0
  %v409 = vtanh.pop %v405
  %v410 = vtanh.pop %v406
  %v411 = vtanh.pop %v407
  %v412 = vtanh.pop %v408
  %v413 = vmax.f32 %v409, 0.0
  %v414 = vmax.f32 %v410, 0.0
  %v415 = vmax.f32 %v411, 0.0
  %v416 = vmax.f32 %v412, 0.0
  %vm417 = vcmask 261120
  %418 = vst.msk [vmem:[%s6] sm:$0xff] %vm417, %v413
  %419 = vst.msk [vmem:[%s6 + $0x8] sm:$0xff] %vm417, %v414
  %420 = vst.msk [vmem:[%s6 + $0x10] sm:$0xff] %vm417, %v415
  %421 = vst.msk [vmem:[%s6 + $0x18] sm:$0xff] %vm417, %v416
  // Predicated region
  $region26: #{_lambda_.2} parent=0 // pred_check
    _
  $region27: #{_lambda_.2} parent=0 // pred_check_branch
    %423 = sbr.rel (0) target = $region29
  $region28: #{_lambda_.2} parent=0 // pred_region
    _
  $region29: #{_lambda_.2} parent=0 // pred_fallthru
    _
  // Predicated region
  $region30: #{_lambda_.2} parent=0 // pred_check
    _
  $region31: #{_lambda_.2} parent=0 // pred_check_branch
    %425 = sbr.rel (0) target = $region33
  $region32: #{_lambda_.2} parent=0 // pred_region
    _
  $region33: #{_lambda_.2} parent=0 // pred_fallthru
    _

// kernel: _lambda_.3
$region0: #{_lambda_.3}
  #allocation0 [shape = 'u32[]', space=smem, size = 0x4, offset = 0x4, fixed_abs, tag = 'smem constant byte address 0x4 - core index']
  #allocation1 [shape = 'u32[144,128]{1,0:T(1,128)}', space=vmem, size = 0x12000, scoped, tag = 'internal scratch']
  %s0 = inlined_call_operand.vmem [shape: f32[16,16], index: 0, kind: input, shape index: {}]
  %s1 = inlined_call_operand.vmem [shape: f32[16,32], index: 1, kind: input, shape index: {}]
  %s2 = inlined_call_operand.vmem [shape: f32[1,32], index: 2, kind: input, shape index: {}]
  %s3 = inlined_call_operand.vmem [shape: f32[32,32], index: 3, kind: input, shape index: {}]
  %s4 = inlined_call_operand.vmem [shape: f32[32,32], index: 4, kind: input, shape index: {}]
  %s5 = inlined_call_operand.vmem [shape: f32[3,32,32], index: 5, kind: input, shape index: {}]
  %s6 = inlined_call_operand.vmem [shape: f32[1,32], index: 6, kind: input, shape index: {}]
  %s7 = inlined_call_operand.vmem [shape: f32[3,32,32], index: 7, kind: input, shape index: {}]
  %s8 = inlined_call_operand.vmem [shape: f32[1,32], index: 8, kind: input, shape index: {}]
  %s9 = inlined_call_operand.vmem [shape: f32[1,32], index: 9, kind: input, shape index: {}]
  %s10 = inlined_call_operand.vmem [shape: f32[1,32], index: 10, kind: input, shape index: {}]
  %s11 = inlined_call_operand.vmem [shape: f32[8,32], index: 11, kind: input, shape index: {}]
  %s12 = inlined_call_operand.vmem [shape: f32[2,8], index: 12, kind: input, shape index: {}]
  %s13 = inlined_call_operand.vmem [shape: f32[2,32,128], index: 13, kind: input, shape index: {}]
  %s14 = inlined_call_operand.vmem [shape: f32[2,1,32], index: 14, kind: input, shape index: {}]
  %s15 = inlined_call_operand.vmem [shape: f32[2,1,32], index: 15, kind: input, shape index: {}]
  %s16 = inlined_call_operand.vmem [shape: f32[2,32,64], index: 16, kind: input, shape index: {}]
  %s17 = inlined_call_operand.vmem [shape: f32[2,1,64], index: 17, kind: input, shape index: {}]
  %s18 = inlined_call_operand.vmem [shape: f32[2,64,32], index: 18, kind: input, shape index: {}]
  %s19 = inlined_call_operand.vmem [shape: f32[2,1,32], index: 19, kind: input, shape index: {}]
  %s20 = inlined_call_operand.vmem [shape: f32[2,1,32], index: 20, kind: input, shape index: {}]
  %s21 = inlined_call_operand.vmem [shape: f32[2,1,32], index: 21, kind: input, shape index: {}]
  %s22 = inlined_call_operand.vmem [shape: f32[1,32], index: 22, kind: input, shape index: {}]
  %s23 = inlined_call_operand.vmem [shape: f32[1,32], index: 23, kind: input, shape index: {}]
  %s24 = inlined_call_operand.vmem [shape: f32[32,64], index: 24, kind: input, shape index: {}]
  %s25 = inlined_call_operand.vmem [shape: f32[1,64], index: 25, kind: input, shape index: {}]
  %s26 = inlined_call_operand.vmem [shape: f32[8,64], index: 26, kind: input, shape index: {}]
  %s27 = inlined_call_operand.vmem [shape: f32[8,64], index: 27, kind: input, shape index: {}]
  %s28 = inlined_call_operand.vmem [shape: f32[16,64], index: 28, kind: output, shape index: {}]
  %s29 = sld [smem:[#allocation0]]
  $region122: #{_lambda_.3} parent=0
    _
  %s31 = ssub.s32 1, %s29
  %s32 = scalar_select 0, %s31, %s29
  // Predicated region
  $region2: #{_lambda_.3} parent=0 // pred_check
    _
  $region3: #{_lambda_.3} parent=0 // pred_check_branch
    %34 = sbr.rel (0) target = $region5
  $region4: #{_lambda_.3} parent=0 // pred_region
    _
  $region5: #{_lambda_.3} parent=0 // pred_fallthru
    _
  // Predicated region
  $region6: #{_lambda_.3} parent=0 // pred_check
    _
  $region7: #{_lambda_.3} parent=0 // pred_check_branch
    %36 = sbr.rel (0) target = $region9
  $region8: #{_lambda_.3} parent=0 // pred_region
    _
  $region9: #{_lambda_.3} parent=0 // pred_fallthru
    _
  // Predicated region
  $region10: #{_lambda_.3} parent=0 // pred_check
    _
  $region11: #{_lambda_.3} parent=0 // pred_check_branch
    %38 = sbr.rel (0) target = $region13
  $region12: #{_lambda_.3} parent=0 // pred_region
    _
  $region13: #{_lambda_.3} parent=0 // pred_fallthru
    _
  // Predicated region
  $region14: #{_lambda_.3} parent=0 // pred_check
    _
  $region15: #{_lambda_.3} parent=0 // pred_check_branch
    %40 = sbr.rel (0) target = $region17
  $region16: #{_lambda_.3} parent=0 // pred_region
    _
  $region17: #{_lambda_.3} parent=0 // pred_fallthru
    _
  // Predicated region
  $region18: #{_lambda_.3} parent=0 // pred_check
    _
  $region19: #{_lambda_.3} parent=0 // pred_check_branch
    %42 = sbr.rel (0) target = $region21
  $region20: #{_lambda_.3} parent=0 // pred_region
    _
  $region21: #{_lambda_.3} parent=0 // pred_fallthru
    _
  // Predicated region
  $region22: #{_lambda_.3} parent=0 // pred_check
    _
  $region23: #{_lambda_.3} parent=0 // pred_check_branch
    %44 = sbr.rel (0) target = $region25
  $region24: #{_lambda_.3} parent=0 // pred_region
    _
  $region25: #{_lambda_.3} parent=0 // pred_fallthru
    _
  // Predicated region
  $region26: #{_lambda_.3} parent=0 // pred_check
    _
  $region27: #{_lambda_.3} parent=0 // pred_check_branch
    %46 = sbr.rel (0) target = $region29
  $region28: #{_lambda_.3} parent=0 // pred_region
    _
  $region29: #{_lambda_.3} parent=0 // pred_fallthru
    _
  // Predicated region
  $region30: #{_lambda_.3} parent=0 // pred_check
    _
  $region31: #{_lambda_.3} parent=0 // pred_check_branch
    %48 = sbr.rel (0) target = $region33
  $region32: #{_lambda_.3} parent=0 // pred_region
    _
  $region33: #{_lambda_.3} parent=0 // pred_fallthru
    _
  // Predicated region
  $region34: #{_lambda_.3} parent=0 // pred_check
    _
  $region35: #{_lambda_.3} parent=0 // pred_check_branch
    %50 = sbr.rel (0) target = $region37
  $region36: #{_lambda_.3} parent=0 // pred_region
    _
  $region37: #{_lambda_.3} parent=0 // pred_fallthru
    _
  // Predicated region
  $region38: #{_lambda_.3} parent=0 // pred_check
    _
  $region39: #{_lambda_.3} parent=0 // pred_check_branch
    %52 = sbr.rel (0) target = $region41
  $region40: #{_lambda_.3} parent=0 // pred_region
    _
  $region41: #{_lambda_.3} parent=0 // pred_fallthru
    _
  // Predicated region
  $region42: #{_lambda_.3} parent=0 // pred_check
    _
  $region43: #{_lambda_.3} parent=0 // pred_check_branch
    %54 = sbr.rel (0) target = $region45
  $region44: #{_lambda_.3} parent=0 // pred_region
    _
  $region45: #{_lambda_.3} parent=0 // pred_fallthru
    _
  // Predicated region
  $region46: #{_lambda_.3} parent=0 // pred_check
    _
  $region47: #{_lambda_.3} parent=0 // pred_check_branch
    %56 = sbr.rel (0) target = $region49
  $region48: #{_lambda_.3} parent=0 // pred_region
    _
  $region49: #{_lambda_.3} parent=0 // pred_fallthru
    _
  // Predicated region
  $region50: #{_lambda_.3} parent=0 // pred_check
    _
  $region51: #{_lambda_.3} parent=0 // pred_check_branch
    %58 = sbr.rel (0) target = $region53
  $region52: #{_lambda_.3} parent=0 // pred_region
    _
  $region53: #{_lambda_.3} parent=0 // pred_fallthru
    _
  // Predicated region
  $region54: #{_lambda_.3} parent=0 // pred_check
    _
  $region55: #{_lambda_.3} parent=0 // pred_check_branch
    %60 = sbr.rel (0) target = $region57
  $region56: #{_lambda_.3} parent=0 // pred_region
    _
  $region57: #{_lambda_.3} parent=0 // pred_fallthru
    _
  // Predicated region
  $region58: #{_lambda_.3} parent=0 // pred_check
    _
  $region59: #{_lambda_.3} parent=0 // pred_check_branch
    %62 = sbr.rel (0) target = $region61
  $region60: #{_lambda_.3} parent=0 // pred_region
    _
  $region61: #{_lambda_.3} parent=0 // pred_fallthru
    _
  // Predicated region
  $region62: #{_lambda_.3} parent=0 // pred_check
    _
  $region63: #{_lambda_.3} parent=0 // pred_check_branch
    %64 = sbr.rel (0) target = $region65
  $region64: #{_lambda_.3} parent=0 // pred_region
    _
  $region65: #{_lambda_.3} parent=0 // pred_fallthru
    _
  // Predicated region
  $region66: #{_lambda_.3} parent=0 // pred_check
    _
  $region67: #{_lambda_.3} parent=0 // pred_check_branch
    %66 = sbr.rel (0) target = $region69
  $region68: #{_lambda_.3} parent=0 // pred_region
    _
  $region69: #{_lambda_.3} parent=0 // pred_fallthru
    _
  // Predicated region
  $region70: #{_lambda_.3} parent=0 // pred_check
    _
  $region71: #{_lambda_.3} parent=0 // pred_check_branch
    %68 = sbr.rel (0) target = $region73
  $region72: #{_lambda_.3} parent=0 // pred_region
    _
  $region73: #{_lambda_.3} parent=0 // pred_fallthru
    _
  // Predicated region
  $region74: #{_lambda_.3} parent=0 // pred_check
    _
  $region75: #{_lambda_.3} parent=0 // pred_check_branch
    %70 = sbr.rel (0) target = $region77
  $region76: #{_lambda_.3} parent=0 // pred_region
    _
  $region77: #{_lambda_.3} parent=0 // pred_fallthru
    _
  // Predicated region
  $region78: #{_lambda_.3} parent=0 // pred_check
    _
  $region79: #{_lambda_.3} parent=0 // pred_check_branch
    %72 = sbr.rel (0) target = $region81
  $region80: #{_lambda_.3} parent=0 // pred_region
    _
  $region81: #{_lambda_.3} parent=0 // pred_fallthru
    _
  // Predicated region
  $region82: #{_lambda_.3} parent=0 // pred_check
    _
  $region83: #{_lambda_.3} parent=0 // pred_check_branch
    %74 = sbr.rel (0) target = $region85
  $region84: #{_lambda_.3} parent=0 // pred_region
    _
  $region85: #{_lambda_.3} parent=0 // pred_fallthru
    _
  // Predicated region
  $region86: #{_lambda_.3} parent=0 // pred_check
    _
  $region87: #{_lambda_.3} parent=0 // pred_check_branch
    %76 = sbr.rel (0) target = $region89
  $region88: #{_lambda_.3} parent=0 // pred_region
    _
  $region89: #{_lambda_.3} parent=0 // pred_fallthru
    _
  // Predicated region
  $region90: #{_lambda_.3} parent=0 // pred_check
    _
  $region91: #{_lambda_.3} parent=0 // pred_check_branch
    %78 = sbr.rel (0) target = $region93
  $region92: #{_lambda_.3} parent=0 // pred_region
    _
  $region93: #{_lambda_.3} parent=0 // pred_fallthru
    _
  // Predicated region
  $region94: #{_lambda_.3} parent=0 // pred_check
    _
  $region95: #{_lambda_.3} parent=0 // pred_check_branch
    %80 = sbr.rel (0) target = $region97
  $region96: #{_lambda_.3} parent=0 // pred_region
    _
  $region97: #{_lambda_.3} parent=0 // pred_fallthru
    _
  // Predicated region
  $region98: #{_lambda_.3} parent=0 // pred_check
    _
  $region99: #{_lambda_.3} parent=0 // pred_check_branch
    %82 = sbr.rel (0) target = $region101
  $region100: #{_lambda_.3} parent=0 // pred_region
    _
  $region101: #{_lambda_.3} parent=0 // pred_fallthru
    _
  // Predicated region
  $region102: #{_lambda_.3} parent=0 // pred_check
    _
  $region103: #{_lambda_.3} parent=0 // pred_check_branch
    %84 = sbr.rel (0) target = $region105
  $region104: #{_lambda_.3} parent=0 // pred_region
    _
  $region105: #{_lambda_.3} parent=0 // pred_fallthru
    _
  // Predicated region
  $region106: #{_lambda_.3} parent=0 // pred_check
    _
  $region107: #{_lambda_.3} parent=0 // pred_check_branch
    %86 = sbr.rel (0) target = $region109
  $region108: #{_lambda_.3} parent=0 // pred_region
    _
  $region109: #{_lambda_.3} parent=0 // pred_fallthru
    _
  // Predicated region
  $region110: #{_lambda_.3} parent=0 // pred_check
    _
  $region111: #{_lambda_.3} parent=0 // pred_check_branch
    %88 = sbr.rel (0) target = $region113
  $region112: #{_lambda_.3} parent=0 // pred_region
    _
  $region113: #{_lambda_.3} parent=0 // pred_fallthru
    _
  %v89 = vld [vmem:[%s0] sm:$0xff]
  %v90 = vld [vmem:[%s0 + $0x8] sm:$0xff]
  %v91 = vld [vmem:[%s1] sm:$0xff]
  %v92 = vld [vmem:[%s1 + $0x8] sm:$0xff]
  %v93 = vld [vmem:[%s2] sm:$0x1]
  %v95 = vlaneseq
  %v96 = vshrl.u32 %v95, 7
  %v97 = vsub.s32 0, %v96
  %v98 = vrot.slane %v93, %v97
  %vm100 = vcmask 130048
  %v102 = vsel %vm100, %v89, 0
  %v105 = vsel %vm100, %v90, 0
  %107 = vmatprep.subr.mxu0 0.0
  %108 = vmatpush1.msra.mxu0 %v91
  %109 = vmatprep.subr.mxu0 0.0
  %110 = vmatpush1.msra.mxu0 %v92
  %111 = vmatprep.subr.mxu0 0.0
  %112 = vmatpush1.msra.mxu0 0.0
  %113 = vmatprep.subr.mxu0 0.0
  %114 = vmatpush1.msra.mxu0 0.0
  %115 = vmatprep.subr.mxu0 0.0
  %116 = vmatpush1.msra.mxu0 0.0
  %117 = vmatprep.subr.mxu0 0.0
  %118 = vmatpush1.msra.mxu0 0.0
  %119 = vmatprep.subr.mxu0 0.0
  %120 = vmatpush1.msra.mxu0 0.0
  %121 = vmatprep.subr.mxu0 0.0
  %122 = vmatpush1.msra.mxu0 0.0
  %123 = vmatprep.subr.mxu0 0.0
  %124 = vmatpush1.msra.mxu0 0.0
  %125 = vmatprep.subr.mxu0 0.0
  %126 = vmatpush1.msra.mxu0 0.0
  %127 = vmatprep.subr.mxu0 0.0
  %128 = vmatpush1.msra.mxu0 0.0
  %129 = vmatprep.subr.mxu0 0.0
  %130 = vmatpush1.msra.mxu0 0.0
  %131 = vmatprep.subr.mxu0 0.0
  %132 = vmatpush1.msra.mxu0 0.0
  %133 = vmatprep.subr.mxu0 0.0
  %134 = vmatpush1.msra.mxu0 0.0
  %135 = vmatprep.subr.mxu0 0.0
  %136 = vmatpush1.msra.mxu0 0.0
  %137 = vmatprep.subr.mxu0 0.0
  %138 = vmatpush1.msra.mxu0 0.0
  %139 = vmatprep.subr.mxu0 0.0
  %140 = vmatpush1.msra.mxu0 0.0
  %141 = vmatprep.subr.mxu0 0.0
  %142 = vmatpush1.msra.mxu0 0.0
  %143 = vmatprep.subr.mxu0 0.0
  %144 = vmatpush1.msra.mxu0 0.0
  %145 = vmatprep.subr.mxu0 0.0
  %146 = vmatpush1.msra.mxu0 0.0
  %147 = vmatprep.subr.mxu0 0.0
  %148 = vmatpush1.msra.mxu0 0.0
  %149 = vmatprep.subr.mxu0 0.0
  %150 = vmatpush1.msra.mxu0 0.0
  %151 = vmatprep.subr.mxu0 0.0
  %152 = vmatpush1.msra.mxu0 0.0
  %153 = vmatprep.subr.mxu0 0.0
  %154 = vmatpush1.msra.mxu0 0.0
  %155 = vmatprep.subr.mxu0 0.0
  %156 = vmatpush1.msra.mxu0 0.0
  %157 = vmatprep.subr.mxu0 0.0
  %158 = vmatpush1.msra.mxu0 0.0
  %159 = vmatprep.subr.mxu0 0.0
  %160 = vmatpush1.msra.mxu0 0.0
  %161 = vmatprep.subr.mxu0 0.0
  %162 = vmatpush1.msra.mxu0 0.0
  %163 = vmatprep.subr.mxu0 0.0
  %164 = vmatpush1.msra.mxu0 0.0
  %165 = vmatprep.subr.mxu0 0.0
  %166 = vmatpush1.msra.mxu0 0.0
  %167 = vmatprep.subr.mxu0 0.0
  %168 = vmatpush1.msra.mxu0 0.0
  %169 = vmatprep.subr.mxu0 0.0
  %170 = vmatpush1.msra.mxu0 0.0
  %171 = vmatprep.mubr.f32.mxu0 0.0
  %172 = vmatmul.mubr.f32.gmra.mrb[0].mxu0 %v102
  %v173 = vpop.f32.mrb[0].mxu0
  %v174 = vadd.f32 %v98, %v173
  %v175 = vpop.f32.mrb[0].mxu0
  %176 = vmatprep.mubr.f32.mxu0 0.0
  %177 = vmatmul.mubr.f32.gmra.mrb[0].mxu0 %v105
  %v178 = vpop.f32.mrb[0].mxu0
  %v179 = vadd.f32 %v98, %v178
  %v180 = vpop.f32.mrb[0].mxu0
  %181 = vdwg.mxu0
  %v182 = vld [vmem:[%s3] sm:$0xff]
  %v183 = vld [vmem:[%s3 + $0x8] sm:$0xff]
  %v184 = vld [vmem:[%s3 + $0x10] sm:$0xff]
  %v185 = vld [vmem:[%s3 + $0x18] sm:$0xff]
  %v186 = vld [vmem:[%s6] sm:$0x1]
  %v187 = vld [vmem:[%s5] sm:$0xff]
  %v188 = vld [vmem:[%s5 + $0x8] sm:$0xff]
  %v189 = vld [vmem:[%s5 + $0x10] sm:$0xff]
  %v190 = vld [vmem:[%s5 + $0x18] sm:$0xff]
  %vm191 = vcmask 261120
  %v193 = vsel %vm191, %v174, 0
  %v196 = vsel %vm191, %v179, 0
  %198 = vmatprep.subr.mxu0 0.0
  %199 = vmatpush1.msra.mxu0 %v182
  %200 = vmatprep.subr.mxu0 0.0
  %201 = vmatpush1.msra.mxu0 %v183
  %202 = vmatprep.subr.mxu0 0.0
  %203 = vmatpush1.msra.mxu0 %v184
  %204 = vmatprep.subr.mxu0 0.0
  %205 = vmatpush1.msra.mxu0 %v185
  %206 = vmatprep.subr.mxu0 0.0
  %207 = vmatpush1.msra.mxu0 0.0
  %208 = vmatprep.subr.mxu0 0.0
  %209 = vmatpush1.msra.mxu0 0.0
  %210 = vmatprep.subr.mxu0 0.0
  %211 = vmatpush1.msra.mxu0 0.0
  %212 = vmatprep.subr.mxu0 0.0
  %213 = vmatpush1.msra.mxu0 0.0
  %214 = vmatprep.subr.mxu0 0.0
  %215 = vmatpush1.msra.mxu0 0.0
  %216 = vmatprep.subr.mxu0 0.0
  %217 = vmatpush1.msra.mxu0 0.0
  %218 = vmatprep.subr.mxu0 0.0
  %219 = vmatpush1.msra.mxu0 0.0
  %220 = vmatprep.subr.mxu0 0.0
  %221 = vmatpush1.msra.mxu0 0.0
  %222 = vmatprep.subr.mxu0 0.0
  %223 = vmatpush1.msra.mxu0 0.0
  %224 = vmatprep.subr.mxu0 0.0
  %225 = vmatpush1.msra.mxu0 0.0
  %226 = vmatprep.subr.mxu0 0.0
  %227 = vmatpush1.msra.mxu0 0.0
  %228 = vmatprep.subr.mxu0 0.0
  %229 = vmatpush1.msra.mxu0 0.0
  %230 = vmatprep.subr.mxu0 0.0
  %231 = vmatpush1.msra.mxu0 0.0
  %232 = vmatprep.subr.mxu0 0.0
  %233 = vmatpush1.msra.mxu0 0.0
  %234 = vmatprep.subr.mxu0 0.0
  %235 = vmatpush1.msra.mxu0 0.0
  %236 = vmatprep.subr.mxu0 0.0
  %237 = vmatpush1.msra.mxu0 0.0
  %238 = vmatprep.subr.mxu0 0.0
  %239 = vmatpush1.msra.mxu0 0.0
  %240 = vmatprep.subr.mxu0 0.0
  %241 = vmatpush1.msra.mxu0 0.0
  %242 = vmatprep.subr.mxu0 0.0
  %243 = vmatpush1.msra.mxu0 0.0
  %244 = vmatprep.subr.mxu0 0.0
  %245 = vmatpush1.msra.mxu0 0.0
  %246 = vmatprep.subr.mxu0 0.0
  %247 = vmatpush1.msra.mxu0 0.0
  %248 = vmatprep.subr.mxu0 0.0
  %249 = vmatpush1.msra.mxu0 0.0
  %250 = vmatprep.subr.mxu0 0.0
  %251 = vmatpush1.msra.mxu0 0.0
  %252 = vmatprep.subr.mxu0 0.0
  %253 = vmatpush1.msra.mxu0 0.0
  %254 = vmatprep.subr.mxu0 0.0
  %255 = vmatpush1.msra.mxu0 0.0
  %256 = vmatprep.subr.mxu0 0.0
  %257 = vmatpush1.msra.mxu0 0.0
  %258 = vmatprep.subr.mxu0 0.0
  %259 = vmatpush1.msra.mxu0 0.0
  %260 = vmatprep.subr.mxu0 0.0
  %261 = vmatpush1.msra.mxu0 0.0
  %262 = vmatprep.mubr.f32.mxu0 0.0
  %263 = vmatmul.mubr.f32.gmra.mrb[0].mxu0 %v193
  %v264 = vpop.f32.mrb[0].mxu0
  %v265 = vadd.f32 0.0, %v264
  %v266 = vpop.f32.mrb[0].mxu0
  %267 = vmatprep.mubr.f32.mxu0 0.0
  %268 = vmatmul.mubr.f32.gmra.mrb[0].mxu0 %v196
  %v269 = vpop.f32.mrb[0].mxu0
  %v270 = vadd.f32 0.0, %v269
  %v271 = vpop.f32.mrb[0].mxu0
  %272 = vdwg.mxu0
  %v273 = vmul.f32 %v174, 0.2
  %v274 = vmul.f32 %v179, 0.2
  %v275 = vmul.f32 %v265, 0.8
  %v276 = vmul.f32 %v270, 0.8
  %v277 = vadd.f32 %v273, %v275
  %v278 = vadd.f32 %v274, %v276
  %s279 = scalar_lea.vmem %s5, 32
  %v280 = vld [vmem:[%s279] sm:$0xff]
  %v281 = vld [vmem:[%s279 + $0x8] sm:$0xff]
  %v282 = vld [vmem:[%s279 + $0x10] sm:$0xff]
  %v283 = vld [vmem:[%s279 + $0x18] sm:$0xff]
  %v285 = vsel %vm191, %v277, 0
  %v288 = vsel %vm191, %v278, 0
  %290 = vmatprep.subr.mxu0 0.0
  %291 = vmatpush1.msra.mxu0 %v280
  %292 = vmatprep.subr.mxu0 0.0
  %293 = vmatpush1.msra.mxu0 %v281
  %294 = vmatprep.subr.mxu0 0.0
  %295 = vmatpush1.msra.mxu0 %v282
  %296 = vmatprep.subr.mxu0 0.0
  %297 = vmatpush1.msra.mxu0 %v283
  %298 = vmatprep.subr.mxu0 0.0
  %299 = vmatpush1.msra.mxu0 0.0
  %300 = vmatprep.subr.mxu0 0.0
  %301 = vmatpush1.msra.mxu0 0.0
  %302 = vmatprep.subr.mxu0 0.0
  %303 = vmatpush1.msra.mxu0 0.0
  %304 = vmatprep.subr.mxu0 0.0
  %305 = vmatpush1.msra.mxu0 0.0
  %306 = vmatprep.subr.mxu0 0.0
  %307 = vmatpush1.msra.mxu0 0.0
  %308 = vmatprep.subr.mxu0 0.0
  %309 = vmatpush1.msra.mxu0 0.0
  %310 = vmatprep.subr.mxu0 0.0
  %311 = vmatpush1.msra.mxu0 0.0
  %312 = vmatprep.subr.mxu0 0.0
  %313 = vmatpush1.msra.mxu0 0.0
  %314 = vmatprep.subr.mxu0 0.0
  %315 = vmatpush1.msra.mxu0 0.0
  %316 = vmatprep.subr.mxu0 0.0
  %317 = vmatpush1.msra.mxu0 0.0
  %318 = vmatprep.subr.mxu0 0.0
  %319 = vmatpush1.msra.mxu0 0.0
  %320 = vmatprep.subr.mxu0 0.0
  %321 = vmatpush1.msra.mxu0 0.0
  %322 = vmatprep.subr.mxu0 0.0
  %323 = vmatpush1.msra.mxu0 0.0
  %324 = vmatprep.subr.mxu0 0.0
  %325 = vmatpush1.msra.mxu0 0.0
  %326 = vmatprep.subr.mxu0 0.0
  %327 = vmatpush1.msra.mxu0 0.0
  %328 = vmatprep.subr.mxu0 0.0
  %329 = vmatpush1.msra.mxu0 0.0
  %330 = vmatprep.subr.mxu0 0.0
  %331 = vmatpush1.msra.mxu0 0.0
  %332 = vmatprep.subr.mxu0 0.0
  %333 = vmatpush1.msra.mxu0 0.0
  %334 = vmatprep.subr.mxu0 0.0
  %335 = vmatpush1.msra.mxu0 0.0
  %336 = vmatprep.subr.mxu0 0.0
  %337 = vmatpush1.msra.mxu0 0.0
  %338 = vmatprep.subr.mxu0 0.0
  %339 = vmatpush1.msra.mxu0 0.0
  %340 = vmatprep.subr.mxu0 0.0
  %341 = vmatpush1.msra.mxu0 0.0
  %342 = vmatprep.subr.mxu0 0.0
  %343 = vmatpush1.msra.mxu0 0.0
  %344 = vmatprep.subr.mxu0 0.0
  %345 = vmatpush1.msra.mxu0 0.0
  %346 = vmatprep.subr.mxu0 0.0
  %347 = vmatpush1.msra.mxu0 0.0
  %348 = vmatprep.subr.mxu0 0.0
  %349 = vmatpush1.msra.mxu0 0.0
  %350 = vmatprep.subr.mxu0 0.0
  %351 = vmatpush1.msra.mxu0 0.0
  %352 = vmatprep.subr.mxu0 0.0
  %353 = vmatpush1.msra.mxu0 0.0
  %354 = vmatprep.mubr.f32.mxu0 0.0
  %355 = vmatmul.mubr.f32.gmra.mrb[0].mxu0 %v285
  %v356 = vpop.f32.mrb[0].mxu0
  %v357 = vadd.f32 0.0, %v356
  %v358 = vpop.f32.mrb[0].mxu0
  %359 = vmatprep.mubr.f32.mxu0 0.0
  %360 = vmatmul.mubr.f32.gmra.mrb[0].mxu0 %v288
  %v361 = vpop.f32.mrb[0].mxu0
  %v362 = vadd.f32 0.0, %v361
  %v363 = vpop.f32.mrb[0].mxu0
  %364 = vdwg.mxu0
  %365 = vmatprep.subr.mxu0 0.0
  %366 = vmatpush1.msra.mxu0 %v187
  %367 = vmatprep.subr.mxu0 0.0
  %368 = vmatpush1.msra.mxu0 %v188
  %369 = vmatprep.subr.mxu0 0.0
  %370 = vmatpush1.msra.mxu0 %v189
  %371 = vmatprep.subr.mxu0 0.0
  %372 = vmatpush1.msra.mxu0 %v190
  %373 = vmatprep.subr.mxu0 0.0
  %374 = vmatpush1.msra.mxu0 0.0
  %375 = vmatprep.subr.mxu0 0.0
  %376 = vmatpush1.msra.mxu0 0.0
  %377 = vmatprep.subr.mxu0 0.0
  %378 = vmatpush1.msra.mxu0 0.0
  %379 = vmatprep.subr.mxu0 0.0
  %380 = vmatpush1.msra.mxu0 0.0
  %381 = vmatprep.subr.mxu0 0.0
  %382 = vmatpush1.msra.mxu0 0.0
  %383 = vmatprep.subr.mxu0 0.0
  %384 = vmatpush1.msra.mxu0 0.0
  %385 = vmatprep.subr.mxu0 0.0
  %386 = vmatpush1.msra.mxu0 0.0
  %387 = vmatprep.subr.mxu0 0.0
  %388 = vmatpush1.msra.mxu0 0.0
  %389 = vmatprep.subr.mxu0 0.0
  %390 = vmatpush1.msra.mxu0 0.0
  %391 = vmatprep.subr.mxu0 0.0
  %392 = vmatpush1.msra.mxu0 0.0
  %393 = vmatprep.subr.mxu0 0.0
  %394 = vmatpush1.msra.mxu0 0.0
  %395 = vmatprep.subr.mxu0 0.0
  %396 = vmatpush1.msra.mxu0 0.0
  %397 = vmatprep.subr.mxu0 0.0
  %398 = vmatpush1.msra.mxu0 0.0
  %399 = vmatprep.subr.mxu0 0.0
  %400 = vmatpush1.msra.mxu0 0.0
  %401 = vmatprep.subr.mxu0 0.0
  %402 = vmatpush1.msra.mxu0 0.0
  %403 = vmatprep.subr.mxu0 0.0
  %404 = vmatpush1.msra.mxu0 0.0
  %405 = vmatprep.subr.mxu0 0.0
  %406 = vmatpush1.msra.mxu0 0.0
  %407 = vmatprep.subr.mxu0 0.0
  %408 = vmatpush1.msra.mxu0 0.0
  %409 = vmatprep.subr.mxu0 0.0
  %410 = vmatpush1.msra.mxu0 0.0
  %411 = vmatprep.subr.mxu0 0.0
  %412 = vmatpush1.msra.mxu0 0.0
  %413 = vmatprep.subr.mxu0 0.0
  %414 = vmatpush1.msra.mxu0 0.0
  %415 = vmatprep.subr.mxu0 0.0
  %416 = vmatpush1.msra.mxu0 0.0
  %417 = vmatprep.subr.mxu0 0.0
  %418 = vmatpush1.msra.mxu0 0.0
  %419 = vmatprep.subr.mxu0 0.0
  %420 = vmatpush1.msra.mxu0 0.0
  %421 = vmatprep.subr.mxu0 0.0
  %422 = vmatpush1.msra.mxu0 0.0
  %423 = vmatprep.subr.mxu0 0.0
  %424 = vmatpush1.msra.mxu0 0.0
  %425 = vmatprep.subr.mxu0 0.0
  %426 = vmatpush1.msra.mxu0 0.0
  %427 = vmatprep.subr.mxu0 0.0
  %428 = vmatpush1.msra.mxu0 0.0
  %429 = vmatprep.mubr.f32.mxu0 0.0
  %430 = vmatmul.mubr.f32.gmra.mrb[0].mxu0 %v193
  %v431 = vpop.f32.mrb[0].mxu0
  %v432 = vadd.f32 %v357, %v431
  %v433 = vpop.f32.mrb[0].mxu0
  %434 = vmatprep.mubr.f32.mxu0 0.0
  %435 = vmatmul.mubr.f32.gmra.mrb[0].mxu0 %v196
  %v436 = vpop.f32.mrb[0].mxu0
  %v437 = vadd.f32 %v362, %v436
  %v438 = vpop.f32.mrb[0].mxu0
  %439 = vdwg.mxu0
  %440 = vmatprep.subr.mxu0 0.0
  %441 = vmatpush1.msra.mxu0 %v182
  %442 = vmatprep.subr.mxu0 0.0
  %443 = vmatpush1.msra.mxu0 %v183
  %444 = vmatprep.subr.mxu0 0.0
  %445 = vmatpush1.msra.mxu0 %v184
  %446 = vmatprep.subr.mxu0 0.0
  %447 = vmatpush1.msra.mxu0 %v185
  %448 = vmatprep.subr.mxu0 0.0
  %449 = vmatpush1.msra.mxu0 0.0
  %450 = vmatprep.subr.mxu0 0.0
  %451 = vmatpush1.msra.mxu0 0.0
  %452 = vmatprep.subr.mxu0 0.0
  %453 = vmatpush1.msra.mxu0 0.0
  %454 = vmatprep.subr.mxu0 0.0
  %455 = vmatpush1.msra.mxu0 0.0
  %456 = vmatprep.subr.mxu0 0.0
  %457 = vmatpush1.msra.mxu0 0.0
  %458 = vmatprep.subr.mxu0 0.0
  %459 = vmatpush1.msra.mxu0 0.0
  %460 = vmatprep.subr.mxu0 0.0
  %461 = vmatpush1.msra.mxu0 0.0
  %462 = vmatprep.subr.mxu0 0.0
  %463 = vmatpush1.msra.mxu0 0.0
  %464 = vmatprep.subr.mxu0 0.0
  %465 = vmatpush1.msra.mxu0 0.0
  %466 = vmatprep.subr.mxu0 0.0
  %467 = vmatpush1.msra.mxu0 0.0
  %468 = vmatprep.subr.mxu0 0.0
  %469 = vmatpush1.msra.mxu0 0.0
  %470 = vmatprep.subr.mxu0 0.0
  %471 = vmatpush1.msra.mxu0 0.0
  %472 = vmatprep.subr.mxu0 0.0
  %473 = vmatpush1.msra.mxu0 0.0
  %474 = vmatprep.subr.mxu0 0.0
  %475 = vmatpush1.msra.mxu0 0.0
  %476 = vmatprep.subr.mxu0 0.0
  %477 = vmatpush1.msra.mxu0 0.0
  %478 = vmatprep.subr.mxu0 0.0
  %479 = vmatpush1.msra.mxu0 0.0
  %480 = vmatprep.subr.mxu0 0.0
  %481 = vmatpush1.msra.mxu0 0.0
  %482 = vmatprep.subr.mxu0 0.0
  %483 = vmatpush1.msra.mxu0 0.0
  %484 = vmatprep.subr.mxu0 0.0
  %485 = vmatpush1.msra.mxu0 0.0
  %486 = vmatprep.subr.mxu0 0.0
  %487 = vmatpush1.msra.mxu0 0.0
  %488 = vmatprep.subr.mxu0 0.0
  %489 = vmatpush1.msra.mxu0 0.0
  %490 = vmatprep.subr.mxu0 0.0
  %491 = vmatpush1.msra.mxu0 0.0
  %492 = vmatprep.subr.mxu0 0.0
  %493 = vmatpush1.msra.mxu0 0.0
  %494 = vmatprep.subr.mxu0 0.0
  %495 = vmatpush1.msra.mxu0 0.0
  %496 = vmatprep.subr.mxu0 0.0
  %497 = vmatpush1.msra.mxu0 0.0
  %498 = vmatprep.subr.mxu0 0.0
  %499 = vmatpush1.msra.mxu0 0.0
  %500 = vmatprep.subr.mxu0 0.0
  %501 = vmatpush1.msra.mxu0 0.0
  %502 = vmatprep.subr.mxu0 0.0
  %503 = vmatpush1.msra.mxu0 0.0
  %504 = vmatprep.mubr.f32.mxu0 0.0
  %505 = vmatmul.mubr.f32.gmra.mrb[0].mxu0 %v285
  %v506 = vpop.f32.mrb[0].mxu0
  %v507 = vadd.f32 0.0, %v506
  %v508 = vpop.f32.mrb[0].mxu0
  %509 = vmatprep.mubr.f32.mxu0 0.0
  %510 = vmatmul.mubr.f32.gmra.mrb[0].mxu0 %v288
  %v511 = vpop.f32.mrb[0].mxu0
  %v512 = vadd.f32 0.0, %v511
  %v513 = vpop.f32.mrb[0].mxu0
  %514 = vdwg.mxu0
  %v515 = vmul.f32 %v507, 0.8
  %v516 = vmul.f32 %v512, 0.8
  %v517 = vadd.f32 %v273, %v515
  %v518 = vadd.f32 %v274, %v516
  %s519 = scalar_lea.vmem %s5, 64
  %v520 = vld [vmem:[%s519] sm:$0xff]
  %v521 = vld [vmem:[%s519 + $0x8] sm:$0xff]
  %v522 = vld [vmem:[%s519 + $0x10] sm:$0xff]
  %v523 = vld [vmem:[%s519 + $0x18] sm:$0xff]
  %v525 = vsel %vm191, %v517, 0
  %v528 = vsel %vm191, %v518, 0
  %530 = vmatprep.subr.mxu0 0.0
  %531 = vmatpush1.msra.mxu0 %v520
  %532 = vmatprep.subr.mxu0 0.0
  %533 = vmatpush1.msra.mxu0 %v521
  %534 = vmatprep.subr.mxu0 0.0
  %535 = vmatpush1.msra.mxu0 %v522
  %536 = vmatprep.subr.mxu0 0.0
  %537 = vmatpush1.msra.mxu0 %v523
  %538 = vmatprep.subr.mxu0 0.0
  %539 = vmatpush1.msra.mxu0 0.0
  %540 = vmatprep.subr.mxu0 0.0
  %541 = vmatpush1.msra.mxu0 0.0
  %542 = vmatprep.subr.mxu0 0.0
  %543 = vmatpush1.msra.mxu0 0.0
  %544 = vmatprep.subr.mxu0 0.0
  %545 = vmatpush1.msra.mxu0 0.0
  %546 = vmatprep.subr.mxu0 0.0
  %547 = vmatpush1.msra.mxu0 0.0
  %548 = vmatprep.subr.mxu0 0.0
  %549 = vmatpush1.msra.mxu0 0.0
  %550 = vmatprep.subr.mxu0 0.0
  %551 = vmatpush1.msra.mxu0 0.0
  %552 = vmatprep.subr.mxu0 0.0
  %553 = vmatpush1.msra.mxu0 0.0
  %554 = vmatprep.subr.mxu0 0.0
  %555 = vmatpush1.msra.mxu0 0.0
  %556 = vmatprep.subr.mxu0 0.0
  %557 = vmatpush1.msra.mxu0 0.0
  %558 = vmatprep.subr.mxu0 0.0
  %559 = vmatpush1.msra.mxu0 0.0
  %560 = vmatprep.subr.mxu0 0.0
  %561 = vmatpush1.msra.mxu0 0.0
  %562 = vmatprep.subr.mxu0 0.0
  %563 = vmatpush1.msra.mxu0 0.0
  %564 = vmatprep.subr.mxu0 0.0
  %565 = vmatpush1.msra.mxu0 0.0
  %566 = vmatprep.subr.mxu0 0.0
  %567 = vmatpush1.msra.mxu0 0.0
  %568 = vmatprep.subr.mxu0 0.0
  %569 = vmatpush1.msra.mxu0 0.0
  %570 = vmatprep.subr.mxu0 0.0
  %571 = vmatpush1.msra.mxu0 0.0
  %572 = vmatprep.subr.mxu0 0.0
  %573 = vmatpush1.msra.mxu0 0.0
  %574 = vmatprep.subr.mxu0 0.0
  %575 = vmatpush1.msra.mxu0 0.0
  %576 = vmatprep.subr.mxu0 0.0
  %577 = vmatpush1.msra.mxu0 0.0
  %578 = vmatprep.subr.mxu0 0.0
  %579 = vmatpush1.msra.mxu0 0.0
  %580 = vmatprep.subr.mxu0 0.0
  %581 = vmatpush1.msra.mxu0 0.0
  %582 = vmatprep.subr.mxu0 0.0
  %583 = vmatpush1.msra.mxu0 0.0
  %584 = vmatprep.subr.mxu0 0.0
  %585 = vmatpush1.msra.mxu0 0.0
  %586 = vmatprep.subr.mxu0 0.0
  %587 = vmatpush1.msra.mxu0 0.0
  %588 = vmatprep.subr.mxu0 0.0
  %589 = vmatpush1.msra.mxu0 0.0
  %590 = vmatprep.subr.mxu0 0.0
  %591 = vmatpush1.msra.mxu0 0.0
  %592 = vmatprep.subr.mxu0 0.0
  %593 = vmatpush1.msra.mxu0 0.0
  %594 = vmatprep.mubr.f32.mxu0 0.0
  %595 = vmatmul.mubr.f32.gmra.mrb[0].mxu0 %v525
  %v596 = vpop.f32.mrb[0].mxu0
  %v597 = vadd.f32 0.0, %v596
  %v598 = vpop.f32.mrb[0].mxu0
  %599 = vmatprep.mubr.f32.mxu0 0.0
  %600 = vmatmul.mubr.f32.gmra.mrb[0].mxu0 %v528
  %v601 = vpop.f32.mrb[0].mxu0
  %v602 = vadd.f32 0.0, %v601
  %v603 = vpop.f32.mrb[0].mxu0
  %604 = vdwg.mxu0
  %v605 = vadd.f32 %v432, %v597
  %v606 = vadd.f32 %v437, %v602
  %v608 = vlaneseq
  %v609 = vshrl.u32 %v608, 7
  %v610 = vsub.s32 0, %v609
  %v611 = vrot.slane %v186, %v610
  %v613 = vadd.f32 %v605, %v611
  %v614 = vadd.f32 %v606, %v611
  %v615 = vld [vmem:[%s4] sm:$0xff]
  %v616 = vld [vmem:[%s4 + $0x8] sm:$0xff]
  %v617 = vld [vmem:[%s4 + $0x10] sm:$0xff]
  %v618 = vld [vmem:[%s4 + $0x18] sm:$0xff]
  %v619 = vld [vmem:[%s8] sm:$0x1]
  %v620 = vld [vmem:[%s7] sm:$0xff]
  %v621 = vld [vmem:[%s7 + $0x8] sm:$0xff]
  %v622 = vld [vmem:[%s7 + $0x10] sm:$0xff]
  %v623 = vld [vmem:[%s7 + $0x18] sm:$0xff]
  %624 = vmatprep.subr.mxu0 0.0
  %625 = vmatpush1.msra.mxu0 %v615
  %626 = vmatprep.subr.mxu0 0.0
  %627 = vmatpush1.msra.mxu0 %v616
  %628 = vmatprep.subr.mxu0 0.0
  %629 = vmatpush1.msra.mxu0 %v617
  %630 = vmatprep.subr.mxu0 0.0
  %631 = vmatpush1.msra.mxu0 %v618
  %632 = vmatprep.subr.mxu0 0.0
  %633 = vmatpush1.msra.mxu0 0.0
  %634 = vmatprep.subr.mxu0 0.0
  %635 = vmatpush1.msra.mxu0 0.0
  %636 = vmatprep.subr.mxu0 0.0
  %637 = vmatpush1.msra.mxu0 0.0
  %638 = vmatprep.subr.mxu0 0.0
  %639 = vmatpush1.msra.mxu0 0.0
  %640 = vmatprep.subr.mxu0 0.0
  %641 = vmatpush1.msra.mxu0 0.0
  %642 = vmatprep.subr.mxu0 0.0
  %643 = vmatpush1.msra.mxu0 0.0
  %644 = vmatprep.subr.mxu0 0.0
  %645 = vmatpush1.msra.mxu0 0.0
  %646 = vmatprep.subr.mxu0 0.0
  %647 = vmatpush1.msra.mxu0 0.0
  %648 = vmatprep.subr.mxu0 0.0
  %649 = vmatpush1.msra.mxu0 0.0
  %650 = vmatprep.subr.mxu0 0.0
  %651 = vmatpush1.msra.mxu0 0.0
  %652 = vmatprep.subr.mxu0 0.0
  %653 = vmatpush1.msra.mxu0 0.0
  %654 = vmatprep.subr.mxu0 0.0
  %655 = vmatpush1.msra.mxu0 0.0
  %656 = vmatprep.subr.mxu0 0.0
  %657 = vmatpush1.msra.mxu0 0.0
  %658 = vmatprep.subr.mxu0 0.0
  %659 = vmatpush1.msra.mxu0 0.0
  %660 = vmatprep.subr.mxu0 0.0
  %661 = vmatpush1.msra.mxu0 0.0
  %662 = vmatprep.subr.mxu0 0.0
  %663 = vmatpush1.msra.mxu0 0.0
  %664 = vmatprep.subr.mxu0 0.0
  %665 = vmatpush1.msra.mxu0 0.0
  %666 = vmatprep.subr.mxu0 0.0
  %667 = vmatpush1.msra.mxu0 0.0
  %668 = vmatprep.subr.mxu0 0.0
  %669 = vmatpush1.msra.mxu0 0.0
  %670 = vmatprep.subr.mxu0 0.0
  %671 = vmatpush1.msra.mxu0 0.0
  %672 = vmatprep.subr.mxu0 0.0
  %673 = vmatpush1.msra.mxu0 0.0
  %674 = vmatprep.subr.mxu0 0.0
  %675 = vmatpush1.msra.mxu0 0.0
  %676 = vmatprep.subr.mxu0 0.0
  %677 = vmatpush1.msra.mxu0 0.0
  %678 = vmatprep.subr.mxu0 0.0
  %679 = vmatpush1.msra.mxu0 0.0
  %680 = vmatprep.subr.mxu0 0.0
  %681 = vmatpush1.msra.mxu0 0.0
  %682 = vmatprep.subr.mxu0 0.0
  %683 = vmatpush1.msra.mxu0 0.0
  %684 = vmatprep.subr.mxu0 0.0
  %685 = vmatpush1.msra.mxu0 0.0
  %686 = vmatprep.subr.mxu0 0.0
  %687 = vmatpush1.msra.mxu0 0.0
  %688 = vmatprep.mubr.f32.mxu0 0.0
  %689 = vmatmul.mubr.f32.gmra.mrb[0].mxu0 %v193
  %v690 = vpop.f32.mrb[0].mxu0
  %v691 = vadd.f32 0.0, %v690
  %v692 = vpop.f32.mrb[0].mxu0
  %693 = vmatprep.mubr.f32.mxu0 0.0
  %694 = vmatmul.mubr.f32.gmra.mrb[0].mxu0 %v196
  %v695 = vpop.f32.mrb[0].mxu0
  %v696 = vadd.f32 0.0, %v695
  %v697 = vpop.f32.mrb[0].mxu0
  %698 = vdwg.mxu0
  %v699 = vmul.f32 %v691, 0.8
  %v700 = vmul.f32 %v696, 0.8
  %v701 = vadd.f32 %v273, %v699
  %v702 = vadd.f32 %v274, %v700
  %s703 = scalar_lea.vmem %s7, 32
  %v704 = vld [vmem:[%s703] sm:$0xff]
  %v705 = vld [vmem:[%s703 + $0x8] sm:$0xff]
  %v706 = vld [vmem:[%s703 + $0x10] sm:$0xff]
  %v707 = vld [vmem:[%s703 + $0x18] sm:$0xff]
  %v709 = vsel %vm191, %v701, 0
  %v712 = vsel %vm191, %v702, 0
  %714 = vmatprep.subr.mxu0 0.0
  %715 = vmatpush1.msra.mxu0 %v704
  %716 = vmatprep.subr.mxu0 0.0
  %717 = vmatpush1.msra.mxu0 %v705
  %718 = vmatprep.subr.mxu0 0.0
  %719 = vmatpush1.msra.mxu0 %v706
  %720 = vmatprep.subr.mxu0 0.0
  %721 = vmatpush1.msra.mxu0 %v707
  %722 = vmatprep.subr.mxu0 0.0
  %723 = vmatpush1.msra.mxu0 0.0
  %724 = vmatprep.subr.mxu0 0.0
  %725 = vmatpush1.msra.mxu0 0.0
  %726 = vmatprep.subr.mxu0 0.0
  %727 = vmatpush1.msra.mxu0 0.0
  %728 = vmatprep.subr.mxu0 0.0
  %729 = vmatpush1.msra.mxu0 0.0
  %730 = vmatprep.subr.mxu0 0.0
  %731 = vmatpush1.msra.mxu0 0.0
  %732 = vmatprep.subr.mxu0 0.0
  %733 = vmatpush1.msra.mxu0 0.0
  %734 = vmatprep.subr.mxu0 0.0
  %735 = vmatpush1.msra.mxu0 0.0
  %736 = vmatprep.subr.mxu0 0.0
  %737 = vmatpush1.msra.mxu0 0.0
  %738 = vmatprep.subr.mxu0 0.0
  %739 = vmatpush1.msra.mxu0 0.0
  %740 = vmatprep.subr.mxu0 0.0
  %741 = vmatpush1.msra.mxu0 0.0
  %742 = vmatprep.subr.mxu0 0.0
  %743 = vmatpush1.msra.mxu0 0.0
  %744 = vmatprep.subr.mxu0 0.0
  %745 = vmatpush1.msra.mxu0 0.0
  %746 = vmatprep.subr.mxu0 0.0
  %747 = vmatpush1.msra.mxu0 0.0
  %748 = vmatprep.subr.mxu0 0.0
  %749 = vmatpush1.msra.mxu0 0.0
  %750 = vmatprep.subr.mxu0 0.0
  %751 = vmatpush1.msra.mxu0 0.0
  %752 = vmatprep.subr.mxu0 0.0
  %753 = vmatpush1.msra.mxu0 0.0
  %754 = vmatprep.subr.mxu0 0.0
  %755 = vmatpush1.msra.mxu0 0.0
  %756 = vmatprep.subr.mxu0 0.0
  %757 = vmatpush1.msra.mxu0 0.0
  %758 = vmatprep.subr.mxu0 0.0
  %759 = vmatpush1.msra.mxu0 0.0
  %760 = vmatprep.subr.mxu0 0.0
  %761 = vmatpush1.msra.mxu0 0.0
  %762 = vmatprep.subr.mxu0 0.0
  %763 = vmatpush1.msra.mxu0 0.0
  %764 = vmatprep.subr.mxu0 0.0
  %765 = vmatpush1.msra.mxu0 0.0
  %766 = vmatprep.subr.mxu0 0.0
  %767 = vmatpush1.msra.mxu0 0.0
  %768 = vmatprep.subr.mxu0 0.0
  %769 = vmatpush1.msra.mxu0 0.0
  %770 = vmatprep.subr.mxu0 0.0
  %771 = vmatpush1.msra.mxu0 0.0
  %772 = vmatprep.subr.mxu0 0.0
  %773 = vmatpush1.msra.mxu0 0.0
  %774 = vmatprep.subr.mxu0 0.0
  %775 = vmatpush1.msra.mxu0 0.0
  %776 = vmatprep.subr.mxu0 0.0
  %777 = vmatpush1.msra.mxu0 0.0
  %778 = vmatprep.mubr.f32.mxu0 0.0
  %779 = vmatmul.mubr.f32.gmra.mrb[0].mxu0 %v709
  %v780 = vpop.f32.mrb[0].mxu0
  %v781 = vadd.f32 0.0, %v780
  %v782 = vpop.f32.mrb[0].mxu0
  %783 = vmatprep.mubr.f32.mxu0 0.0
  %784 = vmatmul.mubr.f32.gmra.mrb[0].mxu0 %v712
  %v785 = vpop.f32.mrb[0].mxu0
  %v786 = vadd.f32 0.0, %v785
  %v787 = vpop.f32.mrb[0].mxu0
  %788 = vdwg.mxu0
  %789 = vmatprep.subr.mxu0 0.0
  %790 = vmatpush1.msra.mxu0 %v620
  %791 = vmatprep.subr.mxu0 0.0
  %792 = vmatpush1.msra.mxu0 %v621
  %793 = vmatprep.subr.mxu0 0.0
  %794 = vmatpush1.msra.mxu0 %v622
  %795 = vmatprep.subr.mxu0 0.0
  %796 = vmatpush1.msra.mxu0 %v623
  %797 = vmatprep.subr.mxu0 0.0
  %798 = vmatpush1.msra.mxu0 0.0
  %799 = vmatprep.subr.mxu0 0.0
  %800 = vmatpush1.msra.mxu0 0.0
  %801 = vmatprep.subr.mxu0 0.0
  %802 = vmatpush1.msra.mxu0 0.0
  %803 = vmatprep.subr.mxu0 0.0
  %804 = vmatpush1.msra.mxu0 0.0
  %805 = vmatprep.subr.mxu0 0.0
  %806 = vmatpush1.msra.mxu0 0.0
  %807 = vmatprep.subr.mxu0 0.0
  %808 = vmatpush1.msra.mxu0 0.0
  %809 = vmatprep.subr.mxu0 0.0
  %810 = vmatpush1.msra.mxu0 0.0
  %811 = vmatprep.subr.mxu0 0.0
  %812 = vmatpush1.msra.mxu0 0.0
  %813 = vmatprep.subr.mxu0 0.0
  %814 = vmatpush1.msra.mxu0 0.0
  %815 = vmatprep.subr.mxu0 0.0
  %816 = vmatpush1.msra.mxu0 0.0
  %817 = vmatprep.subr.mxu0 0.0
  %818 = vmatpush1.msra.mxu0 0.0
  %819 = vmatprep.subr.mxu0 0.0
  %820 = vmatpush1.msra.mxu0 0.0
  %821 = vmatprep.subr.mxu0 0.0
  %822 = vmatpush1.msra.mxu0 0.0
  %823 = vmatprep.subr.mxu0 0.0
  %824 = vmatpush1.msra.mxu0 0.0
  %825 = vmatprep.subr.mxu0 0.0
  %826 = vmatpush1.msra.mxu0 0.0
  %827 = vmatprep.subr.mxu0 0.0
  %828 = vmatpush1.msra.mxu0 0.0
  %829 = vmatprep.subr.mxu0 0.0
  %830 = vmatpush1.msra.mxu0 0.0
  %831 = vmatprep.subr.mxu0 0.0
  %832 = vmatpush1.msra.mxu0 0.0
  %833 = vmatprep.subr.mxu0 0.0
  %834 = vmatpush1.msra.mxu0 0.0
  %835 = vmatprep.subr.mxu0 0.0
  %836 = vmatpush1.msra.mxu0 0.0
  %837 = vmatprep.subr.mxu0 0.0
  %838 = vmatpush1.msra.mxu0 0.0
  %839 = vmatprep.subr.mxu0 0.0
  %840 = vmatpush1.msra.mxu0 0.0
  %841 = vmatprep.subr.mxu0 0.0
  %842 = vmatpush1.msra.mxu0 0.0
  %843 = vmatprep.subr.mxu0 0.0
  %844 = vmatpush1.msra.mxu0 0.0
  %845 = vmatprep.subr.mxu0 0.0
  %846 = vmatpush1.msra.mxu0 0.0
  %847 = vmatprep.subr.mxu0 0.0
  %848 = vmatpush1.msra.mxu0 0.0
  %849 = vmatprep.subr.mxu0 0.0
  %850 = vmatpush1.msra.mxu0 0.0
  %851 = vmatprep.subr.mxu0 0.0
  %852 = vmatpush1.msra.mxu0 0.0
  %853 = vmatprep.mubr.f32.mxu0 0.0
  %854 = vmatmul.mubr.f32.gmra.mrb[0].mxu0 %v193
  %v855 = vpop.f32.mrb[0].mxu0
  %v856 = vadd.f32 %v781, %v855
  %v857 = vpop.f32.mrb[0].mxu0
  %858 = vmatprep.mubr.f32.mxu0 0.0
  %859 = vmatmul.mubr.f32.gmra.mrb[0].mxu0 %v196
  %v860 = vpop.f32.mrb[0].mxu0
  %v861 = vadd.f32 %v786, %v860
  %v862 = vpop.f32.mrb[0].mxu0
  %863 = vdwg.mxu0
  %864 = vmatprep.subr.mxu0 0.0
  %865 = vmatpush1.msra.mxu0 %v615
  %866 = vmatprep.subr.mxu0 0.0
  %867 = vmatpush1.msra.mxu0 %v616
  %868 = vmatprep.subr.mxu0 0.0
  %869 = vmatpush1.msra.mxu0 %v617
  %870 = vmatprep.subr.mxu0 0.0
  %871 = vmatpush1.msra.mxu0 %v618
  %872 = vmatprep.subr.mxu0 0.0
  %873 = vmatpush1.msra.mxu0 0.0
  %874 = vmatprep.subr.mxu0 0.0
  %875 = vmatpush1.msra.mxu0 0.0
  %876 = vmatprep.subr.mxu0 0.0
  %877 = vmatpush1.msra.mxu0 0.0
  %878 = vmatprep.subr.mxu0 0.0
  %879 = vmatpush1.msra.mxu0 0.0
  %880 = vmatprep.subr.mxu0 0.0
  %881 = vmatpush1.msra.mxu0 0.0
  %882 = vmatprep.subr.mxu0 0.0
  %883 = vmatpush1.msra.mxu0 0.0
  %884 = vmatprep.subr.mxu0 0.0
  %885 = vmatpush1.msra.mxu0 0.0
  %886 = vmatprep.subr.mxu0 0.0
  %887 = vmatpush1.msra.mxu0 0.0
  %888 = vmatprep.subr.mxu0 0.0
  %889 = vmatpush1.msra.mxu0 0.0
  %890 = vmatprep.subr.mxu0 0.0
  %891 = vmatpush1.msra.mxu0 0.0
  %892 = vmatprep.subr.mxu0 0.0
  %893 = vmatpush1.msra.mxu0 0.0
  %894 = vmatprep.subr.mxu0 0.0
  %895 = vmatpush1.msra.mxu0 0.0
  %896 = vmatprep.subr.mxu0 0.0
  %897 = vmatpush1.msra.mxu0 0.0
  %898 = vmatprep.subr.mxu0 0.0
  %899 = vmatpush1.msra.mxu0 0.0
  %900 = vmatprep.subr.mxu0 0.0
  %901 = vmatpush1.msra.mxu0 0.0
  %902 = vmatprep.subr.mxu0 0.0
  %903 = vmatpush1.msra.mxu0 0.0
  %904 = vmatprep.subr.mxu0 0.0
  %905 = vmatpush1.msra.mxu0 0.0
  %906 = vmatprep.subr.mxu0 0.0
  %907 = vmatpush1.msra.mxu0 0.0
  %908 = vmatprep.subr.mxu0 0.0
  %909 = vmatpush1.msra.mxu0 0.0
  %910 = vmatprep.subr.mxu0 0.0
  %911 = vmatpush1.msra.mxu0 0.0
  %912 = vmatprep.subr.mxu0 0.0
  %913 = vmatpush1.msra.mxu0 0.0
  %914 = vmatprep.subr.mxu0 0.0
  %915 = vmatpush1.msra.mxu0 0.0
  %916 = vmatprep.subr.mxu0 0.0
  %917 = vmatpush1.msra.mxu0 0.0
  %918 = vmatprep.subr.mxu0 0.0
  %919 = vmatpush1.msra.mxu0 0.0
  %920 = vmatprep.subr.mxu0 0.0
  %921 = vmatpush1.msra.mxu0 0.0
  %922 = vmatprep.subr.mxu0 0.0
  %923 = vmatpush1.msra.mxu0 0.0
  %924 = vmatprep.subr.mxu0 0.0
  %925 = vmatpush1.msra.mxu0 0.0
  %926 = vmatprep.subr.mxu0 0.0
  %927 = vmatpush1.msra.mxu0 0.0
  %928 = vmatprep.mubr.f32.mxu0 0.0
  %929 = vmatmul.mubr.f32.gmra.mrb[0].mxu0 %v709
  %v930 = vpop.f32.mrb[0].mxu0
  %v931 = vadd.f32 0.0, %v930
  %v932 = vpop.f32.mrb[0].mxu0
  %933 = vmatprep.mubr.f32.mxu0 0.0
  %934 = vmatmul.mubr.f32.gmra.mrb[0].mxu0 %v712
  %v935 = vpop.f32.mrb[0].mxu0
  %v936 = vadd.f32 0.0, %v935
  %v937 = vpop.f32.mrb[0].mxu0
  %938 = vdwg.mxu0
  %v939 = vmul.f32 %v931, 0.8
  %v940 = vmul.f32 %v936, 0.8
  %v941 = vadd.f32 %v273, %v939
  %v942 = vadd.f32 %v274, %v940
  %s943 = scalar_lea.vmem %s7, 64
  %v944 = vld [vmem:[%s943] sm:$0xff]
  %v945 = vld [vmem:[%s943 + $0x8] sm:$0xff]
  %v946 = vld [vmem:[%s943 + $0x10] sm:$0xff]
  %v947 = vld [vmem:[%s943 + $0x18] sm:$0xff]
  %v949 = vsel %vm191, %v941, 0
  %v952 = vsel %vm191, %v942, 0
  %954 = vmatprep.subr.mxu0 0.0
  %955 = vmatpush1.msra.mxu0 %v944
  %956 = vmatprep.subr.mxu0 0.0
  %957 = vmatpush1.msra.mxu0 %v945
  %958 = vmatprep.subr.mxu0 0.0
  %959 = vmatpush1.msra.mxu0 %v946
  %960 = vmatprep.subr.mxu0 0.0
  %961 = vmatpush1.msra.mxu0 %v947
  %962 = vmatprep.subr.mxu0 0.0
  %963 = vmatpush1.msra.mxu0 0.0
  %964 = vmatprep.subr.mxu0 0.0
  %965 = vmatpush1.msra.mxu0 0.0
  %966 = vmatprep.subr.mxu0 0.0
  %967 = vmatpush1.msra.mxu0 0.0
  %968 = vmatprep.subr.mxu0 0.0
  %969 = vmatpush1.msra.mxu0 0.0
  %970 = vmatprep.subr.mxu0 0.0
  %971 = vmatpush1.msra.mxu0 0.0
  %972 = vmatprep.subr.mxu0 0.0
  %973 = vmatpush1.msra.mxu0 0.0
  %974 = vmatprep.subr.mxu0 0.0
  %975 = vmatpush1.msra.mxu0 0.0
  %976 = vmatprep.subr.mxu0 0.0
  %977 = vmatpush1.msra.mxu0 0.0
  %978 = vmatprep.subr.mxu0 0.0
  %979 = vmatpush1.msra.mxu0 0.0
  %980 = vmatprep.subr.mxu0 0.0
  %981 = vmatpush1.msra.mxu0 0.0
  %982 = vmatprep.subr.mxu0 0.0
  %983 = vmatpush1.msra.mxu0 0.0
  %984 = vmatprep.subr.mxu0 0.0
  %985 = vmatpush1.msra.mxu0 0.0
  %986 = vmatprep.subr.mxu0 0.0
  %987 = vmatpush1.msra.mxu0 0.0
  %988 = vmatprep.subr.mxu0 0.0
  %989 = vmatpush1.msra.mxu0 0.0
  %990 = vmatprep.subr.mxu0 0.0
  %991 = vmatpush1.msra.mxu0 0.0
  %992 = vmatprep.subr.mxu0 0.0
  %993 = vmatpush1.msra.mxu0 0.0
  %994 = vmatprep.subr.mxu0 0.0
  %995 = vmatpush1.msra.mxu0 0.0
  %996 = vmatprep.subr.mxu0 0.0
  %997 = vmatpush1.msra.mxu0 0.0
  %998 = vmatprep.subr.mxu0 0.0
  %999 = vmatpush1.msra.mxu0 0.0
  %1000 = vmatprep.subr.mxu0 0.0
  %1001 = vmatpush1.msra.mxu0 0.0
  %1002 = vmatprep.subr.mxu0 0.0
  %1003 = vmatpush1.msra.mxu0 0.0
  %1004 = vmatprep.subr.mxu0 0.0
  %1005 = vmatpush1.msra.mxu0 0.0
  %1006 = vmatprep.subr.mxu0 0.0
  %1007 = vmatpush1.msra.mxu0 0.0
  %1008 = vmatprep.subr.mxu0 0.0
  %1009 = vmatpush1.msra.mxu0 0.0
  %1010 = vmatprep.subr.mxu0 0.0
  %1011 = vmatpush1.msra.mxu0 0.0
  %1012 = vmatprep.subr.mxu0 0.0
  %1013 = vmatpush1.msra.mxu0 0.0
  %1014 = vmatprep.subr.mxu0 0.0
  %1015 = vmatpush1.msra.mxu0 0.0
  %1016 = vmatprep.subr.mxu0 0.0
  %1017 = vmatpush1.msra.mxu0 0.0
  %1018 = vmatprep.mubr.f32.mxu0 0.0
  %1019 = vmatmul.mubr.f32.gmra.mrb[0].mxu0 %v949
  %v1020 = vpop.f32.mrb[0].mxu0
  %v1021 = vadd.f32 0.0, %v1020
  %v1022 = vpop.f32.mrb[0].mxu0
  %1023 = vmatprep.mubr.f32.mxu0 0.0
  %1024 = vmatmul.mubr.f32.gmra.mrb[0].mxu0 %v952
  %v1025 = vpop.f32.mrb[0].mxu0
  %v1026 = vadd.f32 0.0, %v1025
  %v1027 = vpop.f32.mrb[0].mxu0
  %1028 = vdwg.mxu0
  %v1029 = vadd.f32 %v856, %v1021
  %v1030 = vadd.f32 %v861, %v1026
  %v1032 = vlaneseq
  %v1033 = vshrl.u32 %v1032, 7
  %v1034 = vsub.s32 0, %v1033
  %v1035 = vrot.slane %v619, %v1034
  %v1037 = vadd.f32 %v1029, %v1035
  %v1038 = vadd.f32 %v1030, %v1035
  %v1039 = vadd.f32 %v613, %v1037
  %v1040 = vadd.f32 %v614, %v1038
  %v1041 = vadd.f32 %v1039, %v174
  %v1042 = vadd.f32 %v1040, %v179
  %v1043 = vld [vmem:[%s9] sm:$0x1]
  %v1044 = vld [vmem:[%s10] sm:$0x1]
  %v1045 = vsel %vm191, %v1041, 0.0
  %1046 = vadd.xlane.f32.xlu0 %v1045
  %v1047 = vpop.xlane.xlu0 %1046
  %v1048 = vsel %vm191, %v1042, 0.0
  %1049 = vadd.xlane.f32.xlu0 %v1048
  %v1050 = vpop.xlane.xlu0 %1049
  %v1051 = vrcp.pop 32.0
  %v1052 = vmul.f32 %v1047, %v1051
  %v1053 = vmul.f32 %v1050, %v1051
  %v1054 = vsub.f32 %v1041, %v1052
  %v1055 = vsub.f32 %v1042, %v1053
  %v1056 = vmul.f32 %v1054, %v1054
  %v1057 = vmul.f32 %v1055, %v1055
  %v1058 = vsel %vm191, %v1056, 0.0
  %1059 = vadd.xlane.f32.xlu0 %v1058
  %v1060 = vpop.xlane.xlu0 %1059
  %v1061 = vsel %vm191, %v1057, 0.0
  %1062 = vadd.xlane.f32.xlu0 %v1061
  %v1063 = vpop.xlane.xlu0 %1062
  %v1064 = vmul.f32 %v1060, %v1051
  %v1065 = vmul.f32 %v1063, %v1051
  %v1066 = vadd.f32 %v1064, 1e-06
  %v1067 = vadd.f32 %v1065, 1e-06
  %v1068 = vrsqrt.pop %v1066
  %v1069 = vrsqrt.pop %v1067
  %v1070 = vmul.f32 %v1054, %v1068
  %v1071 = vmul.f32 %v1055, %v1069
  %v1073 = vlaneseq
  %v1074 = vshrl.u32 %v1073, 7
  %v1075 = vsub.s32 0, %v1074
  %v1076 = vrot.slane %v1043, %v1075
  %v1078 = vmul.f32 %v1070, %v1076
  %v1079 = vmul.f32 %v1071, %v1076
  %v1081 = vlaneseq
  %v1082 = vshrl.u32 %v1081, 7
  %v1083 = vsub.s32 0, %v1082
  %v1084 = vrot.slane %v1044, %v1083
  %v1086 = vadd.f32 %v1078, %v1084
  %v1087 = vadd.f32 %v1079, %v1084
  %v1088 = vld [vmem:[%s11] sm:$0xff]
  %v1089 = vadd.f32 %v1086, %v1088
  %v1090 = vadd.f32 %v1087, %v1088
  %v1091 = vld [vmem:[%s12] sm:$0x3]
  %v1092 = vld [vmem:[%s13] sm:$0xff]
  %v1093 = vld [vmem:[%s13 + $0x8] sm:$0xff]
  %v1094 = vld [vmem:[%s13 + $0x10] sm:$0xff]
  %v1095 = vld [vmem:[%s13 + $0x18] sm:$0xff]
  %v1097 = vsel %vm191, %v1089, 0
  %v1100 = vsel %vm191, %v1090, 0
  %1102 = vmatprep.subr.mxu0 0.0
  %1103 = vmatpush1.msra.mxu0 %v1092
  %1104 = vmatprep.subr.mxu0 0.0
  %1105 = vmatpush1.msra.mxu0 %v1093
  %1106 = vmatprep.subr.mxu0 0.0
  %1107 = vmatpush1.msra.mxu0 %v1094
  %1108 = vmatprep.subr.mxu0 0.0
  %1109 = vmatpush1.msra.mxu0 %v1095
  %1110 = vmatprep.subr.mxu0 0.0
  %1111 = vmatpush1.msra.mxu0 0.0
  %1112 = vmatprep.subr.mxu0 0.0
  %1113 = vmatpush1.msra.mxu0 0.0
  %1114 = vmatprep.subr.mxu0 0.0
  %1115 = vmatpush1.msra.mxu0 0.0
  %1116 = vmatprep.subr.mxu0 0.0
  %1117 = vmatpush1.msra.mxu0 0.0
  %1118 = vmatprep.subr.mxu0 0.0
  %1119 = vmatpush1.msra.mxu0 0.0
  %1120 = vmatprep.subr.mxu0 0.0
  %1121 = vmatpush1.msra.mxu0 0.0
  %1122 = vmatprep.subr.mxu0 0.0
  %1123 = vmatpush1.msra.mxu0 0.0
  %1124 = vmatprep.subr.mxu0 0.0
  %1125 = vmatpush1.msra.mxu0 0.0
  %1126 = vmatprep.subr.mxu0 0.0
  %1127 = vmatpush1.msra.mxu0 0.0
  %1128 = vmatprep.subr.mxu0 0.0
  %1129 = vmatpush1.msra.mxu0 0.0
  %1130 = vmatprep.subr.mxu0 0.0
  %1131 = vmatpush1.msra.mxu0 0.0
  %1132 = vmatprep.subr.mxu0 0.0
  %1133 = vmatpush1.msra.mxu0 0.0
  %1134 = vmatprep.subr.mxu0 0.0
  %1135 = vmatpush1.msra.mxu0 0.0
  %1136 = vmatprep.subr.mxu0 0.0
  %1137 = vmatpush1.msra.mxu0 0.0
  %1138 = vmatprep.subr.mxu0 0.0
  %1139 = vmatpush1.msra.mxu0 0.0
  %1140 = vmatprep.subr.mxu0 0.0
  %1141 = vmatpush1.msra.mxu0 0.0
  %1142 = vmatprep.subr.mxu0 0.0
  %1143 = vmatpush1.msra.mxu0 0.0
  %1144 = vmatprep.subr.mxu0 0.0
  %1145 = vmatpush1.msra.mxu0 0.0
  %1146 = vmatprep.subr.mxu0 0.0
  %1147 = vmatpush1.msra.mxu0 0.0
  %1148 = vmatprep.subr.mxu0 0.0
  %1149 = vmatpush1.msra.mxu0 0.0
  %1150 = vmatprep.subr.mxu0 0.0
  %1151 = vmatpush1.msra.mxu0 0.0
  %1152 = vmatprep.subr.mxu0 0.0
  %1153 = vmatpush1.msra.mxu0 0.0
  %1154 = vmatprep.subr.mxu0 0.0
  %1155 = vmatpush1.msra.mxu0 0.0
  %1156 = vmatprep.subr.mxu0 0.0
  %1157 = vmatpush1.msra.mxu0 0.0
  %1158 = vmatprep.subr.mxu0 0.0
  %1159 = vmatpush1.msra.mxu0 0.0
  %1160 = vmatprep.subr.mxu0 0.0
  %1161 = vmatpush1.msra.mxu0 0.0
  %1162 = vmatprep.subr.mxu0 0.0
  %1163 = vmatpush1.msra.mxu0 0.0
  %1164 = vmatprep.subr.mxu0 0.0
  %1165 = vmatpush1.msra.mxu0 0.0
  %1166 = vmatprep.mubr.f32.mxu0 0.0
  %1167 = vmatmul.mubr.f32.gmra.mrb[0].mxu0 %v1097
  %v1168 = vpop.f32.mrb[0].mxu0
  %v1169 = vadd.f32 0.0, %v1168
  %v1170 = vpop.f32.mrb[0].mxu0
  %1171 = vmatprep.mubr.f32.mxu0 0.0
  %1172 = vmatmul.mubr.f32.gmra.mrb[0].mxu0 %v1100
  %v1173 = vpop.f32.mrb[0].mxu0
  %v1174 = vadd.f32 0.0, %v1173
  %v1175 = vpop.f32.mrb[0].mxu0
  %1176 = vdwg.mxu0
  %1178 = vrot.lane.b32.xlu0 %v1169, 96
  %v1179 = vpop.permute.xlu0 %1178
  %v1180 = vsel %vm100, %v1169, 0
  %v1182 = vsel %vm100, %v1179, 0
  %1184 = vmatprep.subr.mxu0 0.0
  %1185 = vmatpush1.xpose.msra.mxu0 %v1182
  %1186 = vmatprep.subr.mxu0 0.0
  %1187 = vmatpush1.xpose.msra.mxu0 0.0
  %1188 = vmatprep.subr.mxu0 0.0
  %1189 = vmatpush1.xpose.msra.mxu0 0.0
  %1190 = vmatprep.subr.mxu0 0.0
  %1191 = vmatpush1.xpose.msra.mxu0 0.0
  %1192 = vmatprep.subr.mxu0 0.0
  %1193 = vmatpush1.xpose.msra.mxu0 0.0
  %1194 = vmatprep.subr.mxu0 0.0
  %1195 = vmatpush1.xpose.msra.mxu0 0.0
  %1196 = vmatprep.subr.mxu0 0.0
  %1197 = vmatpush1.xpose.msra.mxu0 0.0
  %1198 = vmatprep.subr.mxu0 0.0
  %1199 = vmatpush1.xpose.msra.mxu0 0.0
  %1200 = vmatprep.subr.mxu0 0.0
  %1201 = vmatpush1.xpose.msra.mxu0 0.0
  %1202 = vmatprep.subr.mxu0 0.0
  %1203 = vmatpush1.xpose.msra.mxu0 0.0
  %1204 = vmatprep.subr.mxu0 0.0
  %1205 = vmatpush1.xpose.msra.mxu0 0.0
  %1206 = vmatprep.subr.mxu0 0.0
  %1207 = vmatpush1.xpose.msra.mxu0 0.0
  %1208 = vmatprep.subr.mxu0 0.0
  %1209 = vmatpush1.xpose.msra.mxu0 0.0
  %1210 = vmatprep.subr.mxu0 0.0
  %1211 = vmatpush1.xpose.msra.mxu0 0.0
  %1212 = vmatprep.subr.mxu0 0.0
  %1213 = vmatpush1.xpose.msra.mxu0 0.0
  %1214 = vmatprep.subr.mxu0 0.0
  %1215 = vmatpush1.xpose.msra.mxu0 0.0
  %1216 = vmatprep.subr.mxu0 0.0
  %1217 = vmatpush1.xpose.msra.mxu0 0.0
  %1218 = vmatprep.subr.mxu0 0.0
  %1219 = vmatpush1.xpose.msra.mxu0 0.0
  %1220 = vmatprep.subr.mxu0 0.0
  %1221 = vmatpush1.xpose.msra.mxu0 0.0
  %1222 = vmatprep.subr.mxu0 0.0
  %1223 = vmatpush1.xpose.msra.mxu0 0.0
  %1224 = vmatprep.subr.mxu0 0.0
  %1225 = vmatpush1.xpose.msra.mxu0 0.0
  %1226 = vmatprep.subr.mxu0 0.0
  %1227 = vmatpush1.xpose.msra.mxu0 0.0
  %1228 = vmatprep.subr.mxu0 0.0
  %1229 = vmatpush1.xpose.msra.mxu0 0.0
  %1230 = vmatprep.subr.mxu0 0.0
  %1231 = vmatpush1.xpose.msra.mxu0 0.0
  %1232 = vmatprep.subr.mxu0 0.0
  %1233 = vmatpush1.xpose.msra.mxu0 0.0
  %1234 = vmatprep.subr.mxu0 0.0
  %1235 = vmatpush1.xpose.msra.mxu0 0.0
  %1236 = vmatprep.subr.mxu0 0.0
  %1237 = vmatpush1.xpose.msra.mxu0 0.0
  %1238 = vmatprep.subr.mxu0 0.0
  %1239 = vmatpush1.xpose.msra.mxu0 0.0
  %1240 = vmatprep.subr.mxu0 0.0
  %1241 = vmatpush1.xpose.msra.mxu0 0.0
  %1242 = vmatprep.subr.mxu0 0.0
  %1243 = vmatpush1.xpose.msra.mxu0 0.0
  %1244 = vmatprep.subr.mxu0 0.0
  %1245 = vmatpush1.xpose.msra.mxu0 0.0
  %1246 = vmatprep.subr.mxu0 0.0
  %1247 = vmatpush1.xpose.msra.mxu0 0.0
  %1248 = vmatprep.mubr.f32.mxu0 0.0
  %1249 = vmatmul.mubr.f32.gmra.mrb[0].mxu0 %v1180
  %v1250 = vpop.f32.mrb[0].mxu0
  %v1251 = vadd.f32 0.0, %v1250
  %v1252 = vpop.f32.mrb[0].mxu0
  %1253 = vdwg.mxu0
  %v1254 = vmul.f32 %v1251, 0.25
  %vm1255 = vcmp.gt.f32.partialorder %v1091, 0.0
  %v1256 = vsel %vm1255, 1, 0
  %v1257 = vlaneseq
  %v1258 = vshrl.u32 %v1257, 7
  %v1259 = vsub.s32 0, %v1258
  %v1260 = vrot.slane %v1256, %v1259
  %vm1261 = vcmp.eq.s32.totalorder %v1260, 1
  %v1262 = vsel %vm1261, %v1254, -1e+09
  %vm1263 = vcmask 64512
  %v1264 = vsel %vm1263, %v1262, -inf
  %1265 = vmax.xlane.f32.xlu0 %v1264
  %v1266 = vpop.xlane.xlu0 %1265
  %v1267 = vsub.f32 %v1262, %v1266
  %v1268 = vmul.f32 %v1267, 1.442695
  %v1269 = vpow.pop %v1268
  %v1270 = vsel %vm1263, %v1269, 0.0
  %1271 = vadd.xlane.f32.xlu0 %v1270
  %v1272 = vpop.xlane.xlu0 %1271
  %v1273 = vrcp.pop %v1272
  %v1274 = vmul.f32 %v1269, %v1273
  %1275 = vrot.lane.b32.xlu0 %v1169, 112
  %v1276 = vpop.permute.xlu0 %1275
  %1277 = vrot.lane.b32.xlu0 %v1169, 80
  %v1278 = vpop.permute.xlu0 %1277
  %v1279 = vsel %vm100, %v1276, 0
  %v1281 = vsel %vm100, %v1278, 0
  %1283 = vmatprep.subr.mxu0 0.0
  %1284 = vmatpush1.xpose.msra.mxu0 %v1281
  %1285 = vmatprep.subr.mxu0 0.0
  %1286 = vmatpush1.xpose.msra.mxu0 0.0
  %1287 = vmatprep.subr.mxu0 0.0
  %1288 = vmatpush1.xpose.msra.mxu0 0.0
  %1289 = vmatprep.subr.mxu0 0.0
  %1290 = vmatpush1.xpose.msra.mxu0 0.0
  %1291 = vmatprep.subr.mxu0 0.0
  %1292 = vmatpush1.xpose.msra.mxu0 0.0
  %1293 = vmatprep.subr.mxu0 0.0
  %1294 = vmatpush1.xpose.msra.mxu0 0.0
  %1295 = vmatprep.subr.mxu0 0.0
  %1296 = vmatpush1.xpose.msra.mxu0 0.0
  %1297 = vmatprep.subr.mxu0 0.0
  %1298 = vmatpush1.xpose.msra.mxu0 0.0
  %1299 = vmatprep.subr.mxu0 0.0
  %1300 = vmatpush1.xpose.msra.mxu0 0.0
  %1301 = vmatprep.subr.mxu0 0.0
  %1302 = vmatpush1.xpose.msra.mxu0 0.0
  %1303 = vmatprep.subr.mxu0 0.0
  %1304 = vmatpush1.xpose.msra.mxu0 0.0
  %1305 = vmatprep.subr.mxu0 0.0
  %1306 = vmatpush1.xpose.msra.mxu0 0.0
  %1307 = vmatprep.subr.mxu0 0.0
  %1308 = vmatpush1.xpose.msra.mxu0 0.0
  %1309 = vmatprep.subr.mxu0 0.0
  %1310 = vmatpush1.xpose.msra.mxu0 0.0
  %1311 = vmatprep.subr.mxu0 0.0
  %1312 = vmatpush1.xpose.msra.mxu0 0.0
  %1313 = vmatprep.subr.mxu0 0.0
  %1314 = vmatpush1.xpose.msra.mxu0 0.0
  %1315 = vmatprep.subr.mxu0 0.0
  %1316 = vmatpush1.xpose.msra.mxu0 0.0
  %1317 = vmatprep.subr.mxu0 0.0
  %1318 = vmatpush1.xpose.msra.mxu0 0.0
  %1319 = vmatprep.subr.mxu0 0.0
  %1320 = vmatpush1.xpose.msra.mxu0 0.0
  %1321 = vmatprep.subr.mxu0 0.0
  %1322 = vmatpush1.xpose.msra.mxu0 0.0
  %1323 = vmatprep.subr.mxu0 0.0
  %1324 = vmatpush1.xpose.msra.mxu0 0.0
  %1325 = vmatprep.subr.mxu0 0.0
  %1326 = vmatpush1.xpose.msra.mxu0 0.0
  %1327 = vmatprep.subr.mxu0 0.0
  %1328 = vmatpush1.xpose.msra.mxu0 0.0
  %1329 = vmatprep.subr.mxu0 0.0
  %1330 = vmatpush1.xpose.msra.mxu0 0.0
  %1331 = vmatprep.subr.mxu0 0.0
  %1332 = vmatpush1.xpose.msra.mxu0 0.0
  %1333 = vmatprep.subr.mxu0 0.0
  %1334 = vmatpush1.xpose.msra.mxu0 0.0
  %1335 = vmatprep.subr.mxu0 0.0
  %1336 = vmatpush1.xpose.msra.mxu0 0.0
  %1337 = vmatprep.subr.mxu0 0.0
  %1338 = vmatpush1.xpose.msra.mxu0 0.0
  %1339 = vmatprep.subr.mxu0 0.0
  %1340 = vmatpush1.xpose.msra.mxu0 0.0
  %1341 = vmatprep.subr.mxu0 0.0
  %1342 = vmatpush1.xpose.msra.mxu0 0.0
  %1343 = vmatprep.subr.mxu0 0.0
  %1344 = vmatpush1.xpose.msra.mxu0 0.0
  %1345 = vmatprep.subr.mxu0 0.0
  %1346 = vmatpush1.xpose.msra.mxu0 0.0
  %1347 = vmatprep.mubr.f32.mxu0 0.0
  %1348 = vmatmul.mubr.f32.gmra.mrb[0].mxu0 %v1279
  %v1349 = vpop.f32.mrb[0].mxu0
  %v1350 = vadd.f32 0.0, %v1349
  %v1351 = vpop.f32.mrb[0].mxu0
  %1352 = vdwg.mxu0
  %v1353 = vmul.f32 %v1350, 0.25
  %v1354 = vsel %vm1261, %v1353, -1e+09
  %v1355 = vsel %vm1263, %v1354, -inf
  %1356 = vmax.xlane.f32.xlu0 %v1355
  %v1357 = vpop.xlane.xlu0 %1356
  %v1358 = vsub.f32 %v1354, %v1357
  %v1359 = vmul.f32 %v1358, 1.442695
  %v1360 = vpow.pop %v1359
  %v1361 = vsel %vm1263, %v1360, 0.0
  %1362 = vadd.xlane.f32.xlu0 %v1361
  %v1363 = vpop.xlane.xlu0 %1362
  %v1364 = vrcp.pop %v1363
  %v1365 = vmul.f32 %v1360, %v1364
  %1366 = vrot.lane.b32.xlu0 %v1169, 32
  %v1367 = vpop.permute.xlu0 %1366
  %v1370 = vsel %vm1263, %v1365, 0
  %1372 = vmatprep.subr.mxu0 0.0
  %1373 = vmatpush1.msra.mxu0 %v1367
  %1374 = vmatprep.subr.mxu0 0.0
  %1375 = vmatpush1.msra.mxu0 0.0
  %1376 = vmatprep.subr.mxu0 0.0
  %1377 = vmatpush1.msra.mxu0 0.0
  %1378 = vmatprep.subr.mxu0 0.0
  %1379 = vmatpush1.msra.mxu0 0.0
  %1380 = vmatprep.subr.mxu0 0.0
  %1381 = vmatpush1.msra.mxu0 0.0
  %1382 = vmatprep.subr.mxu0 0.0
  %1383 = vmatpush1.msra.mxu0 0.0
  %1384 = vmatprep.subr.mxu0 0.0
  %1385 = vmatpush1.msra.mxu0 0.0
  %1386 = vmatprep.subr.mxu0 0.0
  %1387 = vmatpush1.msra.mxu0 0.0
  %1388 = vmatprep.subr.mxu0 0.0
  %1389 = vmatpush1.msra.mxu0 0.0
  %1390 = vmatprep.subr.mxu0 0.0
  %1391 = vmatpush1.msra.mxu0 0.0
  %1392 = vmatprep.subr.mxu0 0.0
  %1393 = vmatpush1.msra.mxu0 0.0
  %1394 = vmatprep.subr.mxu0 0.0
  %1395 = vmatpush1.msra.mxu0 0.0
  %1396 = vmatprep.subr.mxu0 0.0
  %1397 = vmatpush1.msra.mxu0 0.0
  %1398 = vmatprep.subr.mxu0 0.0
  %1399 = vmatpush1.msra.mxu0 0.0
  %1400 = vmatprep.subr.mxu0 0.0
  %1401 = vmatpush1.msra.mxu0 0.0
  %1402 = vmatprep.subr.mxu0 0.0
  %1403 = vmatpush1.msra.mxu0 0.0
  %1404 = vmatprep.subr.mxu0 0.0
  %1405 = vmatpush1.msra.mxu0 0.0
  %1406 = vmatprep.subr.mxu0 0.0
  %1407 = vmatpush1.msra.mxu0 0.0
  %1408 = vmatprep.subr.mxu0 0.0
  %1409 = vmatpush1.msra.mxu0 0.0
  %1410 = vmatprep.subr.mxu0 0.0
  %1411 = vmatpush1.msra.mxu0 0.0
  %1412 = vmatprep.subr.mxu0 0.0
  %1413 = vmatpush1.msra.mxu0 0.0
  %1414 = vmatprep.subr.mxu0 0.0
  %1415 = vmatpush1.msra.mxu0 0.0
  %1416 = vmatprep.subr.mxu0 0.0
  %1417 = vmatpush1.msra.mxu0 0.0
  %1418 = vmatprep.subr.mxu0 0.0
  %1419 = vmatpush1.msra.mxu0 0.0
  %1420 = vmatprep.subr.mxu0 0.0
  %1421 = vmatpush1.msra.mxu0 0.0
  %1422 = vmatprep.subr.mxu0 0.0
  %1423 = vmatpush1.msra.mxu0 0.0
  %1424 = vmatprep.subr.mxu0 0.0
  %1425 = vmatpush1.msra.mxu0 0.0
  %1426 = vmatprep.subr.mxu0 0.0
  %1427 = vmatpush1.msra.mxu0 0.0
  %1428 = vmatprep.subr.mxu0 0.0
  %1429 = vmatpush1.msra.mxu0 0.0
  %1430 = vmatprep.subr.mxu0 0.0
  %1431 = vmatpush1.msra.mxu0 0.0
  %1432 = vmatprep.subr.mxu0 0.0
  %1433 = vmatpush1.msra.mxu0 0.0
  %1434 = vmatprep.subr.mxu0 0.0
  %1435 = vmatpush1.msra.mxu0 0.0
  %1436 = vmatprep.mubr.f32.mxu0 0.0
  %1437 = vmatmul.mubr.f32.gmra.mrb[0].mxu0 %v1370
  %v1438 = vpop.f32.mrb[0].mxu0
  %v1439 = vadd.f32 0.0, %v1438
  %v1440 = vpop.f32.mrb[0].mxu0
  %1441 = vdwg.mxu0
  %1442 = vrot.lane.b32.xlu0 %v1169, 64
  %v1443 = vpop.permute.xlu0 %1442
  %v1446 = vsel %vm1263, %v1274, 0
  %1448 = vmatprep.subr.mxu0 0.0
  %1449 = vmatpush1.msra.mxu0 %v1443
  %1450 = vmatprep.subr.mxu0 0.0
  %1451 = vmatpush1.msra.mxu0 0.0
  %1452 = vmatprep.subr.mxu0 0.0
  %1453 = vmatpush1.msra.mxu0 0.0
  %1454 = vmatprep.subr.mxu0 0.0
  %1455 = vmatpush1.msra.mxu0 0.0
  %1456 = vmatprep.subr.mxu0 0.0
  %1457 = vmatpush1.msra.mxu0 0.0
  %1458 = vmatprep.subr.mxu0 0.0
  %1459 = vmatpush1.msra.mxu0 0.0
  %1460 = vmatprep.subr.mxu0 0.0
  %1461 = vmatpush1.msra.mxu0 0.0
  %1462 = vmatprep.subr.mxu0 0.0
  %1463 = vmatpush1.msra.mxu0 0.0
  %1464 = vmatprep.subr.mxu0 0.0
  %1465 = vmatpush1.msra.mxu0 0.0
  %1466 = vmatprep.subr.mxu0 0.0
  %1467 = vmatpush1.msra.mxu0 0.0
  %1468 = vmatprep.subr.mxu0 0.0
  %1469 = vmatpush1.msra.mxu0 0.0
  %1470 = vmatprep.subr.mxu0 0.0
  %1471 = vmatpush1.msra.mxu0 0.0
  %1472 = vmatprep.subr.mxu0 0.0
  %1473 = vmatpush1.msra.mxu0 0.0
  %1474 = vmatprep.subr.mxu0 0.0
  %1475 = vmatpush1.msra.mxu0 0.0
  %1476 = vmatprep.subr.mxu0 0.0
  %1477 = vmatpush1.msra.mxu0 0.0
  %1478 = vmatprep.subr.mxu0 0.0
  %1479 = vmatpush1.msra.mxu0 0.0
  %1480 = vmatprep.subr.mxu0 0.0
  %1481 = vmatpush1.msra.mxu0 0.0
  %1482 = vmatprep.subr.mxu0 0.0
  %1483 = vmatpush1.msra.mxu0 0.0
  %1484 = vmatprep.subr.mxu0 0.0
  %1485 = vmatpush1.msra.mxu0 0.0
  %1486 = vmatprep.subr.mxu0 0.0
  %1487 = vmatpush1.msra.mxu0 0.0
  %1488 = vmatprep.subr.mxu0 0.0
  %1489 = vmatpush1.msra.mxu0 0.0
  %1490 = vmatprep.subr.mxu0 0.0
  %1491 = vmatpush1.msra.mxu0 0.0
  %1492 = vmatprep.subr.mxu0 0.0
  %1493 = vmatpush1.msra.mxu0 0.0
  %1494 = vmatprep.subr.mxu0 0.0
  %1495 = vmatpush1.msra.mxu0 0.0
  %1496 = vmatprep.subr.mxu0 0.0
  %1497 = vmatpush1.msra.mxu0 0.0
  %1498 = vmatprep.subr.mxu0 0.0
  %1499 = vmatpush1.msra.mxu0 0.0
  %1500 = vmatprep.subr.mxu0 0.0
  %1501 = vmatpush1.msra.mxu0 0.0
  %1502 = vmatprep.subr.mxu0 0.0
  %1503 = vmatpush1.msra.mxu0 0.0
  %1504 = vmatprep.subr.mxu0 0.0
  %1505 = vmatpush1.msra.mxu0 0.0
  %1506 = vmatprep.subr.mxu0 0.0
  %1507 = vmatpush1.msra.mxu0 0.0
  %1508 = vmatprep.subr.mxu0 0.0
  %1509 = vmatpush1.msra.mxu0 0.0
  %1510 = vmatprep.subr.mxu0 0.0
  %1511 = vmatpush1.msra.mxu0 0.0
  %1512 = vmatprep.mubr.f32.mxu0 0.0
  %1513 = vmatmul.mubr.f32.gmra.mrb[0].mxu0 %v1446
  %v1514 = vpop.f32.mrb[0].mxu0
  %v1515 = vadd.f32 %v1439, %v1514
  %v1516 = vpop.f32.mrb[0].mxu0
  %1517 = vdwg.mxu0
  %1519 = vrot.lane.b32.xlu0 %v1174, 96
  %v1520 = vpop.permute.xlu0 %1519
  %v1521 = vsel %vm100, %v1174, 0
  %v1523 = vsel %vm100, %v1520, 0
  %1525 = vmatprep.subr.mxu0 0.0
  %1526 = vmatpush1.xpose.msra.mxu0 %v1523
  %1527 = vmatprep.subr.mxu0 0.0
  %1528 = vmatpush1.xpose.msra.mxu0 0.0
  %1529 = vmatprep.subr.mxu0 0.0
  %1530 = vmatpush1.xpose.msra.mxu0 0.0
  %1531 = vmatprep.subr.mxu0 0.0
  %1532 = vmatpush1.xpose.msra.mxu0 0.0
  %1533 = vmatprep.subr.mxu0 0.0
  %1534 = vmatpush1.xpose.msra.mxu0 0.0
  %1535 = vmatprep.subr.mxu0 0.0
  %1536 = vmatpush1.xpose.msra.mxu0 0.0
  %1537 = vmatprep.subr.mxu0 0.0
  %1538 = vmatpush1.xpose.msra.mxu0 0.0
  %1539 = vmatprep.subr.mxu0 0.0
  %1540 = vmatpush1.xpose.msra.mxu0 0.0
  %1541 = vmatprep.subr.mxu0 0.0
  %1542 = vmatpush1.xpose.msra.mxu0 0.0
  %1543 = vmatprep.subr.mxu0 0.0
  %1544 = vmatpush1.xpose.msra.mxu0 0.0
  %1545 = vmatprep.subr.mxu0 0.0
  %1546 = vmatpush1.xpose.msra.mxu0 0.0
  %1547 = vmatprep.subr.mxu0 0.0
  %1548 = vmatpush1.xpose.msra.mxu0 0.0
  %1549 = vmatprep.subr.mxu0 0.0
  %1550 = vmatpush1.xpose.msra.mxu0 0.0
  %1551 = vmatprep.subr.mxu0 0.0
  %1552 = vmatpush1.xpose.msra.mxu0 0.0
  %1553 = vmatprep.subr.mxu0 0.0
  %1554 = vmatpush1.xpose.msra.mxu0 0.0
  %1555 = vmatprep.subr.mxu0 0.0
  %1556 = vmatpush1.xpose.msra.mxu0 0.0
  %1557 = vmatprep.subr.mxu0 0.0
  %1558 = vmatpush1.xpose.msra.mxu0 0.0
  %1559 = vmatprep.subr.mxu0 0.0
  %1560 = vmatpush1.xpose.msra.mxu0 0.0
  %1561 = vmatprep.subr.mxu0 0.0
  %1562 = vmatpush1.xpose.msra.mxu0 0.0
  %1563 = vmatprep.subr.mxu0 0.0
  %1564 = vmatpush1.xpose.msra.mxu0 0.0
  %1565 = vmatprep.subr.mxu0 0.0
  %1566 = vmatpush1.xpose.msra.mxu0 0.0
  %1567 = vmatprep.subr.mxu0 0.0
  %1568 = vmatpush1.xpose.msra.mxu0 0.0
  %1569 = vmatprep.subr.mxu0 0.0
  %1570 = vmatpush1.xpose.msra.mxu0 0.0
  %1571 = vmatprep.subr.mxu0 0.0
  %1572 = vmatpush1.xpose.msra.mxu0 0.0
  %1573 = vmatprep.subr.mxu0 0.0
  %1574 = vmatpush1.xpose.msra.mxu0 0.0
  %1575 = vmatprep.subr.mxu0 0.0
  %1576 = vmatpush1.xpose.msra.mxu0 0.0
  %1577 = vmatprep.subr.mxu0 0.0
  %1578 = vmatpush1.xpose.msra.mxu0 0.0
  %1579 = vmatprep.subr.mxu0 0.0
  %1580 = vmatpush1.xpose.msra.mxu0 0.0
  %1581 = vmatprep.subr.mxu0 0.0
  %1582 = vmatpush1.xpose.msra.mxu0 0.0
  %1583 = vmatprep.subr.mxu0 0.0
  %1584 = vmatpush1.xpose.msra.mxu0 0.0
  %1585 = vmatprep.subr.mxu0 0.0
  %1586 = vmatpush1.xpose.msra.mxu0 0.0
  %1587 = vmatprep.subr.mxu0 0.0
  %1588 = vmatpush1.xpose.msra.mxu0 0.0
  %1589 = vmatprep.mubr.f32.mxu0 0.0
  %1590 = vmatmul.mubr.f32.gmra.mrb[0].mxu0 %v1521
  %v1591 = vpop.f32.mrb[0].mxu0
  %v1592 = vadd.f32 0.0, %v1591
  %v1593 = vpop.f32.mrb[0].mxu0
  %1594 = vdwg.mxu0
  %v1595 = vmul.f32 %v1592, 0.25
  %v1596 = vlaneseq
  %v1597 = vshrl.u32 %v1596, 7
  %v1598 = vsub.s32 1, %v1597
  %v1599 = vrot.slane %v1256, %v1598
  %vm1600 = vcmp.eq.s32.totalorder %v1599, 1
  %v1601 = vsel %vm1600, %v1595, -1e+09
  %v1602 = vsel %vm1263, %v1601, -inf
  %1603 = vmax.xlane.f32.xlu0 %v1602
  %v1604 = vpop.xlane.xlu0 %1603
  %v1605 = vsub.f32 %v1601, %v1604
  %v1606 = vmul.f32 %v1605, 1.442695
  %v1607 = vpow.pop %v1606
  %v1608 = vsel %vm1263, %v1607, 0.0
  %1609 = vadd.xlane.f32.xlu0 %v1608
  %v1610 = vpop.xlane.xlu0 %1609
  %v1611 = vrcp.pop %v1610
  %v1612 = vmul.f32 %v1607, %v1611
  %1613 = vrot.lane.b32.xlu0 %v1174, 112
  %v1614 = vpop.permute.xlu0 %1613
  %1615 = vrot.lane.b32.xlu0 %v1174, 80
  %v1616 = vpop.permute.xlu0 %1615
  %v1617 = vsel %vm100, %v1614, 0
  %v1619 = vsel %vm100, %v1616, 0
  %1621 = vmatprep.subr.mxu0 0.0
  %1622 = vmatpush1.xpose.msra.mxu0 %v1619
  %1623 = vmatprep.subr.mxu0 0.0
  %1624 = vmatpush1.xpose.msra.mxu0 0.0
  %1625 = vmatprep.subr.mxu0 0.0
  %1626 = vmatpush1.xpose.msra.mxu0 0.0
  %1627 = vmatprep.subr.mxu0 0.0
  %1628 = vmatpush1.xpose.msra.mxu0 0.0
  %1629 = vmatprep.subr.mxu0 0.0
  %1630 = vmatpush1.xpose.msra.mxu0 0.0
  %1631 = vmatprep.subr.mxu0 0.0
  %1632 = vmatpush1.xpose.msra.mxu0 0.0
  %1633 = vmatprep.subr.mxu0 0.0
  %1634 = vmatpush1.xpose.msra.mxu0 0.0
  %1635 = vmatprep.subr.mxu0 0.0
  %1636 = vmatpush1.xpose.msra.mxu0 0.0
  %1637 = vmatprep.subr.mxu0 0.0
  %1638 = vmatpush1.xpose.msra.mxu0 0.0
  %1639 = vmatprep.subr.mxu0 0.0
  %1640 = vmatpush1.xpose.msra.mxu0 0.0
  %1641 = vmatprep.subr.mxu0 0.0
  %1642 = vmatpush1.xpose.msra.mxu0 0.0
  %1643 = vmatprep.subr.mxu0 0.0
  %1644 = vmatpush1.xpose.msra.mxu0 0.0
  %1645 = vmatprep.subr.mxu0 0.0
  %1646 = vmatpush1.xpose.msra.mxu0 0.0
  %1647 = vmatprep.subr.mxu0 0.0
  %1648 = vmatpush1.xpose.msra.mxu0 0.0
  %1649 = vmatprep.subr.mxu0 0.0
  %1650 = vmatpush1.xpose.msra.mxu0 0.0
  %1651 = vmatprep.subr.mxu0 0.0
  %1652 = vmatpush1.xpose.msra.mxu0 0.0
  %1653 = vmatprep.subr.mxu0 0.0
  %1654 = vmatpush1.xpose.msra.mxu0 0.0
  %1655 = vmatprep.subr.mxu0 0.0
  %1656 = vmatpush1.xpose.msra.mxu0 0.0
  %1657 = vmatprep.subr.mxu0 0.0
  %1658 = vmatpush1.xpose.msra.mxu0 0.0
  %1659 = vmatprep.subr.mxu0 0.0
  %1660 = vmatpush1.xpose.msra.mxu0 0.0
  %1661 = vmatprep.subr.mxu0 0.0
  %1662 = vmatpush1.xpose.msra.mxu0 0.0
  %1663 = vmatprep.subr.mxu0 0.0
  %1664 = vmatpush1.xpose.msra.mxu0 0.0
  %1665 = vmatprep.subr.mxu0 0.0
  %1666 = vmatpush1.xpose.msra.mxu0 0.0
  %1667 = vmatprep.subr.mxu0 0.0
  %1668 = vmatpush1.xpose.msra.mxu0 0.0
  %1669 = vmatprep.subr.mxu0 0.0
  %1670 = vmatpush1.xpose.msra.mxu0 0.0
  %1671 = vmatprep.subr.mxu0 0.0
  %1672 = vmatpush1.xpose.msra.mxu0 0.0
  %1673 = vmatprep.subr.mxu0 0.0
  %1674 = vmatpush1.xpose.msra.mxu0 0.0
  %1675 = vmatprep.subr.mxu0 0.0
  %1676 = vmatpush1.xpose.msra.mxu0 0.0
  %1677 = vmatprep.subr.mxu0 0.0
  %1678 = vmatpush1.xpose.msra.mxu0 0.0
  %1679 = vmatprep.subr.mxu0 0.0
  %1680 = vmatpush1.xpose.msra.mxu0 0.0
  %1681 = vmatprep.subr.mxu0 0.0
  %1682 = vmatpush1.xpose.msra.mxu0 0.0
  %1683 = vmatprep.subr.mxu0 0.0
  %1684 = vmatpush1.xpose.msra.mxu0 0.0
  %1685 = vmatprep.mubr.f32.mxu0 0.0
  %1686 = vmatmul.mubr.f32.gmra.mrb[0].mxu0 %v1617
  %v1687 = vpop.f32.mrb[0].mxu0
  %v1688 = vadd.f32 0.0, %v1687
  %v1689 = vpop.f32.mrb[0].mxu0
  %1690 = vdwg.mxu0
  %v1691 = vmul.f32 %v1688, 0.25
  %v1692 = vsel %vm1600, %v1691, -1e+09
  %v1693 = vsel %vm1263, %v1692, -inf
  %1694 = vmax.xlane.f32.xlu0 %v1693
  %v1695 = vpop.xlane.xlu0 %1694
  %v1696 = vsub.f32 %v1692, %v1695
  %v1697 = vmul.f32 %v1696, 1.442695
  %v1698 = vpow.pop %v1697
  %v1699 = vsel %vm1263, %v1698, 0.0
  %1700 = vadd.xlane.f32.xlu0 %v1699
  %v1701 = vpop.xlane.xlu0 %1700
  %v1702 = vrcp.pop %v1701
  %v1703 = vmul.f32 %v1698, %v1702
  %1704 = vrot.lane.b32.xlu0 %v1174, 32
  %v1705 = vpop.permute.xlu0 %1704
  %v1708 = vsel %vm1263, %v1703, 0
  %1710 = vmatprep.subr.mxu0 0.0
  %1711 = vmatpush1.msra.mxu0 %v1705
  %1712 = vmatprep.subr.mxu0 0.0
  %1713 = vmatpush1.msra.mxu0 0.0
  %1714 = vmatprep.subr.mxu0 0.0
  %1715 = vmatpush1.msra.mxu0 0.0
  %1716 = vmatprep.subr.mxu0 0.0
  %1717 = vmatpush1.msra.mxu0 0.0
  %1718 = vmatprep.subr.mxu0 0.0
  %1719 = vmatpush1.msra.mxu0 0.0
  %1720 = vmatprep.subr.mxu0 0.0
  %1721 = vmatpush1.msra.mxu0 0.0
  %1722 = vmatprep.subr.mxu0 0.0
  %1723 = vmatpush1.msra.mxu0 0.0
  %1724 = vmatprep.subr.mxu0 0.0
  %1725 = vmatpush1.msra.mxu0 0.0
  %1726 = vmatprep.subr.mxu0 0.0
  %1727 = vmatpush1.msra.mxu0 0.0
  %1728 = vmatprep.subr.mxu0 0.0
  %1729 = vmatpush1.msra.mxu0 0.0
  %1730 = vmatprep.subr.mxu0 0.0
  %1731 = vmatpush1.msra.mxu0 0.0
  %1732 = vmatprep.subr.mxu0 0.0
  %1733 = vmatpush1.msra.mxu0 0.0
  %1734 = vmatprep.subr.mxu0 0.0
  %1735 = vmatpush1.msra.mxu0 0.0
  %1736 = vmatprep.subr.mxu0 0.0
  %1737 = vmatpush1.msra.mxu0 0.0
  %1738 = vmatprep.subr.mxu0 0.0
  %1739 = vmatpush1.msra.mxu0 0.0
  %1740 = vmatprep.subr.mxu0 0.0
  %1741 = vmatpush1.msra.mxu0 0.0
  %1742 = vmatprep.subr.mxu0 0.0
  %1743 = vmatpush1.msra.mxu0 0.0
  %1744 = vmatprep.subr.mxu0 0.0
  %1745 = vmatpush1.msra.mxu0 0.0
  %1746 = vmatprep.subr.mxu0 0.0
  %1747 = vmatpush1.msra.mxu0 0.0
  %1748 = vmatprep.subr.mxu0 0.0
  %1749 = vmatpush1.msra.mxu0 0.0
  %1750 = vmatprep.subr.mxu0 0.0
  %1751 = vmatpush1.msra.mxu0 0.0
  %1752 = vmatprep.subr.mxu0 0.0
  %1753 = vmatpush1.msra.mxu0 0.0
  %1754 = vmatprep.subr.mxu0 0.0
  %1755 = vmatpush1.msra.mxu0 0.0
  %1756 = vmatprep.subr.mxu0 0.0
  %1757 = vmatpush1.msra.mxu0 0.0
  %1758 = vmatprep.subr.mxu0 0.0
  %1759 = vmatpush1.msra.mxu0 0.0
  %1760 = vmatprep.subr.mxu0 0.0
  %1761 = vmatpush1.msra.mxu0 0.0
  %1762 = vmatprep.subr.mxu0 0.0
  %1763 = vmatpush1.msra.mxu0 0.0
  %1764 = vmatprep.subr.mxu0 0.0
  %1765 = vmatpush1.msra.mxu0 0.0
  %1766 = vmatprep.subr.mxu0 0.0
  %1767 = vmatpush1.msra.mxu0 0.0
  %1768 = vmatprep.subr.mxu0 0.0
  %1769 = vmatpush1.msra.mxu0 0.0
  %1770 = vmatprep.subr.mxu0 0.0
  %1771 = vmatpush1.msra.mxu0 0.0
  %1772 = vmatprep.subr.mxu0 0.0
  %1773 = vmatpush1.msra.mxu0 0.0
  %1774 = vmatprep.mubr.f32.mxu0 0.0
  %1775 = vmatmul.mubr.f32.gmra.mrb[0].mxu0 %v1708
  %v1776 = vpop.f32.mrb[0].mxu0
  %v1777 = vadd.f32 0.0, %v1776
  %v1778 = vpop.f32.mrb[0].mxu0
  %1779 = vdwg.mxu0
  %1780 = vrot.lane.b32.xlu0 %v1174, 64
  %v1781 = vpop.permute.xlu0 %1780
  %v1784 = vsel %vm1263, %v1612, 0
  %1786 = vmatprep.subr.mxu0 0.0
  %1787 = vmatpush1.msra.mxu0 %v1781
  %1788 = vmatprep.subr.mxu0 0.0
  %1789 = vmatpush1.msra.mxu0 0.0
  %1790 = vmatprep.subr.mxu0 0.0
  %1791 = vmatpush1.msra.mxu0 0.0
  %1792 = vmatprep.subr.mxu0 0.0
  %1793 = vmatpush1.msra.mxu0 0.0
  %1794 = vmatprep.subr.mxu0 0.0
  %1795 = vmatpush1.msra.mxu0 0.0
  %1796 = vmatprep.subr.mxu0 0.0
  %1797 = vmatpush1.msra.mxu0 0.0
  %1798 = vmatprep.subr.mxu0 0.0
  %1799 = vmatpush1.msra.mxu0 0.0
  %1800 = vmatprep.subr.mxu0 0.0
  %1801 = vmatpush1.msra.mxu0 0.0
  %1802 = vmatprep.subr.mxu0 0.0
  %1803 = vmatpush1.msra.mxu0 0.0
  %1804 = vmatprep.subr.mxu0 0.0
  %1805 = vmatpush1.msra.mxu0 0.0
  %1806 = vmatprep.subr.mxu0 0.0
  %1807 = vmatpush1.msra.mxu0 0.0
  %1808 = vmatprep.subr.mxu0 0.0
  %1809 = vmatpush1.msra.mxu0 0.0
  %1810 = vmatprep.subr.mxu0 0.0
  %1811 = vmatpush1.msra.mxu0 0.0
  %1812 = vmatprep.subr.mxu0 0.0
  %1813 = vmatpush1.msra.mxu0 0.0
  %1814 = vmatprep.subr.mxu0 0.0
  %1815 = vmatpush1.msra.mxu0 0.0
  %1816 = vmatprep.subr.mxu0 0.0
  %1817 = vmatpush1.msra.mxu0 0.0
  %1818 = vmatprep.subr.mxu0 0.0
  %1819 = vmatpush1.msra.mxu0 0.0
  %1820 = vmatprep.subr.mxu0 0.0
  %1821 = vmatpush1.msra.mxu0 0.0
  %1822 = vmatprep.subr.mxu0 0.0
  %1823 = vmatpush1.msra.mxu0 0.0
  %1824 = vmatprep.subr.mxu0 0.0
  %1825 = vmatpush1.msra.mxu0 0.0
  %1826 = vmatprep.subr.mxu0 0.0
  %1827 = vmatpush1.msra.mxu0 0.0
  %1828 = vmatprep.subr.mxu0 0.0
  %1829 = vmatpush1.msra.mxu0 0.0
  %1830 = vmatprep.subr.mxu0 0.0
  %1831 = vmatpush1.msra.mxu0 0.0
  %1832 = vmatprep.subr.mxu0 0.0
  %1833 = vmatpush1.msra.mxu0 0.0
  %1834 = vmatprep.subr.mxu0 0.0
  %1835 = vmatpush1.msra.mxu0 0.0
  %1836 = vmatprep.subr.mxu0 0.0
  %1837 = vmatpush1.msra.mxu0 0.0
  %1838 = vmatprep.subr.mxu0 0.0
  %1839 = vmatpush1.msra.mxu0 0.0
  %1840 = vmatprep.subr.mxu0 0.0
  %1841 = vmatpush1.msra.mxu0 0.0
  %1842 = vmatprep.subr.mxu0 0.0
  %1843 = vmatpush1.msra.mxu0 0.0
  %1844 = vmatprep.subr.mxu0 0.0
  %1845 = vmatpush1.msra.mxu0 0.0
  %1846 = vmatprep.subr.mxu0 0.0
  %1847 = vmatpush1.msra.mxu0 0.0
  %1848 = vmatprep.subr.mxu0 0.0
  %1849 = vmatpush1.msra.mxu0 0.0
  %1850 = vmatprep.mubr.f32.mxu0 0.0
  %1851 = vmatmul.mubr.f32.gmra.mrb[0].mxu0 %v1784
  %v1852 = vpop.f32.mrb[0].mxu0
  %v1853 = vadd.f32 %v1777, %v1852
  %v1854 = vpop.f32.mrb[0].mxu0
  %1855 = vdwg.mxu0
  %v1856 = vadd.f32 %v1515, %v1089
  %v1857 = vadd.f32 %v1853, %v1090
  %v1858 = vld [vmem:[%s14] sm:$0x1]
  %v1859 = vld [vmem:[%s15] sm:$0x1]
  %v1860 = vsel %vm191, %v1856, 0.0
  %1861 = vadd.xlane.f32.xlu0 %v1860
  %v1862 = vpop.xlane.xlu0 %1861
  %v1863 = vsel %vm191, %v1857, 0.0
  %1864 = vadd.xlane.f32.xlu0 %v1863
  %v1865 = vpop.xlane.xlu0 %1864
  %v1866 = vmul.f32 %v1862, %v1051
  %v1867 = vmul.f32 %v1865, %v1051
  %v1868 = vsub.f32 %v1856, %v1866
  %v1869 = vsub.f32 %v1857, %v1867
  %v1870 = vmul.f32 %v1868, %v1868
  %v1871 = vmul.f32 %v1869, %v1869
  %v1872 = vsel %vm191, %v1870, 0.0
  %1873 = vadd.xlane.f32.xlu0 %v1872
  %v1874 = vpop.xlane.xlu0 %1873
  %v1875 = vsel %vm191, %v1871, 0.0
  %1876 = vadd.xlane.f32.xlu0 %v1875
  %v1877 = vpop.xlane.xlu0 %1876
  %v1878 = vmul.f32 %v1874, %v1051
  %v1879 = vmul.f32 %v1877, %v1051
  %v1880 = vadd.f32 %v1878, 1e-06
  %v1881 = vadd.f32 %v1879, 1e-06
  %v1882 = vrsqrt.pop %v1880
  %v1883 = vrsqrt.pop %v1881
  %v1884 = vmul.f32 %v1868, %v1882
  %v1885 = vmul.f32 %v1869, %v1883
  %v1887 = vlaneseq
  %v1888 = vshrl.u32 %v1887, 7
  %v1889 = vsub.s32 0, %v1888
  %v1890 = vrot.slane %v1858, %v1889
  %v1892 = vmul.f32 %v1884, %v1890
  %v1893 = vmul.f32 %v1885, %v1890
  %v1895 = vlaneseq
  %v1896 = vshrl.u32 %v1895, 7
  %v1897 = vsub.s32 0, %v1896
  %v1898 = vrot.slane %v1859, %v1897
  %v1900 = vadd.f32 %v1892, %v1898
  %v1901 = vadd.f32 %v1893, %v1898
  %v1902 = vld [vmem:[%s16] sm:$0xff]
  %v1903 = vld [vmem:[%s16 + $0x8] sm:$0xff]
  %v1904 = vld [vmem:[%s16 + $0x10] sm:$0xff]
  %v1905 = vld [vmem:[%s16 + $0x18] sm:$0xff]
  %v1906 = vld [vmem:[%s17] sm:$0x1]
  %v1908 = vlaneseq
  %v1909 = vshrl.u32 %v1908, 7
  %v1910 = vsub.s32 0, %v1909
  %v1911 = vrot.slane %v1906, %v1910
  %v1914 = vsel %vm191, %v1900, 0
  %v1917 = vsel %vm191, %v1901, 0
  %1919 = vmatprep.subr.mxu0 0.0
  %1920 = vmatpush1.msra.mxu0 %v1902
  %1921 = vmatprep.subr.mxu0 0.0
  %1922 = vmatpush1.msra.mxu0 %v1903
  %1923 = vmatprep.subr.mxu0 0.0
  %1924 = vmatpush1.msra.mxu0 %v1904
  %1925 = vmatprep.subr.mxu0 0.0
  %1926 = vmatpush1.msra.mxu0 %v1905
  %1927 = vmatprep.subr.mxu0 0.0
  %1928 = vmatpush1.msra.mxu0 0.0
  %1929 = vmatprep.subr.mxu0 0.0
  %1930 = vmatpush1.msra.mxu0 0.0
  %1931 = vmatprep.subr.mxu0 0.0
  %1932 = vmatpush1.msra.mxu0 0.0
  %1933 = vmatprep.subr.mxu0 0.0
  %1934 = vmatpush1.msra.mxu0 0.0
  %1935 = vmatprep.subr.mxu0 0.0
  %1936 = vmatpush1.msra.mxu0 0.0
  %1937 = vmatprep.subr.mxu0 0.0
  %1938 = vmatpush1.msra.mxu0 0.0
  %1939 = vmatprep.subr.mxu0 0.0
  %1940 = vmatpush1.msra.mxu0 0.0
  %1941 = vmatprep.subr.mxu0 0.0
  %1942 = vmatpush1.msra.mxu0 0.0
  %1943 = vmatprep.subr.mxu0 0.0
  %1944 = vmatpush1.msra.mxu0 0.0
  %1945 = vmatprep.subr.mxu0 0.0
  %1946 = vmatpush1.msra.mxu0 0.0
  %1947 = vmatprep.subr.mxu0 0.0
  %1948 = vmatpush1.msra.mxu0 0.0
  %1949 = vmatprep.subr.mxu0 0.0
  %1950 = vmatpush1.msra.mxu0 0.0
  %1951 = vmatprep.subr.mxu0 0.0
  %1952 = vmatpush1.msra.mxu0 0.0
  %1953 = vmatprep.subr.mxu0 0.0
  %1954 = vmatpush1.msra.mxu0 0.0
  %1955 = vmatprep.subr.mxu0 0.0
  %1956 = vmatpush1.msra.mxu0 0.0
  %1957 = vmatprep.subr.mxu0 0.0
  %1958 = vmatpush1.msra.mxu0 0.0
  %1959 = vmatprep.subr.mxu0 0.0
  %1960 = vmatpush1.msra.mxu0 0.0
  %1961 = vmatprep.subr.mxu0 0.0
  %1962 = vmatpush1.msra.mxu0 0.0
  %1963 = vmatprep.subr.mxu0 0.0
  %1964 = vmatpush1.msra.mxu0 0.0
  %1965 = vmatprep.subr.mxu0 0.0
  %1966 = vmatpush1.msra.mxu0 0.0
  %1967 = vmatprep.subr.mxu0 0.0
  %1968 = vmatpush1.msra.mxu0 0.0
  %1969 = vmatprep.subr.mxu0 0.0
  %1970 = vmatpush1.msra.mxu0 0.0
  %1971 = vmatprep.subr.mxu0 0.0
  %1972 = vmatpush1.msra.mxu0 0.0
  %1973 = vmatprep.subr.mxu0 0.0
  %1974 = vmatpush1.msra.mxu0 0.0
  %1975 = vmatprep.subr.mxu0 0.0
  %1976 = vmatpush1.msra.mxu0 0.0
  %1977 = vmatprep.subr.mxu0 0.0
  %1978 = vmatpush1.msra.mxu0 0.0
  %1979 = vmatprep.subr.mxu0 0.0
  %1980 = vmatpush1.msra.mxu0 0.0
  %1981 = vmatprep.subr.mxu0 0.0
  %1982 = vmatpush1.msra.mxu0 0.0
  %1983 = vmatprep.mubr.f32.mxu0 0.0
  %1984 = vmatmul.mubr.f32.gmra.mrb[0].mxu0 %v1914
  %v1985 = vpop.f32.mrb[0].mxu0
  %v1986 = vadd.f32 %v1911, %v1985
  %v1987 = vpop.f32.mrb[0].mxu0
  %1988 = vmatprep.mubr.f32.mxu0 0.0
  %1989 = vmatmul.mubr.f32.gmra.mrb[0].mxu0 %v1917
  %v1990 = vpop.f32.mrb[0].mxu0
  %v1991 = vadd.f32 %v1911, %v1990
  %v1992 = vpop.f32.mrb[0].mxu0
  %1993 = vdwg.mxu0
  %v1994 = vmax.f32 %v1986, 0.0
  %v1995 = vmax.f32 %v1991, 0.0
  %v1996 = vld [vmem:[%s18] sm:$0xff]
  %v1997 = vld [vmem:[%s18 + $0x8] sm:$0xff]
  %v1998 = vld [vmem:[%s18 + $0x10] sm:$0xff]
  %v1999 = vld [vmem:[%s18 + $0x18] sm:$0xff]
  %v2000 = vld [vmem:[%s18 + $0x20] sm:$0xff]
  %v2001 = vld [vmem:[%s18 + $0x28] sm:$0xff]
  %v2002 = vld [vmem:[%s18 + $0x30] sm:$0xff]
  %v2003 = vld [vmem:[%s18 + $0x38] sm:$0xff]
  %v2004 = vld [vmem:[%s19] sm:$0x1]
  %v2006 = vlaneseq
  %v2007 = vshrl.u32 %v2006, 7
  %v2008 = vsub.s32 0, %v2007
  %v2009 = vrot.slane %v2004, %v2008
  %vm2011 = vcmask 523264
  %v2013 = vsel %vm2011, %v1994, 0
  %v2016 = vsel %vm2011, %v1995, 0
  %2018 = vmatprep.subr.mxu0 0.0
  %2019 = vmatpush1.msra.mxu0 %v1996
  %2020 = vmatprep.subr.mxu0 0.0
  %2021 = vmatpush1.msra.mxu0 %v1997
  %2022 = vmatprep.subr.mxu0 0.0
  %2023 = vmatpush1.msra.mxu0 %v1998
  %2024 = vmatprep.subr.mxu0 0.0
  %2025 = vmatpush1.msra.mxu0 %v1999
  %2026 = vmatprep.subr.mxu0 0.0
  %2027 = vmatpush1.msra.mxu0 %v2000
  %2028 = vmatprep.subr.mxu0 0.0
  %2029 = vmatpush1.msra.mxu0 %v2001
  %2030 = vmatprep.subr.mxu0 0.0
  %2031 = vmatpush1.msra.mxu0 %v2002
  %2032 = vmatprep.subr.mxu0 0.0
  %2033 = vmatpush1.msra.mxu0 %v2003
  %2034 = vmatprep.subr.mxu0 0.0
  %2035 = vmatpush1.msra.mxu0 0.0
  %2036 = vmatprep.subr.mxu0 0.0
  %2037 = vmatpush1.msra.mxu0 0.0
  %2038 = vmatprep.subr.mxu0 0.0
  %2039 = vmatpush1.msra.mxu0 0.0
  %2040 = vmatprep.subr.mxu0 0.0
  %2041 = vmatpush1.msra.mxu0 0.0
  %2042 = vmatprep.subr.mxu0 0.0
  %2043 = vmatpush1.msra.mxu0 0.0
  %2044 = vmatprep.subr.mxu0 0.0
  %2045 = vmatpush1.msra.mxu0 0.0
  %2046 = vmatprep.subr.mxu0 0.0
  %2047 = vmatpush1.msra.mxu0 0.0
  %2048 = vmatprep.subr.mxu0 0.0
  %2049 = vmatpush1.msra.mxu0 0.0
  %2050 = vmatprep.subr.mxu0 0.0
  %2051 = vmatpush1.msra.mxu0 0.0
  %2052 = vmatprep.subr.mxu0 0.0
  %2053 = vmatpush1.msra.mxu0 0.0
  %2054 = vmatprep.subr.mxu0 0.0
  %2055 = vmatpush1.msra.mxu0 0.0
  %2056 = vmatprep.subr.mxu0 0.0
  %2057 = vmatpush1.msra.mxu0 0.0
  %2058 = vmatprep.subr.mxu0 0.0
  %2059 = vmatpush1.msra.mxu0 0.0
  %2060 = vmatprep.subr.mxu0 0.0
  %2061 = vmatpush1.msra.mxu0 0.0
  %2062 = vmatprep.subr.mxu0 0.0
  %2063 = vmatpush1.msra.mxu0 0.0
  %2064 = vmatprep.subr.mxu0 0.0
  %2065 = vmatpush1.msra.mxu0 0.0
  %2066 = vmatprep.subr.mxu0 0.0
  %2067 = vmatpush1.msra.mxu0 0.0
  %2068 = vmatprep.subr.mxu0 0.0
  %2069 = vmatpush1.msra.mxu0 0.0
  %2070 = vmatprep.subr.mxu0 0.0
  %2071 = vmatpush1.msra.mxu0 0.0
  %2072 = vmatprep.subr.mxu0 0.0
  %2073 = vmatpush1.msra.mxu0 0.0
  %2074 = vmatprep.subr.mxu0 0.0
  %2075 = vmatpush1.msra.mxu0 0.0
  %2076 = vmatprep.subr.mxu0 0.0
  %2077 = vmatpush1.msra.mxu0 0.0
  %2078 = vmatprep.subr.mxu0 0.0
  %2079 = vmatpush1.msra.mxu0 0.0
  %2080 = vmatprep.subr.mxu0 0.0
  %2081 = vmatpush1.msra.mxu0 0.0
  %2082 = vmatprep.mubr.f32.mxu0 0.0
  %2083 = vmatmul.mubr.f32.gmra.mrb[0].mxu0 %v2013
  %v2084 = vpop.f32.mrb[0].mxu0
  %v2085 = vadd.f32 %v2009, %v2084
  %v2086 = vpop.f32.mrb[0].mxu0
  %2087 = vmatprep.mubr.f32.mxu0 0.0
  %2088 = vmatmul.mubr.f32.gmra.mrb[0].mxu0 %v2016
  %v2089 = vpop.f32.mrb[0].mxu0
  %v2090 = vadd.f32 %v2009, %v2089
  %v2091 = vpop.f32.mrb[0].mxu0
  %2092 = vdwg.mxu0
  %v2093 = vadd.f32 %v2085, %v1900
  %v2094 = vadd.f32 %v2090, %v1901
  %v2095 = vld [vmem:[%s20] sm:$0x1]
  %v2096 = vld [vmem:[%s21] sm:$0x1]
  %v2097 = vsel %vm191, %v2093, 0.0
  %2098 = vadd.xlane.f32.xlu0 %v2097
  %v2099 = vpop.xlane.xlu0 %2098
  %v2100 = vsel %vm191, %v2094, 0.0
  %2101 = vadd.xlane.f32.xlu0 %v2100
  %v2102 = vpop.xlane.xlu0 %2101
  %v2103 = vmul.f32 %v2099, %v1051
  %v2104 = vmul.f32 %v2102, %v1051
  %v2105 = vsub.f32 %v2093, %v2103
  %v2106 = vsub.f32 %v2094, %v2104
  %v2107 = vmul.f32 %v2105, %v2105
  %v2108 = vmul.f32 %v2106, %v2106
  %v2109 = vsel %vm191, %v2107, 0.0
  %2110 = vadd.xlane.f32.xlu0 %v2109
  %v2111 = vpop.xlane.xlu0 %2110
  %v2112 = vsel %vm191, %v2108, 0.0
  %2113 = vadd.xlane.f32.xlu0 %v2112
  %v2114 = vpop.xlane.xlu0 %2113
  %v2115 = vmul.f32 %v2111, %v1051
  %v2116 = vmul.f32 %v2114, %v1051
  %v2117 = vadd.f32 %v2115, 1e-06
  %v2118 = vadd.f32 %v2116, 1e-06
  %v2119 = vrsqrt.pop %v2117
  %v2120 = vrsqrt.pop %v2118
  %v2121 = vmul.f32 %v2105, %v2119
  %v2122 = vmul.f32 %v2106, %v2120
  %v2124 = vlaneseq
  %v2125 = vshrl.u32 %v2124, 7
  %v2126 = vsub.s32 0, %v2125
  %v2127 = vrot.slane %v2095, %v2126
  %v2129 = vmul.f32 %v2121, %v2127
  %v2130 = vmul.f32 %v2122, %v2127
  %v2132 = vlaneseq
  %v2133 = vshrl.u32 %v2132, 7
  %v2134 = vsub.s32 0, %v2133
  %v2135 = vrot.slane %v2096, %v2134
  %v2137 = vadd.f32 %v2129, %v2135
  %v2138 = vadd.f32 %v2130, %v2135
  %s2139 = scalar_lea.vmem %s13, 32
  %v2140 = vld [vmem:[%s2139] sm:$0xff]
  %v2141 = vld [vmem:[%s2139 + $0x8] sm:$0xff]
  %v2142 = vld [vmem:[%s2139 + $0x10] sm:$0xff]
  %v2143 = vld [vmem:[%s2139 + $0x18] sm:$0xff]
  %v2145 = vsel %vm191, %v2137, 0
  %v2148 = vsel %vm191, %v2138, 0
  %2150 = vmatprep.subr.mxu0 0.0
  %2151 = vmatpush1.msra.mxu0 %v2140
  %2152 = vmatprep.subr.mxu0 0.0
  %2153 = vmatpush1.msra.mxu0 %v2141
  %2154 = vmatprep.subr.mxu0 0.0
  %2155 = vmatpush1.msra.mxu0 %v2142
  %2156 = vmatprep.subr.mxu0 0.0
  %2157 = vmatpush1.msra.mxu0 %v2143
  %2158 = vmatprep.subr.mxu0 0.0
  %2159 = vmatpush1.msra.mxu0 0.0
  %2160 = vmatprep.subr.mxu0 0.0
  %2161 = vmatpush1.msra.mxu0 0.0
  %2162 = vmatprep.subr.mxu0 0.0
  %2163 = vmatpush1.msra.mxu0 0.0
  %2164 = vmatprep.subr.mxu0 0.0
  %2165 = vmatpush1.msra.mxu0 0.0
  %2166 = vmatprep.subr.mxu0 0.0
  %2167 = vmatpush1.msra.mxu0 0.0
  %2168 = vmatprep.subr.mxu0 0.0
  %2169 = vmatpush1.msra.mxu0 0.0
  %2170 = vmatprep.subr.mxu0 0.0
  %2171 = vmatpush1.msra.mxu0 0.0
  %2172 = vmatprep.subr.mxu0 0.0
  %2173 = vmatpush1.msra.mxu0 0.0
  %2174 = vmatprep.subr.mxu0 0.0
  %2175 = vmatpush1.msra.mxu0 0.0
  %2176 = vmatprep.subr.mxu0 0.0
  %2177 = vmatpush1.msra.mxu0 0.0
  %2178 = vmatprep.subr.mxu0 0.0
  %2179 = vmatpush1.msra.mxu0 0.0
  %2180 = vmatprep.subr.mxu0 0.0
  %2181 = vmatpush1.msra.mxu0 0.0
  %2182 = vmatprep.subr.mxu0 0.0
  %2183 = vmatpush1.msra.mxu0 0.0
  %2184 = vmatprep.subr.mxu0 0.0
  %2185 = vmatpush1.msra.mxu0 0.0
  %2186 = vmatprep.subr.mxu0 0.0
  %2187 = vmatpush1.msra.mxu0 0.0
  %2188 = vmatprep.subr.mxu0 0.0
  %2189 = vmatpush1.msra.mxu0 0.0
  %2190 = vmatprep.subr.mxu0 0.0
  %2191 = vmatpush1.msra.mxu0 0.0
  %2192 = vmatprep.subr.mxu0 0.0
  %2193 = vmatpush1.msra.mxu0 0.0
  %2194 = vmatprep.subr.mxu0 0.0
  %2195 = vmatpush1.msra.mxu0 0.0
  %2196 = vmatprep.subr.mxu0 0.0
  %2197 = vmatpush1.msra.mxu0 0.0
  %2198 = vmatprep.subr.mxu0 0.0
  %2199 = vmatpush1.msra.mxu0 0.0
  %2200 = vmatprep.subr.mxu0 0.0
  %2201 = vmatpush1.msra.mxu0 0.0
  %2202 = vmatprep.subr.mxu0 0.0
  %2203 = vmatpush1.msra.mxu0 0.0
  %2204 = vmatprep.subr.mxu0 0.0
  %2205 = vmatpush1.msra.mxu0 0.0
  %2206 = vmatprep.subr.mxu0 0.0
  %2207 = vmatpush1.msra.mxu0 0.0
  %2208 = vmatprep.subr.mxu0 0.0
  %2209 = vmatpush1.msra.mxu0 0.0
  %2210 = vmatprep.subr.mxu0 0.0
  %2211 = vmatpush1.msra.mxu0 0.0
  %2212 = vmatprep.subr.mxu0 0.0
  %2213 = vmatpush1.msra.mxu0 0.0
  %2214 = vmatprep.mubr.f32.mxu0 0.0
  %2215 = vmatmul.mubr.f32.gmra.mrb[0].mxu0 %v2145
  %v2216 = vpop.f32.mrb[0].mxu0
  %v2217 = vadd.f32 0.0, %v2216
  %v2218 = vpop.f32.mrb[0].mxu0
  %2219 = vmatprep.mubr.f32.mxu0 0.0
  %2220 = vmatmul.mubr.f32.gmra.mrb[0].mxu0 %v2148
  %v2221 = vpop.f32.mrb[0].mxu0
  %v2222 = vadd.f32 0.0, %v2221
  %v2223 = vpop.f32.mrb[0].mxu0
  %2224 = vdwg.mxu0
  %2226 = vrot.lane.b32.xlu0 %v2217, 96
  %v2227 = vpop.permute.xlu0 %2226
  %v2228 = vsel %vm100, %v2217, 0
  %v2230 = vsel %vm100, %v2227, 0
  %2232 = vmatprep.subr.mxu0 0.0
  %2233 = vmatpush1.xpose.msra.mxu0 %v2230
  %2234 = vmatprep.subr.mxu0 0.0
  %2235 = vmatpush1.xpose.msra.mxu0 0.0
  %2236 = vmatprep.subr.mxu0 0.0
  %2237 = vmatpush1.xpose.msra.mxu0 0.0
  %2238 = vmatprep.subr.mxu0 0.0
  %2239 = vmatpush1.xpose.msra.mxu0 0.0
  %2240 = vmatprep.subr.mxu0 0.0
  %2241 = vmatpush1.xpose.msra.mxu0 0.0
  %2242 = vmatprep.subr.mxu0 0.0
  %2243 = vmatpush1.xpose.msra.mxu0 0.0
  %2244 = vmatprep.subr.mxu0 0.0
  %2245 = vmatpush1.xpose.msra.mxu0 0.0
  %2246 = vmatprep.subr.mxu0 0.0
  %2247 = vmatpush1.xpose.msra.mxu0 0.0
  %2248 = vmatprep.subr.mxu0 0.0
  %2249 = vmatpush1.xpose.msra.mxu0 0.0
  %2250 = vmatprep.subr.mxu0 0.0
  %2251 = vmatpush1.xpose.msra.mxu0 0.0
  %2252 = vmatprep.subr.mxu0 0.0
  %2253 = vmatpush1.xpose.msra.mxu0 0.0
  %2254 = vmatprep.subr.mxu0 0.0
  %2255 = vmatpush1.xpose.msra.mxu0 0.0
  %2256 = vmatprep.subr.mxu0 0.0
  %2257 = vmatpush1.xpose.msra.mxu0 0.0
  %2258 = vmatprep.subr.mxu0 0.0
  %2259 = vmatpush1.xpose.msra.mxu0 0.0
  %2260 = vmatprep.subr.mxu0 0.0
  %2261 = vmatpush1.xpose.msra.mxu0 0.0
  %2262 = vmatprep.subr.mxu0 0.0
  %2263 = vmatpush1.xpose.msra.mxu0 0.0
  %2264 = vmatprep.subr.mxu0 0.0
  %2265 = vmatpush1.xpose.msra.mxu0 0.0
  %2266 = vmatprep.subr.mxu0 0.0
  %2267 = vmatpush1.xpose.msra.mxu0 0.0
  %2268 = vmatprep.subr.mxu0 0.0
  %2269 = vmatpush1.xpose.msra.mxu0 0.0
  %2270 = vmatprep.subr.mxu0 0.0
  %2271 = vmatpush1.xpose.msra.mxu0 0.0
  %2272 = vmatprep.subr.mxu0 0.0
  %2273 = vmatpush1.xpose.msra.mxu0 0.0
  %2274 = vmatprep.subr.mxu0 0.0
  %2275 = vmatpush1.xpose.msra.mxu0 0.0
  %2276 = vmatprep.subr.mxu0 0.0
  %2277 = vmatpush1.xpose.msra.mxu0 0.0
  %2278 = vmatprep.subr.mxu0 0.0
  %2279 = vmatpush1.xpose.msra.mxu0 0.0
  %2280 = vmatprep.subr.mxu0 0.0
  %2281 = vmatpush1.xpose.msra.mxu0 0.0
  %2282 = vmatprep.subr.mxu0 0.0
  %2283 = vmatpush1.xpose.msra.mxu0 0.0
  %2284 = vmatprep.subr.mxu0 0.0
  %2285 = vmatpush1.xpose.msra.mxu0 0.0
  %2286 = vmatprep.subr.mxu0 0.0
  %2287 = vmatpush1.xpose.msra.mxu0 0.0
  %2288 = vmatprep.subr.mxu0 0.0
  %2289 = vmatpush1.xpose.msra.mxu0 0.0
  %2290 = vmatprep.subr.mxu0 0.0
  %2291 = vmatpush1.xpose.msra.mxu0 0.0
  %2292 = vmatprep.subr.mxu0 0.0
  %2293 = vmatpush1.xpose.msra.mxu0 0.0
  %2294 = vmatprep.subr.mxu0 0.0
  %2295 = vmatpush1.xpose.msra.mxu0 0.0
  %2296 = vmatprep.mubr.f32.mxu0 0.0
  %2297 = vmatmul.mubr.f32.gmra.mrb[0].mxu0 %v2228
  %v2298 = vpop.f32.mrb[0].mxu0
  %v2299 = vadd.f32 0.0, %v2298
  %v2300 = vpop.f32.mrb[0].mxu0
  %2301 = vdwg.mxu0
  %v2302 = vmul.f32 %v2299, 0.25
  %v2303 = vsel %vm1261, %v2302, -1e+09
  %v2304 = vsel %vm1263, %v2303, -inf
  %2305 = vmax.xlane.f32.xlu0 %v2304
  %v2306 = vpop.xlane.xlu0 %2305
  %v2307 = vsub.f32 %v2303, %v2306
  %v2308 = vmul.f32 %v2307, 1.442695
  %v2309 = vpow.pop %v2308
  %v2310 = vsel %vm1263, %v2309, 0.0
  %2311 = vadd.xlane.f32.xlu0 %v2310
  %v2312 = vpop.xlane.xlu0 %2311
  %v2313 = vrcp.pop %v2312
  %v2314 = vmul.f32 %v2309, %v2313
  %2315 = vrot.lane.b32.xlu0 %v2217, 112
  %v2316 = vpop.permute.xlu0 %2315
  %2317 = vrot.lane.b32.xlu0 %v2217, 80
  %v2318 = vpop.permute.xlu0 %2317
  %v2319 = vsel %vm100, %v2316, 0
  %v2321 = vsel %vm100, %v2318, 0
  %2323 = vmatprep.subr.mxu0 0.0
  %2324 = vmatpush1.xpose.msra.mxu0 %v2321
  %2325 = vmatprep.subr.mxu0 0.0
  %2326 = vmatpush1.xpose.msra.mxu0 0.0
  %2327 = vmatprep.subr.mxu0 0.0
  %2328 = vmatpush1.xpose.msra.mxu0 0.0
  %2329 = vmatprep.subr.mxu0 0.0
  %2330 = vmatpush1.xpose.msra.mxu0 0.0
  %2331 = vmatprep.subr.mxu0 0.0
  %2332 = vmatpush1.xpose.msra.mxu0 0.0
  %2333 = vmatprep.subr.mxu0 0.0
  %2334 = vmatpush1.xpose.msra.mxu0 0.0
  %2335 = vmatprep.subr.mxu0 0.0
  %2336 = vmatpush1.xpose.msra.mxu0 0.0
  %2337 = vmatprep.subr.mxu0 0.0
  %2338 = vmatpush1.xpose.msra.mxu0 0.0
  %2339 = vmatprep.subr.mxu0 0.0
  %2340 = vmatpush1.xpose.msra.mxu0 0.0
  %2341 = vmatprep.subr.mxu0 0.0
  %2342 = vmatpush1.xpose.msra.mxu0 0.0
  %2343 = vmatprep.subr.mxu0 0.0
  %2344 = vmatpush1.xpose.msra.mxu0 0.0
  %2345 = vmatprep.subr.mxu0 0.0
  %2346 = vmatpush1.xpose.msra.mxu0 0.0
  %2347 = vmatprep.subr.mxu0 0.0
  %2348 = vmatpush1.xpose.msra.mxu0 0.0
  %2349 = vmatprep.subr.mxu0 0.0
  %2350 = vmatpush1.xpose.msra.mxu0 0.0
  %2351 = vmatprep.subr.mxu0 0.0
  %2352 = vmatpush1.xpose.msra.mxu0 0.0
  %2353 = vmatprep.subr.mxu0 0.0
  %2354 = vmatpush1.xpose.msra.mxu0 0.0
  %2355 = vmatprep.subr.mxu0 0.0
  %2356 = vmatpush1.xpose.msra.mxu0 0.0
  %2357 = vmatprep.subr.mxu0 0.0
  %2358 = vmatpush1.xpose.msra.mxu0 0.0
  %2359 = vmatprep.subr.mxu0 0.0
  %2360 = vmatpush1.xpose.msra.mxu0 0.0
  %2361 = vmatprep.subr.mxu0 0.0
  %2362 = vmatpush1.xpose.msra.mxu0 0.0
  %2363 = vmatprep.subr.mxu0 0.0
  %2364 = vmatpush1.xpose.msra.mxu0 0.0
  %2365 = vmatprep.subr.mxu0 0.0
  %2366 = vmatpush1.xpose.msra.mxu0 0.0
  %2367 = vmatprep.subr.mxu0 0.0
  %2368 = vmatpush1.xpose.msra.mxu0 0.0
  %2369 = vmatprep.subr.mxu0 0.0
  %2370 = vmatpush1.xpose.msra.mxu0 0.0
  %2371 = vmatprep.subr.mxu0 0.0
  %2372 = vmatpush1.xpose.msra.mxu0 0.0
  %2373 = vmatprep.subr.mxu0 0.0
  %2374 = vmatpush1.xpose.msra.mxu0 0.0
  %2375 = vmatprep.subr.mxu0 0.0
  %2376 = vmatpush1.xpose.msra.mxu0 0.0
  %2377 = vmatprep.subr.mxu0 0.0
  %2378 = vmatpush1.xpose.msra.mxu0 0.0
  %2379 = vmatprep.subr.mxu0 0.0
  %2380 = vmatpush1.xpose.msra.mxu0 0.0
  %2381 = vmatprep.subr.mxu0 0.0
  %2382 = vmatpush1.xpose.msra.mxu0 0.0
  %2383 = vmatprep.subr.mxu0 0.0
  %2384 = vmatpush1.xpose.msra.mxu0 0.0
  %2385 = vmatprep.subr.mxu0 0.0
  %2386 = vmatpush1.xpose.msra.mxu0 0.0
  %2387 = vmatprep.mubr.f32.mxu0 0.0
  %2388 = vmatmul.mubr.f32.gmra.mrb[0].mxu0 %v2319
  %v2389 = vpop.f32.mrb[0].mxu0
  %v2390 = vadd.f32 0.0, %v2389
  %v2391 = vpop.f32.mrb[0].mxu0
  %2392 = vdwg.mxu0
  %v2393 = vmul.f32 %v2390, 0.25
  %v2394 = vsel %vm1261, %v2393, -1e+09
  %v2395 = vsel %vm1263, %v2394, -inf
  %2396 = vmax.xlane.f32.xlu0 %v2395
  %v2397 = vpop.xlane.xlu0 %2396
  %v2398 = vsub.f32 %v2394, %v2397
  %v2399 = vmul.f32 %v2398, 1.442695
  %v2400 = vpow.pop %v2399
  %v2401 = vsel %vm1263, %v2400, 0.0
  %2402 = vadd.xlane.f32.xlu0 %v2401
  %v2403 = vpop.xlane.xlu0 %2402
  %v2404 = vrcp.pop %v2403
  %v2405 = vmul.f32 %v2400, %v2404
  %2406 = vrot.lane.b32.xlu0 %v2217, 32
  %v2407 = vpop.permute.xlu0 %2406
  %v2410 = vsel %vm1263, %v2405, 0
  %2412 = vmatprep.subr.mxu0 0.0
  %2413 = vmatpush1.msra.mxu0 %v2407
  %2414 = vmatprep.subr.mxu0 0.0
  %2415 = vmatpush1.msra.mxu0 0.0
  %2416 = vmatprep.subr.mxu0 0.0
  %2417 = vmatpush1.msra.mxu0 0.0
  %2418 = vmatprep.subr.mxu0 0.0
  %2419 = vmatpush1.msra.mxu0 0.0
  %2420 = vmatprep.subr.mxu0 0.0
  %2421 = vmatpush1.msra.mxu0 0.0
  %2422 = vmatprep.subr.mxu0 0.0
  %2423 = vmatpush1.msra.mxu0 0.0
  %2424 = vmatprep.subr.mxu0 0.0
  %2425 = vmatpush1.msra.mxu0 0.0
  %2426 = vmatprep.subr.mxu0 0.0
  %2427 = vmatpush1.msra.mxu0 0.0
  %2428 = vmatprep.subr.mxu0 0.0
  %2429 = vmatpush1.msra.mxu0 0.0
  %2430 = vmatprep.subr.mxu0 0.0
  %2431 = vmatpush1.msra.mxu0 0.0
  %2432 = vmatprep.subr.mxu0 0.0
  %2433 = vmatpush1.msra.mxu0 0.0
  %2434 = vmatprep.subr.mxu0 0.0
  %2435 = vmatpush1.msra.mxu0 0.0
  %2436 = vmatprep.subr.mxu0 0.0
  %2437 = vmatpush1.msra.mxu0 0.0
  %2438 = vmatprep.subr.mxu0 0.0
  %2439 = vmatpush1.msra.mxu0 0.0
  %2440 = vmatprep.subr.mxu0 0.0
  %2441 = vmatpush1.msra.mxu0 0.0
  %2442 = vmatprep.subr.mxu0 0.0
  %2443 = vmatpush1.msra.mxu0 0.0
  %2444 = vmatprep.subr.mxu0 0.0
  %2445 = vmatpush1.msra.mxu0 0.0
  %2446 = vmatprep.subr.mxu0 0.0
  %2447 = vmatpush1.msra.mxu0 0.0
  %2448 = vmatprep.subr.mxu0 0.0
  %2449 = vmatpush1.msra.mxu0 0.0
  %2450 = vmatprep.subr.mxu0 0.0
  %2451 = vmatpush1.msra.mxu0 0.0
  %2452 = vmatprep.subr.mxu0 0.0
  %2453 = vmatpush1.msra.mxu0 0.0
  %2454 = vmatprep.subr.mxu0 0.0
  %2455 = vmatpush1.msra.mxu0 0.0
  %2456 = vmatprep.subr.mxu0 0.0
  %2457 = vmatpush1.msra.mxu0 0.0
  %2458 = vmatprep.subr.mxu0 0.0
  %2459 = vmatpush1.msra.mxu0 0.0
  %2460 = vmatprep.subr.mxu0 0.0
  %2461 = vmatpush1.msra.mxu0 0.0
  %2462 = vmatprep.subr.mxu0 0.0
  %2463 = vmatpush1.msra.mxu0 0.0
  %2464 = vmatprep.subr.mxu0 0.0
  %2465 = vmatpush1.msra.mxu0 0.0
  %2466 = vmatprep.subr.mxu0 0.0
  %2467 = vmatpush1.msra.mxu0 0.0
  %2468 = vmatprep.subr.mxu0 0.0
  %2469 = vmatpush1.msra.mxu0 0.0
  %2470 = vmatprep.subr.mxu0 0.0
  %2471 = vmatpush1.msra.mxu0 0.0
  %2472 = vmatprep.subr.mxu0 0.0
  %2473 = vmatpush1.msra.mxu0 0.0
  %2474 = vmatprep.subr.mxu0 0.0
  %2475 = vmatpush1.msra.mxu0 0.0
  %2476 = vmatprep.mubr.f32.mxu0 0.0
  %2477 = vmatmul.mubr.f32.gmra.mrb[0].mxu0 %v2410
  %v2478 = vpop.f32.mrb[0].mxu0
  %v2479 = vadd.f32 0.0, %v2478
  %v2480 = vpop.f32.mrb[0].mxu0
  %2481 = vdwg.mxu0
  %2482 = vrot.lane.b32.xlu0 %v2217, 64
  %v2483 = vpop.permute.xlu0 %2482
  %v2486 = vsel %vm1263, %v2314, 0
  %2488 = vmatprep.subr.mxu0 0.0
  %2489 = vmatpush1.msra.mxu0 %v2483
  %2490 = vmatprep.subr.mxu0 0.0
  %2491 = vmatpush1.msra.mxu0 0.0
  %2492 = vmatprep.subr.mxu0 0.0
  %2493 = vmatpush1.msra.mxu0 0.0
  %2494 = vmatprep.subr.mxu0 0.0
  %2495 = vmatpush1.msra.mxu0 0.0
  %2496 = vmatprep.subr.mxu0 0.0
  %2497 = vmatpush1.msra.mxu0 0.0
  %2498 = vmatprep.subr.mxu0 0.0
  %2499 = vmatpush1.msra.mxu0 0.0
  %2500 = vmatprep.subr.mxu0 0.0
  %2501 = vmatpush1.msra.mxu0 0.0
  %2502 = vmatprep.subr.mxu0 0.0
  %2503 = vmatpush1.msra.mxu0 0.0
  %2504 = vmatprep.subr.mxu0 0.0
  %2505 = vmatpush1.msra.mxu0 0.0
  %2506 = vmatprep.subr.mxu0 0.0
  %2507 = vmatpush1.msra.mxu0 0.0
  %2508 = vmatprep.subr.mxu0 0.0
  %2509 = vmatpush1.msra.mxu0 0.0
  %2510 = vmatprep.subr.mxu0 0.0
  %2511 = vmatpush1.msra.mxu0 0.0
  %2512 = vmatprep.subr.mxu0 0.0
  %2513 = vmatpush1.msra.mxu0 0.0
  %2514 = vmatprep.subr.mxu0 0.0
  %2515 = vmatpush1.msra.mxu0 0.0
  %2516 = vmatprep.subr.mxu0 0.0
  %2517 = vmatpush1.msra.mxu0 0.0
  %2518 = vmatprep.subr.mxu0 0.0
  %2519 = vmatpush1.msra.mxu0 0.0
  %2520 = vmatprep.subr.mxu0 0.0
  %2521 = vmatpush1.msra.mxu0 0.0
  %2522 = vmatprep.subr.mxu0 0.0
  %2523 = vmatpush1.msra.mxu0 0.0
  %2524 = vmatprep.subr.mxu0 0.0
  %2525 = vmatpush1.msra.mxu0 0.0
  %2526 = vmatprep.subr.mxu0 0.0
  %2527 = vmatpush1.msra.mxu0 0.0
  %2528 = vmatprep.subr.mxu0 0.0
  %2529 = vmatpush1.msra.mxu0 0.0
  %2530 = vmatprep.subr.mxu0 0.0
  %2531 = vmatpush1.msra.mxu0 0.0
  %2532 = vmatprep.subr.mxu0 0.0
  %2533 = vmatpush1.msra.mxu0 0.0
  %2534 = vmatprep.subr.mxu0 0.0
  %2535 = vmatpush1.msra.mxu0 0.0
  %2536 = vmatprep.subr.mxu0 0.0
  %2537 = vmatpush1.msra.mxu0 0.0
  %2538 = vmatprep.subr.mxu0 0.0
  %2539 = vmatpush1.msra.mxu0 0.0
  %2540 = vmatprep.subr.mxu0 0.0
  %2541 = vmatpush1.msra.mxu0 0.0
  %2542 = vmatprep.subr.mxu0 0.0
  %2543 = vmatpush1.msra.mxu0 0.0
  %2544 = vmatprep.subr.mxu0 0.0
  %2545 = vmatpush1.msra.mxu0 0.0
  %2546 = vmatprep.subr.mxu0 0.0
  %2547 = vmatpush1.msra.mxu0 0.0
  %2548 = vmatprep.subr.mxu0 0.0
  %2549 = vmatpush1.msra.mxu0 0.0
  %2550 = vmatprep.subr.mxu0 0.0
  %2551 = vmatpush1.msra.mxu0 0.0
  %2552 = vmatprep.mubr.f32.mxu0 0.0
  %2553 = vmatmul.mubr.f32.gmra.mrb[0].mxu0 %v2486
  %v2554 = vpop.f32.mrb[0].mxu0
  %v2555 = vadd.f32 %v2479, %v2554
  %v2556 = vpop.f32.mrb[0].mxu0
  %2557 = vdwg.mxu0
  %2559 = vrot.lane.b32.xlu0 %v2222, 96
  %v2560 = vpop.permute.xlu0 %2559
  %v2561 = vsel %vm100, %v2222, 0
  %v2563 = vsel %vm100, %v2560, 0
  %2565 = vmatprep.subr.mxu0 0.0
  %2566 = vmatpush1.xpose.msra.mxu0 %v2563
  %2567 = vmatprep.subr.mxu0 0.0
  %2568 = vmatpush1.xpose.msra.mxu0 0.0
  %2569 = vmatprep.subr.mxu0 0.0
  %2570 = vmatpush1.xpose.msra.mxu0 0.0
  %2571 = vmatprep.subr.mxu0 0.0
  %2572 = vmatpush1.xpose.msra.mxu0 0.0
  %2573 = vmatprep.subr.mxu0 0.0
  %2574 = vmatpush1.xpose.msra.mxu0 0.0
  %2575 = vmatprep.subr.mxu0 0.0
  %2576 = vmatpush1.xpose.msra.mxu0 0.0
  %2577 = vmatprep.subr.mxu0 0.0
  %2578 = vmatpush1.xpose.msra.mxu0 0.0
  %2579 = vmatprep.subr.mxu0 0.0
  %2580 = vmatpush1.xpose.msra.mxu0 0.0
  %2581 = vmatprep.subr.mxu0 0.0
  %2582 = vmatpush1.xpose.msra.mxu0 0.0
  %2583 = vmatprep.subr.mxu0 0.0
  %2584 = vmatpush1.xpose.msra.mxu0 0.0
  %2585 = vmatprep.subr.mxu0 0.0
  %2586 = vmatpush1.xpose.msra.mxu0 0.0
  %2587 = vmatprep.subr.mxu0 0.0
  %2588 = vmatpush1.xpose.msra.mxu0 0.0
  %2589 = vmatprep.subr.mxu0 0.0
  %2590 = vmatpush1.xpose.msra.mxu0 0.0
  %2591 = vmatprep.subr.mxu0 0.0
  %2592 = vmatpush1.xpose.msra.mxu0 0.0
  %2593 = vmatprep.subr.mxu0 0.0
  %2594 = vmatpush1.xpose.msra.mxu0 0.0
  %2595 = vmatprep.subr.mxu0 0.0
  %2596 = vmatpush1.xpose.msra.mxu0 0.0
  %2597 = vmatprep.subr.mxu0 0.0
  %2598 = vmatpush1.xpose.msra.mxu0 0.0
  %2599 = vmatprep.subr.mxu0 0.0
  %2600 = vmatpush1.xpose.msra.mxu0 0.0
  %2601 = vmatprep.subr.mxu0 0.0
  %2602 = vmatpush1.xpose.msra.mxu0 0.0
  %2603 = vmatprep.subr.mxu0 0.0
  %2604 = vmatpush1.xpose.msra.mxu0 0.0
  %2605 = vmatprep.subr.mxu0 0.0
  %2606 = vmatpush1.xpose.msra.mxu0 0.0
  %2607 = vmatprep.subr.mxu0 0.0
  %2608 = vmatpush1.xpose.msra.mxu0 0.0
  %2609 = vmatprep.subr.mxu0 0.0
  %2610 = vmatpush1.xpose.msra.mxu0 0.0
  %2611 = vmatprep.subr.mxu0 0.0
  %2612 = vmatpush1.xpose.msra.mxu0 0.0
  %2613 = vmatprep.subr.mxu0 0.0
  %2614 = vmatpush1.xpose.msra.mxu0 0.0
  %2615 = vmatprep.subr.mxu0 0.0
  %2616 = vmatpush1.xpose.msra.mxu0 0.0
  %2617 = vmatprep.subr.mxu0 0.0
  %2618 = vmatpush1.xpose.msra.mxu0 0.0
  %2619 = vmatprep.subr.mxu0 0.0
  %2620 = vmatpush1.xpose.msra.mxu0 0.0
  %2621 = vmatprep.subr.mxu0 0.0
  %2622 = vmatpush1.xpose.msra.mxu0 0.0
  %2623 = vmatprep.subr.mxu0 0.0
  %2624 = vmatpush1.xpose.msra.mxu0 0.0
  %2625 = vmatprep.subr.mxu0 0.0
  %2626 = vmatpush1.xpose.msra.mxu0 0.0
  %2627 = vmatprep.subr.mxu0 0.0
  %2628 = vmatpush1.xpose.msra.mxu0 0.0
  %2629 = vmatprep.mubr.f32.mxu0 0.0
  %2630 = vmatmul.mubr.f32.gmra.mrb[0].mxu0 %v2561
  %v2631 = vpop.f32.mrb[0].mxu0
  %v2632 = vadd.f32 0.0, %v2631
  %v2633 = vpop.f32.mrb[0].mxu0
  %2634 = vdwg.mxu0
  %v2635 = vmul.f32 %v2632, 0.25
  %v2636 = vsel %vm1600, %v2635, -1e+09
  %v2637 = vsel %vm1263, %v2636, -inf
  %2638 = vmax.xlane.f32.xlu0 %v2637
  %v2639 = vpop.xlane.xlu0 %2638
  %v2640 = vsub.f32 %v2636, %v2639
  %v2641 = vmul.f32 %v2640, 1.442695
  %v2642 = vpow.pop %v2641
  %v2643 = vsel %vm1263, %v2642, 0.0
  %2644 = vadd.xlane.f32.xlu0 %v2643
  %v2645 = vpop.xlane.xlu0 %2644
  %v2646 = vrcp.pop %v2645
  %v2647 = vmul.f32 %v2642, %v2646
  %2648 = vrot.lane.b32.xlu0 %v2222, 112
  %v2649 = vpop.permute.xlu0 %2648
  %2650 = vrot.lane.b32.xlu0 %v2222, 80
  %v2651 = vpop.permute.xlu0 %2650
  %v2652 = vsel %vm100, %v2649, 0
  %v2654 = vsel %vm100, %v2651, 0
  %2656 = vmatprep.subr.mxu0 0.0
  %2657 = vmatpush1.xpose.msra.mxu0 %v2654
  %2658 = vmatprep.subr.mxu0 0.0
  %2659 = vmatpush1.xpose.msra.mxu0 0.0
  %2660 = vmatprep.subr.mxu0 0.0
  %2661 = vmatpush1.xpose.msra.mxu0 0.0
  %2662 = vmatprep.subr.mxu0 0.0
  %2663 = vmatpush1.xpose.msra.mxu0 0.0
  %2664 = vmatprep.subr.mxu0 0.0
  %2665 = vmatpush1.xpose.msra.mxu0 0.0
  %2666 = vmatprep.subr.mxu0 0.0
  %2667 = vmatpush1.xpose.msra.mxu0 0.0
  %2668 = vmatprep.subr.mxu0 0.0
  %2669 = vmatpush1.xpose.msra.mxu0 0.0
  %2670 = vmatprep.subr.mxu0 0.0
  %2671 = vmatpush1.xpose.msra.mxu0 0.0
  %2672 = vmatprep.subr.mxu0 0.0
  %2673 = vmatpush1.xpose.msra.mxu0 0.0
  %2674 = vmatprep.subr.mxu0 0.0
  %2675 = vmatpush1.xpose.msra.mxu0 0.0
  %2676 = vmatprep.subr.mxu0 0.0
  %2677 = vmatpush1.xpose.msra.mxu0 0.0
  %2678 = vmatprep.subr.mxu0 0.0
  %2679 = vmatpush1.xpose.msra.mxu0 0.0
  %2680 = vmatprep.subr.mxu0 0.0
  %2681 = vmatpush1.xpose.msra.mxu0 0.0
  %2682 = vmatprep.subr.mxu0 0.0
  %2683 = vmatpush1.xpose.msra.mxu0 0.0
  %2684 = vmatprep.subr.mxu0 0.0
  %2685 = vmatpush1.xpose.msra.mxu0 0.0
  %2686 = vmatprep.subr.mxu0 0.0
  %2687 = vmatpush1.xpose.msra.mxu0 0.0
  %2688 = vmatprep.subr.mxu0 0.0
  %2689 = vmatpush1.xpose.msra.mxu0 0.0
  %2690 = vmatprep.subr.mxu0 0.0
  %2691 = vmatpush1.xpose.msra.mxu0 0.0
  %2692 = vmatprep.subr.mxu0 0.0
  %2693 = vmatpush1.xpose.msra.mxu0 0.0
  %2694 = vmatprep.subr.mxu0 0.0
  %2695 = vmatpush1.xpose.msra.mxu0 0.0
  %2696 = vmatprep.subr.mxu0 0.0
  %2697 = vmatpush1.xpose.msra.mxu0 0.0
  %2698 = vmatprep.subr.mxu0 0.0
  %2699 = vmatpush1.xpose.msra.mxu0 0.0
  %2700 = vmatprep.subr.mxu0 0.0
  %2701 = vmatpush1.xpose.msra.mxu0 0.0
  %2702 = vmatprep.subr.mxu0 0.0
  %2703 = vmatpush1.xpose.msra.mxu0 0.0
  %2704 = vmatprep.subr.mxu0 0.0
  %2705 = vmatpush1.xpose.msra.mxu0 0.0
  %2706 = vmatprep.subr.mxu0 0.0
  %2707 = vmatpush1.xpose.msra.mxu0 0.0
  %2708 = vmatprep.subr.mxu0 0.0
  %2709 = vmatpush1.xpose.msra.mxu0 0.0
  %2710 = vmatprep.subr.mxu0 0.0
  %2711 = vmatpush1.xpose.msra.mxu0 0.0
  %2712 = vmatprep.subr.mxu0 0.0
  %2713 = vmatpush1.xpose.msra.mxu0 0.0
  %2714 = vmatprep.subr.mxu0 0.0
  %2715 = vmatpush1.xpose.msra.mxu0 0.0
  %2716 = vmatprep.subr.mxu0 0.0
  %2717 = vmatpush1.xpose.msra.mxu0 0.0
  %2718 = vmatprep.subr.mxu0 0.0
  %2719 = vmatpush1.xpose.msra.mxu0 0.0
  %2720 = vmatprep.mubr.f32.mxu0 0.0
  %2721 = vmatmul.mubr.f32.gmra.mrb[0].mxu0 %v2652
  %v2722 = vpop.f32.mrb[0].mxu0
  %v2723 = vadd.f32 0.0, %v2722
  %v2724 = vpop.f32.mrb[0].mxu0
  %2725 = vdwg.mxu0
  %v2726 = vmul.f32 %v2723, 0.25
  %v2727 = vsel %vm1600, %v2726, -1e+09
  %v2728 = vsel %vm1263, %v2727, -inf
  %2729 = vmax.xlane.f32.xlu0 %v2728
  %v2730 = vpop.xlane.xlu0 %2729
  %v2731 = vsub.f32 %v2727, %v2730
  %v2732 = vmul.f32 %v2731, 1.442695
  %v2733 = vpow.pop %v2732
  %v2734 = vsel %vm1263, %v2733, 0.0
  %2735 = vadd.xlane.f32.xlu0 %v2734
  %v2736 = vpop.xlane.xlu0 %2735
  %v2737 = vrcp.pop %v2736
  %v2738 = vmul.f32 %v2733, %v2737
  %2739 = vrot.lane.b32.xlu0 %v2222, 32
  %v2740 = vpop.permute.xlu0 %2739
  %v2743 = vsel %vm1263, %v2738, 0
  %2745 = vmatprep.subr.mxu0 0.0
  %2746 = vmatpush1.msra.mxu0 %v2740
  %2747 = vmatprep.subr.mxu0 0.0
  %2748 = vmatpush1.msra.mxu0 0.0
  %2749 = vmatprep.subr.mxu0 0.0
  %2750 = vmatpush1.msra.mxu0 0.0
  %2751 = vmatprep.subr.mxu0 0.0
  %2752 = vmatpush1.msra.mxu0 0.0
  %2753 = vmatprep.subr.mxu0 0.0
  %2754 = vmatpush1.msra.mxu0 0.0
  %2755 = vmatprep.subr.mxu0 0.0
  %2756 = vmatpush1.msra.mxu0 0.0
  %2757 = vmatprep.subr.mxu0 0.0
  %2758 = vmatpush1.msra.mxu0 0.0
  %2759 = vmatprep.subr.mxu0 0.0
  %2760 = vmatpush1.msra.mxu0 0.0
  %2761 = vmatprep.subr.mxu0 0.0
  %2762 = vmatpush1.msra.mxu0 0.0
  %2763 = vmatprep.subr.mxu0 0.0
  %2764 = vmatpush1.msra.mxu0 0.0
  %2765 = vmatprep.subr.mxu0 0.0
  %2766 = vmatpush1.msra.mxu0 0.0
  %2767 = vmatprep.subr.mxu0 0.0
  %2768 = vmatpush1.msra.mxu0 0.0
  %2769 = vmatprep.subr.mxu0 0.0
  %2770 = vmatpush1.msra.mxu0 0.0
  %2771 = vmatprep.subr.mxu0 0.0
  %2772 = vmatpush1.msra.mxu0 0.0
  %2773 = vmatprep.subr.mxu0 0.0
  %2774 = vmatpush1.msra.mxu0 0.0
  %2775 = vmatprep.subr.mxu0 0.0
  %2776 = vmatpush1.msra.mxu0 0.0
  %2777 = vmatprep.subr.mxu0 0.0
  %2778 = vmatpush1.msra.mxu0 0.0
  %2779 = vmatprep.subr.mxu0 0.0
  %2780 = vmatpush1.msra.mxu0 0.0
  %2781 = vmatprep.subr.mxu0 0.0
  %2782 = vmatpush1.msra.mxu0 0.0
  %2783 = vmatprep.subr.mxu0 0.0
  %2784 = vmatpush1.msra.mxu0 0.0
  %2785 = vmatprep.subr.mxu0 0.0
  %2786 = vmatpush1.msra.mxu0 0.0
  %2787 = vmatprep.subr.mxu0 0.0
  %2788 = vmatpush1.msra.mxu0 0.0
  %2789 = vmatprep.subr.mxu0 0.0
  %2790 = vmatpush1.msra.mxu0 0.0
  %2791 = vmatprep.subr.mxu0 0.0
  %2792 = vmatpush1.msra.mxu0 0.0
  %2793 = vmatprep.subr.mxu0 0.0
  %2794 = vmatpush1.msra.mxu0 0.0
  %2795 = vmatprep.subr.mxu0 0.0
  %2796 = vmatpush1.msra.mxu0 0.0
  %2797 = vmatprep.subr.mxu0 0.0
  %2798 = vmatpush1.msra.mxu0 0.0
  %2799 = vmatprep.subr.mxu0 0.0
  %2800 = vmatpush1.msra.mxu0 0.0
  %2801 = vmatprep.subr.mxu0 0.0
  %2802 = vmatpush1.msra.mxu0 0.0
  %2803 = vmatprep.subr.mxu0 0.0
  %2804 = vmatpush1.msra.mxu0 0.0
  %2805 = vmatprep.subr.mxu0 0.0
  %2806 = vmatpush1.msra.mxu0 0.0
  %2807 = vmatprep.subr.mxu0 0.0
  %2808 = vmatpush1.msra.mxu0 0.0
  %2809 = vmatprep.mubr.f32.mxu0 0.0
  %2810 = vmatmul.mubr.f32.gmra.mrb[0].mxu0 %v2743
  %v2811 = vpop.f32.mrb[0].mxu0
  %v2812 = vadd.f32 0.0, %v2811
  %v2813 = vpop.f32.mrb[0].mxu0
  %2814 = vdwg.mxu0
  %2815 = vrot.lane.b32.xlu0 %v2222, 64
  %v2816 = vpop.permute.xlu0 %2815
  %v2819 = vsel %vm1263, %v2647, 0
  %2821 = vmatprep.subr.mxu0 0.0
  %2822 = vmatpush1.msra.mxu0 %v2816
  %2823 = vmatprep.subr.mxu0 0.0
  %2824 = vmatpush1.msra.mxu0 0.0
  %2825 = vmatprep.subr.mxu0 0.0
  %2826 = vmatpush1.msra.mxu0 0.0
  %2827 = vmatprep.subr.mxu0 0.0
  %2828 = vmatpush1.msra.mxu0 0.0
  %2829 = vmatprep.subr.mxu0 0.0
  %2830 = vmatpush1.msra.mxu0 0.0
  %2831 = vmatprep.subr.mxu0 0.0
  %2832 = vmatpush1.msra.mxu0 0.0
  %2833 = vmatprep.subr.mxu0 0.0
  %2834 = vmatpush1.msra.mxu0 0.0
  %2835 = vmatprep.subr.mxu0 0.0
  %2836 = vmatpush1.msra.mxu0 0.0
  %2837 = vmatprep.subr.mxu0 0.0
  %2838 = vmatpush1.msra.mxu0 0.0
  %2839 = vmatprep.subr.mxu0 0.0
  %2840 = vmatpush1.msra.mxu0 0.0
  %2841 = vmatprep.subr.mxu0 0.0
  %2842 = vmatpush1.msra.mxu0 0.0
  %2843 = vmatprep.subr.mxu0 0.0
  %2844 = vmatpush1.msra.mxu0 0.0
  %2845 = vmatprep.subr.mxu0 0.0
  %2846 = vmatpush1.msra.mxu0 0.0
  %2847 = vmatprep.subr.mxu0 0.0
  %2848 = vmatpush1.msra.mxu0 0.0
  %2849 = vmatprep.subr.mxu0 0.0
  %2850 = vmatpush1.msra.mxu0 0.0
  %2851 = vmatprep.subr.mxu0 0.0
  %2852 = vmatpush1.msra.mxu0 0.0
  %2853 = vmatprep.subr.mxu0 0.0
  %2854 = vmatpush1.msra.mxu0 0.0
  %2855 = vmatprep.subr.mxu0 0.0
  %2856 = vmatpush1.msra.mxu0 0.0
  %2857 = vmatprep.subr.mxu0 0.0
  %2858 = vmatpush1.msra.mxu0 0.0
  %2859 = vmatprep.subr.mxu0 0.0
  %2860 = vmatpush1.msra.mxu0 0.0
  %2861 = vmatprep.subr.mxu0 0.0
  %2862 = vmatpush1.msra.mxu0 0.0
  %2863 = vmatprep.subr.mxu0 0.0
  %2864 = vmatpush1.msra.mxu0 0.0
  %2865 = vmatprep.subr.mxu0 0.0
  %2866 = vmatpush1.msra.mxu0 0.0
  %2867 = vmatprep.subr.mxu0 0.0
  %2868 = vmatpush1.msra.mxu0 0.0
  %2869 = vmatprep.subr.mxu0 0.0
  %2870 = vmatpush1.msra.mxu0 0.0
  %2871 = vmatprep.subr.mxu0 0.0
  %2872 = vmatpush1.msra.mxu0 0.0
  %2873 = vmatprep.subr.mxu0 0.0
  %2874 = vmatpush1.msra.mxu0 0.0
  %2875 = vmatprep.subr.mxu0 0.0
  %2876 = vmatpush1.msra.mxu0 0.0
  %2877 = vmatprep.subr.mxu0 0.0
  %2878 = vmatpush1.msra.mxu0 0.0
  %2879 = vmatprep.subr.mxu0 0.0
  %2880 = vmatpush1.msra.mxu0 0.0
  %2881 = vmatprep.subr.mxu0 0.0
  %2882 = vmatpush1.msra.mxu0 0.0
  %2883 = vmatprep.subr.mxu0 0.0
  %2884 = vmatpush1.msra.mxu0 0.0
  %2885 = vmatprep.mubr.f32.mxu0 0.0
  %2886 = vmatmul.mubr.f32.gmra.mrb[0].mxu0 %v2819
  %v2887 = vpop.f32.mrb[0].mxu0
  %v2888 = vadd.f32 %v2812, %v2887
  %v2889 = vpop.f32.mrb[0].mxu0
  %2890 = vdwg.mxu0
  %v2891 = vadd.f32 %v2555, %v2137
  %v2892 = vadd.f32 %v2888, %v2138
  %s2893 = scalar_lea.vmem %s14, 1
  %v2894 = vld [vmem:[%s2893] sm:$0x1]
  %s2895 = scalar_lea.vmem %s15, 1
  %v2896 = vld [vmem:[%s2895] sm:$0x1]
  %v2897 = vsel %vm191, %v2891, 0.0
  %2898 = vadd.xlane.f32.xlu0 %v2897
  %v2899 = vpop.xlane.xlu0 %2898
  %v2900 = vsel %vm191, %v2892, 0.0
  %2901 = vadd.xlane.f32.xlu0 %v2900
  %v2902 = vpop.xlane.xlu0 %2901
  %v2903 = vmul.f32 %v2899, %v1051
  %v2904 = vmul.f32 %v2902, %v1051
  %v2905 = vsub.f32 %v2891, %v2903
  %v2906 = vsub.f32 %v2892, %v2904
  %v2907 = vmul.f32 %v2905, %v2905
  %v2908 = vmul.f32 %v2906, %v2906
  %v2909 = vsel %vm191, %v2907, 0.0
  %2910 = vadd.xlane.f32.xlu0 %v2909
  %v2911 = vpop.xlane.xlu0 %2910
  %v2912 = vsel %vm191, %v2908, 0.0
  %2913 = vadd.xlane.f32.xlu0 %v2912
  %v2914 = vpop.xlane.xlu0 %2913
  %v2915 = vmul.f32 %v2911, %v1051
  %v2916 = vmul.f32 %v2914, %v1051
  %v2917 = vadd.f32 %v2915, 1e-06
  %v2918 = vadd.f32 %v2916, 1e-06
  %v2919 = vrsqrt.pop %v2917
  %v2920 = vrsqrt.pop %v2918
  %v2921 = vmul.f32 %v2905, %v2919
  %v2922 = vmul.f32 %v2906, %v2920
  %v2924 = vlaneseq
  %v2925 = vshrl.u32 %v2924, 7
  %v2926 = vsub.s32 0, %v2925
  %v2927 = vrot.slane %v2894, %v2926
  %v2929 = vmul.f32 %v2921, %v2927
  %v2930 = vmul.f32 %v2922, %v2927
  %v2932 = vlaneseq
  %v2933 = vshrl.u32 %v2932, 7
  %v2934 = vsub.s32 0, %v2933
  %v2935 = vrot.slane %v2896, %v2934
  %v2937 = vadd.f32 %v2929, %v2935
  %v2938 = vadd.f32 %v2930, %v2935
  %s2939 = scalar_lea.vmem %s16, 32
  %v2940 = vld [vmem:[%s2939] sm:$0xff]
  %v2941 = vld [vmem:[%s2939 + $0x8] sm:$0xff]
  %v2942 = vld [vmem:[%s2939 + $0x10] sm:$0xff]
  %v2943 = vld [vmem:[%s2939 + $0x18] sm:$0xff]
  %s2944 = scalar_lea.vmem %s17, 1
  %v2945 = vld [vmem:[%s2944] sm:$0x1]
  %v2947 = vlaneseq
  %v2948 = vshrl.u32 %v2947, 7
  %v2949 = vsub.s32 0, %v2948
  %v2950 = vrot.slane %v2945, %v2949
  %v2953 = vsel %vm191, %v2937, 0
  %v2956 = vsel %vm191, %v2938, 0
  %2958 = vmatprep.subr.mxu0 0.0
  %2959 = vmatpush1.msra.mxu0 %v2940
  %2960 = vmatprep.subr.mxu0 0.0
  %2961 = vmatpush1.msra.mxu0 %v2941
  %2962 = vmatprep.subr.mxu0 0.0
  %2963 = vmatpush1.msra.mxu0 %v2942
  %2964 = vmatprep.subr.mxu0 0.0
  %2965 = vmatpush1.msra.mxu0 %v2943
  %2966 = vmatprep.subr.mxu0 0.0
  %2967 = vmatpush1.msra.mxu0 0.0
  %2968 = vmatprep.subr.mxu0 0.0
  %2969 = vmatpush1.msra.mxu0 0.0
  %2970 = vmatprep.subr.mxu0 0.0
  %2971 = vmatpush1.msra.mxu0 0.0
  %2972 = vmatprep.subr.mxu0 0.0
  %2973 = vmatpush1.msra.mxu0 0.0
  %2974 = vmatprep.subr.mxu0 0.0
  %2975 = vmatpush1.msra.mxu0 0.0
  %2976 = vmatprep.subr.mxu0 0.0
  %2977 = vmatpush1.msra.mxu0 0.0
  %2978 = vmatprep.subr.mxu0 0.0
  %2979 = vmatpush1.msra.mxu0 0.0
  %2980 = vmatprep.subr.mxu0 0.0
  %2981 = vmatpush1.msra.mxu0 0.0
  %2982 = vmatprep.subr.mxu0 0.0
  %2983 = vmatpush1.msra.mxu0 0.0
  %2984 = vmatprep.subr.mxu0 0.0
  %2985 = vmatpush1.msra.mxu0 0.0
  %2986 = vmatprep.subr.mxu0 0.0
  %2987 = vmatpush1.msra.mxu0 0.0
  %2988 = vmatprep.subr.mxu0 0.0
  %2989 = vmatpush1.msra.mxu0 0.0
  %2990 = vmatprep.subr.mxu0 0.0
  %2991 = vmatpush1.msra.mxu0 0.0
  %2992 = vmatprep.subr.mxu0 0.0
  %2993 = vmatpush1.msra.mxu0 0.0
  %2994 = vmatprep.subr.mxu0 0.0
  %2995 = vmatpush1.msra.mxu0 0.0
  %2996 = vmatprep.subr.mxu0 0.0
  %2997 = vmatpush1.msra.mxu0 0.0
  %2998 = vmatprep.subr.mxu0 0.0
  %2999 = vmatpush1.msra.mxu0 0.0
  %3000 = vmatprep.subr.mxu0 0.0
  %3001 = vmatpush1.msra.mxu0 0.0
  %3002 = vmatprep.subr.mxu0 0.0
  %3003 = vmatpush1.msra.mxu0 0.0
  %3004 = vmatprep.subr.mxu0 0.0
  %3005 = vmatpush1.msra.mxu0 0.0
  %3006 = vmatprep.subr.mxu0 0.0
  %3007 = vmatpush1.msra.mxu0 0.0
  %3008 = vmatprep.subr.mxu0 0.0
  %3009 = vmatpush1.msra.mxu0 0.0
  %3010 = vmatprep.subr.mxu0 0.0
  %3011 = vmatpush1.msra.mxu0 0.0
  %3012 = vmatprep.subr.mxu0 0.0
  %3013 = vmatpush1.msra.mxu0 0.0
  %3014 = vmatprep.subr.mxu0 0.0
  %3015 = vmatpush1.msra.mxu0 0.0
  %3016 = vmatprep.subr.mxu0 0.0
  %3017 = vmatpush1.msra.mxu0 0.0
  %3018 = vmatprep.subr.mxu0 0.0
  %3019 = vmatpush1.msra.mxu0 0.0
  %3020 = vmatprep.subr.mxu0 0.0
  %3021 = vmatpush1.msra.mxu0 0.0
  %3022 = vmatprep.mubr.f32.mxu0 0.0
  %3023 = vmatmul.mubr.f32.gmra.mrb[0].mxu0 %v2953
  %v3024 = vpop.f32.mrb[0].mxu0
  %v3025 = vadd.f32 %v2950, %v3024
  %v3026 = vpop.f32.mrb[0].mxu0
  %3027 = vmatprep.mubr.f32.mxu0 0.0
  %3028 = vmatmul.mubr.f32.gmra.mrb[0].mxu0 %v2956
  %v3029 = vpop.f32.mrb[0].mxu0
  %v3030 = vadd.f32 %v2950, %v3029
  %v3031 = vpop.f32.mrb[0].mxu0
  %3032 = vdwg.mxu0
  %v3033 = vmax.f32 %v3025, 0.0
  %v3034 = vmax.f32 %v3030, 0.0
  %s3035 = scalar_lea.vmem %s18, 64
  %v3036 = vld [vmem:[%s3035] sm:$0xff]
  %v3037 = vld [vmem:[%s3035 + $0x8] sm:$0xff]
  %v3038 = vld [vmem:[%s3035 + $0x10] sm:$0xff]
  %v3039 = vld [vmem:[%s3035 + $0x18] sm:$0xff]
  %v3040 = vld [vmem:[%s3035 + $0x20] sm:$0xff]
  %v3041 = vld [vmem:[%s3035 + $0x28] sm:$0xff]
  %v3042 = vld [vmem:[%s3035 + $0x30] sm:$0xff]
  %v3043 = vld [vmem:[%s3035 + $0x38] sm:$0xff]
  %s3044 = scalar_lea.vmem %s19, 1
  %v3045 = vld [vmem:[%s3044] sm:$0x1]
  %v3047 = vlaneseq
  %v3048 = vshrl.u32 %v3047, 7
  %v3049 = vsub.s32 0, %v3048
  %v3050 = vrot.slane %v3045, %v3049
  %v3053 = vsel %vm2011, %v3033, 0
  %v3056 = vsel %vm2011, %v3034, 0
  %3058 = vmatprep.subr.mxu0 0.0
  %3059 = vmatpush1.msra.mxu0 %v3036
  %3060 = vmatprep.subr.mxu0 0.0
  %3061 = vmatpush1.msra.mxu0 %v3037
  %3062 = vmatprep.subr.mxu0 0.0
  %3063 = vmatpush1.msra.mxu0 %v3038
  %3064 = vmatprep.subr.mxu0 0.0
  %3065 = vmatpush1.msra.mxu0 %v3039
  %3066 = vmatprep.subr.mxu0 0.0
  %3067 = vmatpush1.msra.mxu0 %v3040
  %3068 = vmatprep.subr.mxu0 0.0
  %3069 = vmatpush1.msra.mxu0 %v3041
  %3070 = vmatprep.subr.mxu0 0.0
  %3071 = vmatpush1.msra.mxu0 %v3042
  %3072 = vmatprep.subr.mxu0 0.0
  %3073 = vmatpush1.msra.mxu0 %v3043
  %3074 = vmatprep.subr.mxu0 0.0
  %3075 = vmatpush1.msra.mxu0 0.0
  %3076 = vmatprep.subr.mxu0 0.0
  %3077 = vmatpush1.msra.mxu0 0.0
  %3078 = vmatprep.subr.mxu0 0.0
  %3079 = vmatpush1.msra.mxu0 0.0
  %3080 = vmatprep.subr.mxu0 0.0
  %3081 = vmatpush1.msra.mxu0 0.0
  %3082 = vmatprep.subr.mxu0 0.0
  %3083 = vmatpush1.msra.mxu0 0.0
  %3084 = vmatprep.subr.mxu0 0.0
  %3085 = vmatpush1.msra.mxu0 0.0
  %3086 = vmatprep.subr.mxu0 0.0
  %3087 = vmatpush1.msra.mxu0 0.0
  %3088 = vmatprep.subr.mxu0 0.0
  %3089 = vmatpush1.msra.mxu0 0.0
  %3090 = vmatprep.subr.mxu0 0.0
  %3091 = vmatpush1.msra.mxu0 0.0
  %3092 = vmatprep.subr.mxu0 0.0
  %3093 = vmatpush1.msra.mxu0 0.0
  %3094 = vmatprep.subr.mxu0 0.0
  %3095 = vmatpush1.msra.mxu0 0.0
  %3096 = vmatprep.subr.mxu0 0.0
  %3097 = vmatpush1.msra.mxu0 0.0
  %3098 = vmatprep.subr.mxu0 0.0
  %3099 = vmatpush1.msra.mxu0 0.0
  %3100 = vmatprep.subr.mxu0 0.0
  %3101 = vmatpush1.msra.mxu0 0.0
  %3102 = vmatprep.subr.mxu0 0.0
  %3103 = vmatpush1.msra.mxu0 0.0
  %3104 = vmatprep.subr.mxu0 0.0
  %3105 = vmatpush1.msra.mxu0 0.0
  %3106 = vmatprep.subr.mxu0 0.0
  %3107 = vmatpush1.msra.mxu0 0.0
  %3108 = vmatprep.subr.mxu0 0.0
  %3109 = vmatpush1.msra.mxu0 0.0
  %3110 = vmatprep.subr.mxu0 0.0
  %3111 = vmatpush1.msra.mxu0 0.0
  %3112 = vmatprep.subr.mxu0 0.0
  %3113 = vmatpush1.msra.mxu0 0.0
  %3114 = vmatprep.subr.mxu0 0.0
  %3115 = vmatpush1.msra.mxu0 0.0
  %3116 = vmatprep.subr.mxu0 0.0
  %3117 = vmatpush1.msra.mxu0 0.0
  %3118 = vmatprep.subr.mxu0 0.0
  %3119 = vmatpush1.msra.mxu0 0.0
  %3120 = vmatprep.subr.mxu0 0.0
  %3121 = vmatpush1.msra.mxu0 0.0
  %3122 = vmatprep.mubr.f32.mxu0 0.0
  %3123 = vmatmul.mubr.f32.gmra.mrb[0].mxu0 %v3053
  %v3124 = vpop.f32.mrb[0].mxu0
  %v3125 = vadd.f32 %v3050, %v3124
  %v3126 = vpop.f32.mrb[0].mxu0
  %3127 = vmatprep.mubr.f32.mxu0 0.0
  %3128 = vmatmul.mubr.f32.gmra.mrb[0].mxu0 %v3056
  %v3129 = vpop.f32.mrb[0].mxu0
  %v3130 = vadd.f32 %v3050, %v3129
  %v3131 = vpop.f32.mrb[0].mxu0
  %3132 = vdwg.mxu0
  %v3133 = vadd.f32 %v3125, %v2937
  %v3134 = vadd.f32 %v3130, %v2938
  %s3135 = scalar_lea.vmem %s20, 1
  %v3136 = vld [vmem:[%s3135] sm:$0x1]
  %s3137 = scalar_lea.vmem %s21, 1
  %v3138 = vld [vmem:[%s3137] sm:$0x1]
  %v3139 = vsel %vm191, %v3133, 0.0
  %3140 = vadd.xlane.f32.xlu0 %v3139
  %v3141 = vpop.xlane.xlu0 %3140
  %v3142 = vsel %vm191, %v3134, 0.0
  %3143 = vadd.xlane.f32.xlu0 %v3142
  %v3144 = vpop.xlane.xlu0 %3143
  %v3145 = vmul.f32 %v3141, %v1051
  %v3146 = vmul.f32 %v3144, %v1051
  %v3147 = vsub.f32 %v3133, %v3145
  %v3148 = vsub.f32 %v3134, %v3146
  %v3149 = vmul.f32 %v3147, %v3147
  %v3150 = vmul.f32 %v3148, %v3148
  %v3151 = vsel %vm191, %v3149, 0.0
  %3152 = vadd.xlane.f32.xlu0 %v3151
  %v3153 = vpop.xlane.xlu0 %3152
  %v3154 = vsel %vm191, %v3150, 0.0
  %3155 = vadd.xlane.f32.xlu0 %v3154
  %v3156 = vpop.xlane.xlu0 %3155
  %v3157 = vmul.f32 %v3153, %v1051
  %v3158 = vmul.f32 %v3156, %v1051
  %v3159 = vadd.f32 %v3157, 1e-06
  %v3160 = vadd.f32 %v3158, 1e-06
  %v3161 = vrsqrt.pop %v3159
  %v3162 = vrsqrt.pop %v3160
  %v3163 = vmul.f32 %v3147, %v3161
  %v3164 = vmul.f32 %v3148, %v3162
  %v3166 = vlaneseq
  %v3167 = vshrl.u32 %v3166, 7
  %v3168 = vsub.s32 0, %v3167
  %v3169 = vrot.slane %v3136, %v3168
  %v3171 = vmul.f32 %v3163, %v3169
  %v3172 = vmul.f32 %v3164, %v3169
  %v3174 = vlaneseq
  %v3175 = vshrl.u32 %v3174, 7
  %v3176 = vsub.s32 0, %v3175
  %v3177 = vrot.slane %v3138, %v3176
  %v3179 = vadd.f32 %v3171, %v3177
  %v3180 = vadd.f32 %v3172, %v3177
  %v3181 = vld [vmem:[%s22] sm:$0x1]
  %v3182 = vld [vmem:[%s23] sm:$0x1]
  %v3183 = vsel %vm191, %v3179, 0.0
  %3184 = vadd.xlane.f32.xlu0 %v3183
  %v3185 = vpop.xlane.xlu0 %3184
  %v3186 = vsel %vm191, %v3180, 0.0
  %3187 = vadd.xlane.f32.xlu0 %v3186
  %v3188 = vpop.xlane.xlu0 %3187
  %v3189 = vmul.f32 %v3185, %v1051
  %v3190 = vmul.f32 %v3188, %v1051
  %v3191 = vsub.f32 %v3179, %v3189
  %v3192 = vsub.f32 %v3180, %v3190
  %v3193 = vmul.f32 %v3191, %v3191
  %v3194 = vmul.f32 %v3192, %v3192
  %v3195 = vsel %vm191, %v3193, 0.0
  %3196 = vadd.xlane.f32.xlu0 %v3195
  %v3197 = vpop.xlane.xlu0 %3196
  %v3198 = vsel %vm191, %v3194, 0.0
  %3199 = vadd.xlane.f32.xlu0 %v3198
  %v3200 = vpop.xlane.xlu0 %3199
  %v3201 = vmul.f32 %v3197, %v1051
  %v3202 = vmul.f32 %v3200, %v1051
  %v3203 = vadd.f32 %v3201, 1e-06
  %v3204 = vadd.f32 %v3202, 1e-06
  %v3205 = vrsqrt.pop %v3203
  %v3206 = vrsqrt.pop %v3204
  %v3207 = vmul.f32 %v3191, %v3205
  %v3208 = vmul.f32 %v3192, %v3206
  %v3210 = vlaneseq
  %v3211 = vshrl.u32 %v3210, 7
  %v3212 = vsub.s32 0, %v3211
  %v3213 = vrot.slane %v3181, %v3212
  %v3215 = vmul.f32 %v3207, %v3213
  %v3216 = vmul.f32 %v3208, %v3213
  %v3218 = vlaneseq
  %v3219 = vshrl.u32 %v3218, 7
  %v3220 = vsub.s32 0, %v3219
  %v3221 = vrot.slane %v3182, %v3220
  %v3223 = vadd.f32 %v3215, %v3221
  %v3224 = vadd.f32 %v3216, %v3221
  %v3225 = vld [vmem:[%s24] sm:$0xff]
  %v3226 = vld [vmem:[%s24 + $0x8] sm:$0xff]
  %v3227 = vld [vmem:[%s24 + $0x10] sm:$0xff]
  %v3228 = vld [vmem:[%s24 + $0x18] sm:$0xff]
  %v3229 = vld [vmem:[%s25] sm:$0x1]
  %v3231 = vlaneseq
  %v3232 = vshrl.u32 %v3231, 7
  %v3233 = vsub.s32 0, %v3232
  %v3234 = vrot.slane %v3229, %v3233
  %v3237 = vsel %vm191, %v3223, 0
  %v3240 = vsel %vm191, %v3224, 0
  %3242 = vmatprep.subr.mxu0 0.0
  %3243 = vmatpush1.msra.mxu0 %v3225
  %3244 = vmatprep.subr.mxu0 0.0
  %3245 = vmatpush1.msra.mxu0 %v3226
  %3246 = vmatprep.subr.mxu0 0.0
  %3247 = vmatpush1.msra.mxu0 %v3227
  %3248 = vmatprep.subr.mxu0 0.0
  %3249 = vmatpush1.msra.mxu0 %v3228
  %3250 = vmatprep.subr.mxu0 0.0
  %3251 = vmatpush1.msra.mxu0 0.0
  %3252 = vmatprep.subr.mxu0 0.0
  %3253 = vmatpush1.msra.mxu0 0.0
  %3254 = vmatprep.subr.mxu0 0.0
  %3255 = vmatpush1.msra.mxu0 0.0
  %3256 = vmatprep.subr.mxu0 0.0
  %3257 = vmatpush1.msra.mxu0 0.0
  %3258 = vmatprep.subr.mxu0 0.0
  %3259 = vmatpush1.msra.mxu0 0.0
  %3260 = vmatprep.subr.mxu0 0.0
  %3261 = vmatpush1.msra.mxu0 0.0
  %3262 = vmatprep.subr.mxu0 0.0
  %3263 = vmatpush1.msra.mxu0 0.0
  %3264 = vmatprep.subr.mxu0 0.0
  %3265 = vmatpush1.msra.mxu0 0.0
  %3266 = vmatprep.subr.mxu0 0.0
  %3267 = vmatpush1.msra.mxu0 0.0
  %3268 = vmatprep.subr.mxu0 0.0
  %3269 = vmatpush1.msra.mxu0 0.0
  %3270 = vmatprep.subr.mxu0 0.0
  %3271 = vmatpush1.msra.mxu0 0.0
  %3272 = vmatprep.subr.mxu0 0.0
  %3273 = vmatpush1.msra.mxu0 0.0
  %3274 = vmatprep.subr.mxu0 0.0
  %3275 = vmatpush1.msra.mxu0 0.0
  %3276 = vmatprep.subr.mxu0 0.0
  %3277 = vmatpush1.msra.mxu0 0.0
  %3278 = vmatprep.subr.mxu0 0.0
  %3279 = vmatpush1.msra.mxu0 0.0
  %3280 = vmatprep.subr.mxu0 0.0
  %3281 = vmatpush1.msra.mxu0 0.0
  %3282 = vmatprep.subr.mxu0 0.0
  %3283 = vmatpush1.msra.mxu0 0.0
  %3284 = vmatprep.subr.mxu0 0.0
  %3285 = vmatpush1.msra.mxu0 0.0
  %3286 = vmatprep.subr.mxu0 0.0
  %3287 = vmatpush1.msra.mxu0 0.0
  %3288 = vmatprep.subr.mxu0 0.0
  %3289 = vmatpush1.msra.mxu0 0.0
  %3290 = vmatprep.subr.mxu0 0.0
  %3291 = vmatpush1.msra.mxu0 0.0
  %3292 = vmatprep.subr.mxu0 0.0
  %3293 = vmatpush1.msra.mxu0 0.0
  %3294 = vmatprep.subr.mxu0 0.0
  %3295 = vmatpush1.msra.mxu0 0.0
  %3296 = vmatprep.subr.mxu0 0.0
  %3297 = vmatpush1.msra.mxu0 0.0
  %3298 = vmatprep.subr.mxu0 0.0
  %3299 = vmatpush1.msra.mxu0 0.0
  %3300 = vmatprep.subr.mxu0 0.0
  %3301 = vmatpush1.msra.mxu0 0.0
  %3302 = vmatprep.subr.mxu0 0.0
  %3303 = vmatpush1.msra.mxu0 0.0
  %3304 = vmatprep.subr.mxu0 0.0
  %3305 = vmatpush1.msra.mxu0 0.0
  %3306 = vmatprep.mubr.f32.mxu0 0.0
  %3307 = vmatmul.mubr.f32.gmra.mrb[0].mxu0 %v3237
  %v3308 = vpop.f32.mrb[0].mxu0
  %v3309 = vadd.f32 %v3234, %v3308
  %v3310 = vpop.f32.mrb[0].mxu0
  %3311 = vmatprep.mubr.f32.mxu0 0.0
  %3312 = vmatmul.mubr.f32.gmra.mrb[0].mxu0 %v3240
  %v3313 = vpop.f32.mrb[0].mxu0
  %v3314 = vadd.f32 %v3234, %v3313
  %v3315 = vpop.f32.mrb[0].mxu0
  %3316 = vdwg.mxu0
  %v3317 = vld [vmem:[%s26] sm:$0xff]
  %v3318 = vld [vmem:[%s27] sm:$0xff]
  %v3319 = vmul.f32 %v3309, %v3317
  %v3320 = vmul.f32 %v3314, %v3317
  %v3321 = vadd.f32 %v3319, %v3318
  %v3322 = vadd.f32 %v3320, %v3318
  %3323 = vst.msk [vmem:[%s28] sm:$0xff] %vm2011, %v3321
  %3324 = vst.msk [vmem:[%s28 + $0x8] sm:$0xff] %vm2011, %v3322
  // Predicated region
  $region114: #{_lambda_.3} parent=0 // pred_check
    _
  $region115: #{_lambda_.3} parent=0 // pred_check_branch
    %3326 = sbr.rel (0) target = $region117
  $region116: #{_lambda_.3} parent=0 // pred_region
    _
  $region117: #{_lambda_.3} parent=0 // pred_fallthru
    _
  // Predicated region
  $region118: #{_lambda_.3} parent=0 // pred_check
    _
  $region119: #{_lambda_.3} parent=0 // pred_check_branch
    %3328 = sbr.rel (0) target = $region121
  $region120: #{_lambda_.3} parent=0 // pred_region
    _
  $region121: #{_lambda_.3} parent=0 // pred_fallthru
    _

</llo_original>
